<compile_context>
chip_gen: v7x
topology: tpu7x:2x2x1
jax: 0.10.0
libtpu: 0.0.40
codegen_flags: <defaults>
</compile_context>

<pallas_src>
import functools

import jax
import jax.numpy as jnp
from jax import lax
from jax.experimental import pallas as pl
from jax.experimental.pallas import tpu as pltpu


# ------------------------------------------------------------------
# Kernel 1: all five 1x1 conv + folded-BN (+ReLU) branches, fused.
# ------------------------------------------------------------------
def _fused_unit_kernel(cc, a_ref, w1_ref, b1_ref, w2_ref, b2_ref,
                       slab1_ref, slab2_ref):
    """One M-row tile of the fused 1x1 stage.

    a_ref  : (TM, Cx+Cc) bf16     [x | bilinear(up_x)] rows
    w1_ref : (Cx+Cc, Cc+Cx) bf16  [[Wu, Ws1], [Wup, 0]]  (BN folded)
    b1_ref : (1, Cc+Cx) f32       [bu+bup | bs1]
    w2_ref : (Cc, Cx+Ccr) bf16    [Ws2 | Wcc]            (BN folded)
    b2_ref : (1, Cx+Ccr) f32      [bs2 | bcc]
    slab1  : (TM, Cc+Cx) bf16     [out | skip1]   (relu applied)
    slab2  : (TM, Cx+Ccr) bf16    [skip2 | cross] (relu applied)
    """
    f32 = jnp.float32
    t1 = jnp.dot(a_ref[...], w1_ref[...], preferred_element_type=f32)
    s1 = jnp.maximum(t1 + b1_ref[...], 0.0)
    slab1_ref[...] = s1.astype(slab1_ref.dtype)

    ob = s1[:, :cc].astype(w2_ref.dtype)          # `out`, reused in-register
    t2 = jnp.dot(ob, w2_ref[...], preferred_element_type=f32)
    slab2_ref[...] = jnp.maximum(t2 + b2_ref[...], 0.0).astype(slab2_ref.dtype)


# ------------------------------------------------------------------
# Kernel 2: res path = res_conv1 (1x1+BN+ReLU) + res_conv2 (3x3+BN), fused.
# ------------------------------------------------------------------
def _res_kernel(h, w, co, ob_ref, wr1_ref, br1_ref, wk_ref, bk_ref,
                res_ref, r1p_ref, a_ref):
    """One batch item of the res path, fully in VMEM.

    ob_ref : (H*W, Cc) bf16      `out` stripe (read straight out of slab1)
    wr1_ref: (Cc, Cc) bf16, br1_ref: (1, Cc) f32   res_conv1 (BN folded)
    wk_ref : (3, Cc, 3*Co) bf16  res_conv2 weights: per-kh slab, kw concat on N
    bk_ref : (1, Co) f32         res_conv2 folded-BN bias
    res_ref: (1, H*(W+2), Co) f32  conv output over the width-extended grid
                                   (columns >= W are garbage, sliced off outside)
    r1p_ref: VMEM ((H+2)*(W+2), Cc) bf16  zero-padded res1 stripe
    a_ref  : VMEM (H*(W+2)+8, 3*Co) f32   per-kw partial sums
    """
    f32 = jnp.float32
    wp = w + 2
    hw = h * w
    hwp = h * wp

    # Padding must be exact zeros in res1 space (relu(conv1(0)) != 0), so clear
    # the whole padded buffer every step (cheap VMEM memset; also keeps the
    # "parallel" grid axis safe on megacore).
    r1p_ref[...] = jnp.zeros_like(r1p_ref)

    # res_conv1: 1x1 conv + folded BN + ReLU on the `out` stripe.
    r1 = jnp.dot(ob_ref[...], wr1_ref[...], preferred_element_type=f32)
    r1 = jnp.maximum(r1 + br1_ref[...], 0.0).astype(r1p_ref.dtype)

    # Scatter valid rows into the (H+2, W+2)-padded flat layout (static unroll).
    for hh in range(h):
        r1p_ref[pl.ds((hh + 1) * wp + 1, w), :] = r1[hh * w:(hh + 1) * w, :]

    # res_conv2: 3 row-shifted MXU matmuls, the 3 kw taps concatenated on N.
    acc = jnp.dot(r1p_ref[pl.ds(0, hwp), :], wk_ref[0],
                  preferred_element_type=f32)
    acc = acc + jnp.dot(r1p_ref[pl.ds(wp, hwp), :], wk_ref[1],
                        preferred_element_type=f32)
    acc = acc + jnp.dot(r1p_ref[pl.ds(2 * wp, hwp), :], wk_ref[2],
                        preferred_element_type=f32)
    a_ref[pl.ds(0, hwp), :] = acc
    a_ref[pl.ds(hwp, 8), :] = jnp.zeros((8, 3 * co), f32)

    # Combine the kw taps with +0/+1/+2 row shifts; zero-padded columns make
    # the W boundary handling implicit.  Add the folded-BN bias.
    r = (a_ref[pl.ds(0, hwp), 0:co]
         + a_ref[pl.ds(1, hwp), co:2 * co]
         + a_ref[pl.ds(2, hwp), 2 * co:3 * co]
         + bk_ref[...])
    res_ref[0, :, :] = r.astype(res_ref.dtype)


# ------------------------------------------------------------------
# Glue (pure data movement / parameter folding, plain JAX)
# ------------------------------------------------------------------
def _round_up(x, m):
    return (x + m - 1) // m * m


def _choose_tm(m):
    # >=2 grid steps when m is large enough (feeds both TCs on v7x megacore),
    # with tiles as large as comfortably fit scoped VMEM (fewer ~0.35us/step
    # overheads on single-TC v5e/v6e).  Prefers tm | m so mp == m (no pad copy).
    if m <= 256:
        return max(8, _round_up(m, 8))
    return min(_round_up((m + 1) // 2, 128), 2048)


def _bilinear_align_corners(x_nhwc, out_h, out_w):
    """F.interpolate(..., mode='bilinear', align_corners=True) in NHWC."""
    n, h, w, c = x_nhwc.shape

    def idx_w(in_size, out_size):
        if out_size == 1:
            pos = jnp.zeros((1,), jnp.float32)
        else:
            pos = (jnp.arange(out_size, dtype=jnp.float32)
                   * (in_size - 1) / (out_size - 1))
        lo = jnp.clip(jnp.floor(pos).astype(jnp.int32), 0, in_size - 1)
        hi = jnp.minimum(lo + 1, in_size - 1)
        frac = pos - lo.astype(jnp.float32)
        return lo, hi, frac

    hlo, hhi, hf = idx_w(h, out_h)
    wlo, whi, wf = idx_w(w, out_w)

    top = x_nhwc[:, hlo, :, :]
    bot = x_nhwc[:, hhi, :, :]
    xh = top * (1.0 - hf)[None, :, None, None] + bot * hf[None, :, None, None]
    left = xh[:, :, wlo, :]
    right = xh[:, :, whi, :]
    return (left * (1.0 - wf)[None, None, :, None]
            + right * wf[None, None, :, None])


def _fold_bn(p, eps=1e-5):
    """Fold inference-mode BN into conv weight/bias (last weight dim = Cout)."""
    scale = p["gamma"] / jnp.sqrt(p["var"] + eps)
    wf = p["w"] * scale
    bf = (p["b"] - p["mean"]) * scale + p["beta"]
    return wf, bf


# ------------------------------------------------------------------
# Upsample_unit forward (ind=3, gen_skip=True, gen_cross_conv=True)
# ------------------------------------------------------------------
@functools.partial(jax.jit, static_argnames=("up_size", "output_shape"))
def upsample_unit_forward(x_nchw, upx_nchw, params, up_size, output_shape):
    x = jnp.transpose(x_nchw, (0, 2, 3, 1)).astype(jnp.float32)      # NHWC
    upx = jnp.transpose(upx_nchw, (0, 2, 3, 1)).astype(jnp.float32)  # NHWC

    n, h, w, cx = x.shape
    cc = params["u_skip"]["w"].shape[1]          # chl_num
    co = params["res_conv2"]["w"].shape[-1]      # output_chl_num
    ccr = params["cross_conv"]["w"].shape[1]     # 64
    # The module adds up_conv(up_x) to u_skip(x), so up_size must equal x's
    # spatial size (PyTorch would raise on a mismatch too).
    assert up_size == (h, w), "up_size must match x spatial size"
    assert (h * w) % 8 == 0, "H*W must be a multiple of 8 for the res kernel"

    # Bilinear up-sample of up_x to x's spatial size (plain-JAX glue).
    up_i = _bilinear_align_corners(upx, h, w)

    # ---- flatten spatial to M rows, K-concat [x | up], cast MXU inputs bf16 ----
    m = n * h * w
    tm = _choose_tm(m)
    mp = _round_up(m, tm)
    bf = jnp.bfloat16

    a = jnp.concatenate([x.reshape(m, cx), up_i.reshape(m, cc)], axis=-1)
    a = a.astype(bf)
    if mp != m:
        a = jnp.pad(a, ((0, mp - m), (0, 0)))

    # ---- fold BN into weights/biases; build concatenated weight slabs ----
    wu, bu = _fold_bn(params["u_skip"])
    wup, bup = _fold_bn(params["up_conv"])
    ws1, bs1 = _fold_bn(params["skip1"])
    ws2, bs2 = _fold_bn(params["skip2"])
    wcc, bcc = _fold_bn(params["cross_conv"])
    wr1, br1 = _fold_bn(params["res_conv1"])
    wr2, br2 = _fold_bn(params["res_conv2"])

    w1 = jnp.concatenate(
        [jnp.concatenate([wu, ws1], axis=1),                                 # x rows
         jnp.concatenate([wup, jnp.zeros((cc, cx), jnp.float32)], axis=1)],  # up rows
        axis=0).astype(bf)                                   # (cx+cc, cc+cx)
    b1 = jnp.concatenate([bu + bup, bs1]).reshape(1, cc + cx)
    w2 = jnp.concatenate([ws2, wcc], axis=1).astype(bf)      # (cc, cx+ccr)
    b2 = jnp.concatenate([bs2, bcc]).reshape(1, cx + ccr)

    # ---- fused 1x1-conv kernel over M row tiles ----
    rows = lambda i: (i, 0)
    full = lambda i: (0, 0)
    slab1, slab2 = pl.pallas_call(
        functools.partial(_fused_unit_kernel, cc),
        out_shape=(
            jax.ShapeDtypeStruct((mp, cc + cx), jnp.bfloat16),   # [out | skip1]
            jax.ShapeDtypeStruct((mp, cx + ccr), jnp.bfloat16),  # [skip2 | cross]
        ),
        grid_spec=pltpu.PrefetchScalarGridSpec(
            num_scalar_prefetch=0,
            grid=(mp // tm,),
            in_specs=[
                pl.BlockSpec((tm, cx + cc), rows),
                pl.BlockSpec((cx + cc, cc + cx), full),
                pl.BlockSpec((1, cc + cx), full),
                pl.BlockSpec((cc, cx + ccr), full),
                pl.BlockSpec((1, cx + ccr), full),
            ],
            out_specs=(
                pl.BlockSpec((tm, cc + cx), rows),
                pl.BlockSpec((tm, cx + ccr), rows),
            ),
        ),
        compiler_params=pltpu.CompilerParams(
            dimension_semantics=("parallel",),
            vmem_limit_bytes=32 * 1024 * 1024),
    )(a, w1, b1, w2, b2)

    # ---- res path: conv1x1+BN+ReLU fused with conv3x3+BN (per batch item) ----
    wpad = w + 2
    # (kh, kw, cin, cout) -> (kh, cin, kw*cout)
    wk = jnp.transpose(wr2, (0, 2, 1, 3)).reshape(3, cc, 3 * co).astype(bf)

    res_e = pl.pallas_call(
        functools.partial(_res_kernel, h, w, co),
        out_shape=jax.ShapeDtypeStruct((n, h * wpad, co), jnp.float32),
        grid_spec=pltpu.PrefetchScalarGridSpec(
            num_scalar_prefetch=0,
            grid=(n,),
            in_specs=[
                # `out` columns of slab1, one batch stripe per grid step.
                pl.BlockSpec((h * w, cc), lambda i: (i, 0)),
                pl.BlockSpec((cc, cc), lambda i: (0, 0)),
                pl.BlockSpec((1, cc), lambda i: (0, 0)),
                pl.BlockSpec((3, cc, 3 * co), lambda i: (0, 0, 0)),
                pl.BlockSpec((1, co), lambda i: (0, 0)),
            ],
            out_specs=pl.BlockSpec((1, h * wpad, co), lambda i: (i, 0, 0)),
            scratch_shapes=[
                pltpu.VMEM(((h + 2) * wpad, cc), jnp.bfloat16),
                pltpu.VMEM((h * wpad + 8, 3 * co), jnp.float32),
            ],
        ),
        compiler_params=pltpu.CompilerParams(
            dimension_semantics=("parallel",),
            vmem_limit_bytes=32 * 1024 * 1024),
    )(slab1, wr1.astype(bf), br1.reshape(1, cc), wk, br2.reshape(1, co))

    res2 = res_e.reshape(n, h, wpad, co)[:, :, :w, :]        # drop garbage cols
    res = _bilinear_align_corners(res2, output_shape[0], output_shape[1])

    # ---- assemble NCHW f32 outputs (layout glue) ----
    to_nchw = lambda t: jnp.transpose(t.astype(jnp.float32), (0, 3, 1, 2))
    out = to_nchw(slab1[:m, :cc].reshape(n, h, w, cc))
    skip1 = to_nchw(slab1[:m, cc:].reshape(n, h, w, cx))
    skip2 = to_nchw(slab2[:m, :cx].reshape(n, h, w, cx))
    cross = to_nchw(slab2[:m, cx:].reshape(n, h, w, ccr))
    res = to_nchw(res)
    return out, res, skip1, skip2, cross


# ------------------------------------------------------------------
# Pure-JAX f32 reference (for correctness check)
# ------------------------------------------------------------------
def _cbr1_ref(x, p, relu, eps=1e-5):
    y = jnp.einsum("nhwc,cd->nhwd", x, p["w"]) + p["b"]
    y = (y - p["mean"]) / jnp.sqrt(p["var"] + eps) * p["gamma"] + p["beta"]
    return jnp.maximum(y, 0.0) if relu else y


def _cbr3_ref(x, p, relu, eps=1e-5):
    y = lax.conv_general_dilated(
        x, p["w"], window_strides=(1, 1), padding=((1, 1), (1, 1)),
        dimension_numbers=("NHWC", "HWIO", "NHWC")) + p["b"]
    y = (y - p["mean"]) / jnp.sqrt(p["var"] + eps) * p["gamma"] + p["beta"]
    return jnp.maximum(y, 0.0) if relu else y


def upsample_unit_reference(x_nchw, upx_nchw, params, up_size, output_shape):
    x = jnp.transpose(x_nchw, (0, 2, 3, 1)).astype(jnp.float32)
    upx = jnp.transpose(upx_nchw, (0, 2, 3, 1)).astype(jnp.float32)
    out = _cbr1_ref(x, params["u_skip"], relu=False)
    upi = _bilinear_align_corners(upx, up_size[0], up_size[1])
    out = out + _cbr1_ref(upi, params["up_conv"], relu=False)
    out = jnp.maximum(out, 0.0)
    res = _cbr1_ref(out, params["res_conv1"], relu=True)
    res = _cbr3_ref(res, params["res_conv2"], relu=False)
    res = _bilinear_align_corners(res, output_shape[0], output_shape[1])
    skip1 = _cbr1_ref(x, params["skip1"], relu=True)
    skip2 = _cbr1_ref(out, params["skip2"], relu=True)
    cross = _cbr1_ref(out, params["cross_conv"], relu=True)
    to_nchw = lambda t: jnp.transpose(t, (0, 3, 1, 2))
    return tuple(to_nchw(t) for t in (out, res, skip1, skip2, cross))


# ------------------------------------------------------------------
def _make_cbr_params(key, cin, cout, ksize):
    kw, kb, kg, kbe, km, kv = jax.random.split(key, 6)
    if ksize == 1:
        wgt = 0.05 * jax.random.normal(kw, (cin, cout), jnp.float32)
    else:
        wgt = 0.05 * jax.random.normal(kw, (ksize, ksize, cin, cout), jnp.float32)
    return dict(
        w=wgt,
        b=0.05 * jax.random.normal(kb, (cout,), jnp.float32),
        gamma=1.0 + 0.1 * jax.random.normal(kg, (cout,), jnp.float32),
        beta=0.1 * jax.random.normal(kbe, (cout,), jnp.float32),
        mean=0.1 * jax.random.normal(km, (cout,), jnp.float32),
        var=0.9 + 0.1 * jnp.abs(jax.random.normal(kv, (cout,), jnp.float32)),
    )


if __name__ == "__main__":
    key = jax.random.PRNGKey(0)
    ks = jax.random.split(key, 9)

    # Small-but-representative config: ind=3, gen_skip=True, gen_cross_conv=True
    N, CX, CC, CO = 2, 64, 128, 32          # batch, in_planes, chl_num, out_chl
    H, W = 16, 16                           # spatial of x (= up_size)
    UH, UW = 8, 8                           # spatial of up_x
    up_size = (H, W)
    output_shape = (32, 32)

    x = jax.random.normal(ks[0], (N, CX, H, W), jnp.float32)
    up_x = jax.random.normal(ks[1], (N, CC, UH, UW), jnp.float32)

    params = {
        "u_skip":     _make_cbr_params(ks[2], CX, CC, 1),
        "up_conv":    _make_cbr_params(ks[3], CC, CC, 1),
        "res_conv1":  _make_cbr_params(ks[4], CC, CC, 1),
        "res_conv2":  _make_cbr_params(ks[5], CC, CO, 3),
        "skip1":      _make_cbr_params(ks[6], CX, CX, 1),
        "skip2":      _make_cbr_params(ks[7], CC, CX, 1),
        "cross_conv": _make_cbr_params(ks[8], CC, 64, 1),
    }

    outs = upsample_unit_forward(x, up_x, params, up_size, output_shape)
    outs = jax.block_until_ready(outs)
    refs = upsample_unit_reference(x, up_x, params, up_size, output_shape)

    expected = {
        "out": (N, CC, H, W),
        "res": (N, CO, output_shape[0], output_shape[1]),
        "skip1": (N, CX, H, W),
        "skip2": (N, CX, H, W),
        "cross_conv": (N, 64, H, W),
    }
    for name, got, ref in zip(("out", "res", "skip1", "skip2", "cross_conv"),
                              outs, refs):
        assert got.shape == expected[name], (name, got.shape)
        err = float(jnp.max(jnp.abs(got.astype(jnp.float32) - ref)))
        assert jnp.allclose(got.astype(jnp.float32), ref,
                            atol=5e-2, rtol=5e-2), (name, err)

    print("KERNEL_OK")
</pallas_src>

<mosaic_0001>
module attributes {stable_mosaic.version = 11 : i64} {
  func.func @_fused_unit_kernel(%arg0: i32, %arg1: memref<256x192xbf16, #tpu.memory_space<vmem>>, %arg2: memref<192x192xbf16, #tpu.memory_space<vmem>>, %arg3: memref<1x192xf32, #tpu.memory_space<vmem>>, %arg4: memref<128x128xbf16, #tpu.memory_space<vmem>>, %arg5: memref<1x128xf32, #tpu.memory_space<vmem>>, %arg6: memref<256x192xbf16, #tpu.memory_space<vmem>>, %arg7: memref<256x128xbf16, #tpu.memory_space<vmem>>) attributes {dimension_semantics = [#tpu.dimension_semantics<parallel>], iteration_bounds = array<i64: 2>, scalar_prefetch = 0 : i64, scratch_operands = 0 : i64, tpu.core_type = #tpu.core_type<tc>, window_params = [{transform_indices = @transform_0, window_bounds = array<i64: 256, 192>}, {pipeline_mode = #tpu.pipeline_mode<synchronous>, transform_indices = @transform_1, window_bounds = array<i64: 192, 192>}, {pipeline_mode = #tpu.pipeline_mode<synchronous>, transform_indices = @transform_2, window_bounds = array<i64: 1, 192>}, {pipeline_mode = #tpu.pipeline_mode<synchronous>, transform_indices = @transform_3, window_bounds = array<i64: 128, 128>}, {pipeline_mode = #tpu.pipeline_mode<synchronous>, transform_indices = @transform_4, window_bounds = array<i64: 1, 128>}, {transform_indices = @transform_5, window_bounds = array<i64: 256, 192>}, {transform_indices = @transform_6, window_bounds = array<i64: 256, 128>}]} {
    %c0 = arith.constant 0 : index
    %c0_0 = arith.constant 0 : index
    %0 = vector.load %arg1[%c0, %c0_0] : memref<256x192xbf16, #tpu.memory_space<vmem>>, vector<256x192xbf16>
    %c0_1 = arith.constant 0 : index
    %c0_2 = arith.constant 0 : index
    %1 = vector.load %arg2[%c0_1, %c0_2] : memref<192x192xbf16, #tpu.memory_space<vmem>>, vector<192x192xbf16>
    %cst = arith.constant dense<0.000000e+00> : vector<256x192xf32>
    %2 = tpu.matmul %0, %1, %cst {dimension_numbers = #tpu.dot_dimension_numbers<[1], [0], [0], [1], [0, 0, 1, 1], [], []>} : vector<256x192xbf16>, vector<192x192xbf16>, vector<256x192xf32> -> vector<256x192xf32>
    %c0_3 = arith.constant 0 : index
    %c0_4 = arith.constant 0 : index
    %3 = vector.load %arg3[%c0_3, %c0_4] : memref<1x192xf32, #tpu.memory_space<vmem>>, vector<1x192xf32>
    %4 = vector.broadcast %3 : vector<1x192xf32> to vector<256x192xf32>
    %5 = arith.addf %2, %4 : vector<256x192xf32>
    %cst_5 = arith.constant 0.000000e+00 : f32
    %6 = vector.broadcast %cst_5 : f32 to vector<256x192xf32>
    %7 = arith.maximumf %5, %6 : vector<256x192xf32>
    %8 = arith.truncf %7 : vector<256x192xf32> to vector<256x192xbf16>
    %c0_6 = arith.constant 0 : index
    %c0_7 = arith.constant 0 : index
    %9 = vector.load %arg6[%c0_6, %c0_7] : memref<256x192xbf16, #tpu.memory_space<vmem>>, vector<256x192xbf16>
    tpu.vector_store %arg6[%c0_6, %c0_7], %8 {strides = array<i32>} : memref<256x192xbf16, #tpu.memory_space<vmem>>, vector<256x192xbf16>,
    %10 = vector.extract_strided_slice %7 {offsets = [0, 0], sizes = [256, 128], strides = [1, 1]} : vector<256x192xf32> to vector<256x128xf32>
    %11 = arith.truncf %10 : vector<256x128xf32> to vector<256x128xbf16>
    %c0_8 = arith.constant 0 : index
    %c0_9 = arith.constant 0 : index
    %12 = vector.load %arg4[%c0_8, %c0_9] : memref<128x128xbf16, #tpu.memory_space<vmem>>, vector<128x128xbf16>
    %cst_10 = arith.constant dense<0.000000e+00> : vector<256x128xf32>
    %13 = tpu.matmul %11, %12, %cst_10 {dimension_numbers = #tpu.dot_dimension_numbers<[1], [0], [0], [1], [0, 0, 1, 1], [], []>} : vector<256x128xbf16>, vector<128x128xbf16>, vector<256x128xf32> -> vector<256x128xf32>
    %c0_11 = arith.constant 0 : index
    %c0_12 = arith.constant 0 : index
    %14 = vector.load %arg5[%c0_11, %c0_12] : memref<1x128xf32, #tpu.memory_space<vmem>>, vector<1x128xf32>
    %15 = vector.broadcast %14 : vector<1x128xf32> to vector<256x128xf32>
    %16 = arith.addf %13, %15 : vector<256x128xf32>
    %cst_13 = arith.constant 0.000000e+00 : f32
    %17 = vector.broadcast %cst_13 : f32 to vector<256x128xf32>
    %18 = arith.maximumf %16, %17 : vector<256x128xf32>
    %19 = arith.truncf %18 : vector<256x128xf32> to vector<256x128xbf16>
    %c0_14 = arith.constant 0 : index
    %c0_15 = arith.constant 0 : index
    %20 = vector.load %arg7[%c0_14, %c0_15] : memref<256x128xbf16, #tpu.memory_space<vmem>>, vector<256x128xbf16>
    tpu.vector_store %arg7[%c0_14, %c0_15], %19 {strides = array<i32>} : memref<256x128xbf16, #tpu.memory_space<vmem>>, vector<256x128xbf16>,
    return
  }
  func.func @transform_0(%arg0: i32) -> (i32, i32) {
    %c0_i32 = arith.constant 0 : i32
    %c0_i32_0 = arith.constant 0 : i32
    return %arg0, %c0_i32 : i32, i32
  }
  func.func @transform_1(%arg0: i32) -> (i32, i32) {
    %c0_i32 = arith.constant 0 : i32
    %c0_i32_0 = arith.constant 0 : i32
    %c0_i32_1 = arith.constant 0 : i32
    return %c0_i32, %c0_i32_0 : i32, i32
  }
  func.func @transform_2(%arg0: i32) -> (i32, i32) {
    %c0_i32 = arith.constant 0 : i32
    %c0_i32_0 = arith.constant 0 : i32
    %c0_i32_1 = arith.constant 0 : i32
    return %c0_i32, %c0_i32_0 : i32, i32
  }
  func.func @transform_3(%arg0: i32) -> (i32, i32) {
    %c0_i32 = arith.constant 0 : i32
    %c0_i32_0 = arith.constant 0 : i32
    %c0_i32_1 = arith.constant 0 : i32
    return %c0_i32, %c0_i32_0 : i32, i32
  }
  func.func @transform_4(%arg0: i32) -> (i32, i32) {
    %c0_i32 = arith.constant 0 : i32
    %c0_i32_0 = arith.constant 0 : i32
    %c0_i32_1 = arith.constant 0 : i32
    return %c0_i32, %c0_i32_0 : i32, i32
  }
  func.func @transform_5(%arg0: i32) -> (i32, i32) {
    %c0_i32 = arith.constant 0 : i32
    %c0_i32_0 = arith.constant 0 : i32
    return %arg0, %c0_i32 : i32, i32
  }
  func.func @transform_6(%arg0: i32) -> (i32, i32) {
    %c0_i32 = arith.constant 0 : i32
    %c0_i32_0 = arith.constant 0 : i32
    return %arg0, %c0_i32 : i32, i32
  }
}

module attributes {stable_mosaic.version = 11 : i64} {
  func.func @_res_kernel(%arg0: i32, %arg1: memref<256x128xbf16, #tpu.memory_space<vmem>>, %arg2: memref<128x128xbf16, #tpu.memory_space<vmem>>, %arg3: memref<1x128xf32, #tpu.memory_space<vmem>>, %arg4: memref<3x128x96xbf16, #tpu.memory_space<vmem>>, %arg5: memref<1x32xf32, #tpu.memory_space<vmem>>, %arg6: memref<1x288x32xf32, #tpu.memory_space<vmem>>, %arg7: memref<324x128xbf16, #tpu.memory_space<vmem>>, %arg8: memref<296x96xf32, #tpu.memory_space<vmem>>) attributes {dimension_semantics = [#tpu.dimension_semantics<parallel>], iteration_bounds = array<i64: 2>, scalar_prefetch = 0 : i64, scratch_operands = 2 : i64, tpu.core_type = #tpu.core_type<tc>, window_params = [{transform_indices = @transform_0, window_bounds = array<i64: 256, 128>}, {pipeline_mode = #tpu.pipeline_mode<synchronous>, transform_indices = @transform_1, window_bounds = array<i64: 128, 128>}, {pipeline_mode = #tpu.pipeline_mode<synchronous>, transform_indices = @transform_2, window_bounds = array<i64: 1, 128>}, {pipeline_mode = #tpu.pipeline_mode<synchronous>, transform_indices = @transform_3, window_bounds = array<i64: 3, 128, 96>}, {pipeline_mode = #tpu.pipeline_mode<synchronous>, transform_indices = @transform_4, window_bounds = array<i64: 1, 32>}, {transform_indices = @transform_5, window_bounds = array<i64: 1, 288, 32>}]} {
    %cst = arith.constant 0.000000e+00 : bf16
    %0 = vector.broadcast %cst : bf16 to vector<324x128xbf16>
    %c0 = arith.constant 0 : index
    %c0_0 = arith.constant 0 : index
    %1 = vector.load %arg7[%c0, %c0_0] : memref<324x128xbf16, #tpu.memory_space<vmem>>, vector<324x128xbf16>
    tpu.vector_store %arg7[%c0, %c0_0], %0 {strides = array<i32>} : memref<324x128xbf16, #tpu.memory_space<vmem>>, vector<324x128xbf16>,
    %c0_1 = arith.constant 0 : index
    %c0_2 = arith.constant 0 : index
    %2 = vector.load %arg1[%c0_1, %c0_2] : memref<256x128xbf16, #tpu.memory_space<vmem>>, vector<256x128xbf16>
    %c0_3 = arith.constant 0 : index
    %c0_4 = arith.constant 0 : index
    %3 = vector.load %arg2[%c0_3, %c0_4] : memref<128x128xbf16, #tpu.memory_space<vmem>>, vector<128x128xbf16>
    %cst_5 = arith.constant dense<0.000000e+00> : vector<256x128xf32>
    %4 = tpu.matmul %2, %3, %cst_5 {dimension_numbers = #tpu.dot_dimension_numbers<[1], [0], [0], [1], [0, 0, 1, 1], [], []>} : vector<256x128xbf16>, vector<128x128xbf16>, vector<256x128xf32> -> vector<256x128xf32>
    %c0_6 = arith.constant 0 : index
    %c0_7 = arith.constant 0 : index
    %5 = vector.load %arg3[%c0_6, %c0_7] : memref<1x128xf32, #tpu.memory_space<vmem>>, vector<1x128xf32>
    %6 = vector.broadcast %5 : vector<1x128xf32> to vector<256x128xf32>
    %7 = arith.addf %4, %6 : vector<256x128xf32>
    %cst_8 = arith.constant 0.000000e+00 : f32
    %8 = vector.broadcast %cst_8 : f32 to vector<256x128xf32>
    %9 = arith.maximumf %7, %8 : vector<256x128xf32>
    %10 = arith.truncf %9 : vector<256x128xf32> to vector<256x128xbf16>
    %11 = vector.extract_strided_slice %10 {offsets = [0, 0], sizes = [16, 128], strides = [1, 1]} : vector<256x128xbf16> to vector<16x128xbf16>
    %c19 = arith.constant 19 : index
    %c0_9 = arith.constant 0 : index
    %12 = vector.load %arg7[%c19, %c0_9] : memref<324x128xbf16, #tpu.memory_space<vmem>>, vector<16x128xbf16>
    tpu.vector_store %arg7[%c19, %c0_9], %11 {strides = array<i32>} : memref<324x128xbf16, #tpu.memory_space<vmem>>, vector<16x128xbf16>,
    %13 = vector.extract_strided_slice %10 {offsets = [16, 0], sizes = [16, 128], strides = [1, 1]} : vector<256x128xbf16> to vector<16x128xbf16>
    %c37 = arith.constant 37 : index
    %c0_10 = arith.constant 0 : index
    %14 = vector.load %arg7[%c37, %c0_10] : memref<324x128xbf16, #tpu.memory_space<vmem>>, vector<16x128xbf16>
    tpu.vector_store %arg7[%c37, %c0_10], %13 {strides = array<i32>} : memref<324x128xbf16, #tpu.memory_space<vmem>>, vector<16x128xbf16>,
    %15 = vector.extract_strided_slice %10 {offsets = [32, 0], sizes = [16, 128], strides = [1, 1]} : vector<256x128xbf16> to vector<16x128xbf16>
    %c55 = arith.constant 55 : index
    %c0_11 = arith.constant 0 : index
    %16 = vector.load %arg7[%c55, %c0_11] : memref<324x128xbf16, #tpu.memory_space<vmem>>, vector<16x128xbf16>
    tpu.vector_store %arg7[%c55, %c0_11], %15 {strides = array<i32>} : memref<324x128xbf16, #tpu.memory_space<vmem>>, vector<16x128xbf16>,
    %17 = vector.extract_strided_slice %10 {offsets = [48, 0], sizes = [16, 128], strides = [1, 1]} : vector<256x128xbf16> to vector<16x128xbf16>
    %c73 = arith.constant 73 : index
    %c0_12 = arith.constant 0 : index
    %18 = vector.load %arg7[%c73, %c0_12] : memref<324x128xbf16, #tpu.memory_space<vmem>>, vector<16x128xbf16>
    tpu.vector_store %arg7[%c73, %c0_12], %17 {strides = array<i32>} : memref<324x128xbf16, #tpu.memory_space<vmem>>, vector<16x128xbf16>,
    %19 = vector.extract_strided_slice %10 {offsets = [64, 0], sizes = [16, 128], strides = [1, 1]} : vector<256x128xbf16> to vector<16x128xbf16>
    %c91 = arith.constant 91 : index
    %c0_13 = arith.constant 0 : index
    %20 = vector.load %arg7[%c91, %c0_13] : memref<324x128xbf16, #tpu.memory_space<vmem>>, vector<16x128xbf16>
    tpu.vector_store %arg7[%c91, %c0_13], %19 {strides = array<i32>} : memref<324x128xbf16, #tpu.memory_space<vmem>>, vector<16x128xbf16>,
    %21 = vector.extract_strided_slice %10 {offsets = [80, 0], sizes = [16, 128], strides = [1, 1]} : vector<256x128xbf16> to vector<16x128xbf16>
    %c109 = arith.constant 109 : index
    %c0_14 = arith.constant 0 : index
    %22 = vector.load %arg7[%c109, %c0_14] : memref<324x128xbf16, #tpu.memory_space<vmem>>, vector<16x128xbf16>
    tpu.vector_store %arg7[%c109, %c0_14], %21 {strides = array<i32>} : memref<324x128xbf16, #tpu.memory_space<vmem>>, vector<16x128xbf16>,
    %23 = vector.extract_strided_slice %10 {offsets = [96, 0], sizes = [16, 128], strides = [1, 1]} : vector<256x128xbf16> to vector<16x128xbf16>
    %c127 = arith.constant 127 : index
    %c0_15 = arith.constant 0 : index
    %24 = vector.load %arg7[%c127, %c0_15] : memref<324x128xbf16, #tpu.memory_space<vmem>>, vector<16x128xbf16>
    tpu.vector_store %arg7[%c127, %c0_15], %23 {strides = array<i32>} : memref<324x128xbf16, #tpu.memory_space<vmem>>, vector<16x128xbf16>,
    %25 = vector.extract_strided_slice %10 {offsets = [112, 0], sizes = [16, 128], strides = [1, 1]} : vector<256x128xbf16> to vector<16x128xbf16>
    %c145 = arith.constant 145 : index
    %c0_16 = arith.constant 0 : index
    %26 = vector.load %arg7[%c145, %c0_16] : memref<324x128xbf16, #tpu.memory_space<vmem>>, vector<16x128xbf16>
    tpu.vector_store %arg7[%c145, %c0_16], %25 {strides = array<i32>} : memref<324x128xbf16, #tpu.memory_space<vmem>>, vector<16x128xbf16>,
    %27 = vector.extract_strided_slice %10 {offsets = [128, 0], sizes = [16, 128], strides = [1, 1]} : vector<256x128xbf16> to vector<16x128xbf16>
    %c163 = arith.constant 163 : index
    %c0_17 = arith.constant 0 : index
    %28 = vector.load %arg7[%c163, %c0_17] : memref<324x128xbf16, #tpu.memory_space<vmem>>, vector<16x128xbf16>
    tpu.vector_store %arg7[%c163, %c0_17], %27 {strides = array<i32>} : memref<324x128xbf16, #tpu.memory_space<vmem>>, vector<16x128xbf16>,
    %29 = vector.extract_strided_slice %10 {offsets = [144, 0], sizes = [16, 128], strides = [1, 1]} : vector<256x128xbf16> to vector<16x128xbf16>
    %c181 = arith.constant 181 : index
    %c0_18 = arith.constant 0 : index
    %30 = vector.load %arg7[%c181, %c0_18] : memref<324x128xbf16, #tpu.memory_space<vmem>>, vector<16x128xbf16>
    tpu.vector_store %arg7[%c181, %c0_18], %29 {strides = array<i32>} : memref<324x128xbf16, #tpu.memory_space<vmem>>, vector<16x128xbf16>,
    %31 = vector.extract_strided_slice %10 {offsets = [160, 0], sizes = [16, 128], strides = [1, 1]} : vector<256x128xbf16> to vector<16x128xbf16>
    %c199 = arith.constant 199 : index
    %c0_19 = arith.constant 0 : index
    %32 = vector.load %arg7[%c199, %c0_19] : memref<324x128xbf16, #tpu.memory_space<vmem>>, vector<16x128xbf16>
    tpu.vector_store %arg7[%c199, %c0_19], %31 {strides = array<i32>} : memref<324x128xbf16, #tpu.memory_space<vmem>>, vector<16x128xbf16>,
    %33 = vector.extract_strided_slice %10 {offsets = [176, 0], sizes = [16, 128], strides = [1, 1]} : vector<256x128xbf16> to vector<16x128xbf16>
    %c217 = arith.constant 217 : index
    %c0_20 = arith.constant 0 : index
    %34 = vector.load %arg7[%c217, %c0_20] : memref<324x128xbf16, #tpu.memory_space<vmem>>, vector<16x128xbf16>
    tpu.vector_store %arg7[%c217, %c0_20], %33 {strides = array<i32>} : memref<324x128xbf16, #tpu.memory_space<vmem>>, vector<16x128xbf16>,
    %35 = vector.extract_strided_slice %10 {offsets = [192, 0], sizes = [16, 128], strides = [1, 1]} : vector<256x128xbf16> to vector<16x128xbf16>
    %c235 = arith.constant 235 : index
    %c0_21 = arith.constant 0 : index
    %36 = vector.load %arg7[%c235, %c0_21] : memref<324x128xbf16, #tpu.memory_space<vmem>>, vector<16x128xbf16>
    tpu.vector_store %arg7[%c235, %c0_21], %35 {strides = array<i32>} : memref<324x128xbf16, #tpu.memory_space<vmem>>, vector<16x128xbf16>,
    %37 = vector.extract_strided_slice %10 {offsets = [208, 0], sizes = [16, 128], strides = [1, 1]} : vector<256x128xbf16> to vector<16x128xbf16>
    %c253 = arith.constant 253 : index
    %c0_22 = arith.constant 0 : index
    %38 = vector.load %arg7[%c253, %c0_22] : memref<324x128xbf16, #tpu.memory_space<vmem>>, vector<16x128xbf16>
    tpu.vector_store %arg7[%c253, %c0_22], %37 {strides = array<i32>} : memref<324x128xbf16, #tpu.memory_space<vmem>>, vector<16x128xbf16>,
    %39 = vector.extract_strided_slice %10 {offsets = [224, 0], sizes = [16, 128], strides = [1, 1]} : vector<256x128xbf16> to vector<16x128xbf16>
    %c271 = arith.constant 271 : index
    %c0_23 = arith.constant 0 : index
    %40 = vector.load %arg7[%c271, %c0_23] : memref<324x128xbf16, #tpu.memory_space<vmem>>, vector<16x128xbf16>
    tpu.vector_store %arg7[%c271, %c0_23], %39 {strides = array<i32>} : memref<324x128xbf16, #tpu.memory_space<vmem>>, vector<16x128xbf16>,
    %41 = vector.extract_strided_slice %10 {offsets = [240, 0], sizes = [16, 128], strides = [1, 1]} : vector<256x128xbf16> to vector<16x128xbf16>
    %c289 = arith.constant 289 : index
    %c0_24 = arith.constant 0 : index
    %42 = vector.load %arg7[%c289, %c0_24] : memref<324x128xbf16, #tpu.memory_space<vmem>>, vector<16x128xbf16>
    tpu.vector_store %arg7[%c289, %c0_24], %41 {strides = array<i32>} : memref<324x128xbf16, #tpu.memory_space<vmem>>, vector<16x128xbf16>,
    %c0_25 = arith.constant 0 : index
    %c0_26 = arith.constant 0 : index
    %43 = vector.load %arg7[%c0_25, %c0_26] : memref<324x128xbf16, #tpu.memory_space<vmem>>, vector<288x128xbf16>
    %c0_27 = arith.constant 0 : index
    %c0_28 = arith.constant 0 : index
    %c0_29 = arith.constant 0 : index
    %44 = vector.load %arg4[%c0_27, %c0_28, %c0_29] : memref<3x128x96xbf16, #tpu.memory_space<vmem>>, vector<1x128x96xbf16>
    %45 = vector.shape_cast %44 : vector<1x128x96xbf16> to vector<128x96xbf16>
    %cst_30 = arith.constant dense<0.000000e+00> : vector<288x96xf32>
    %46 = tpu.matmul %43, %45, %cst_30 {dimension_numbers = #tpu.dot_dimension_numbers<[1], [0], [0], [1], [0, 0, 1, 1], [], []>} : vector<288x128xbf16>, vector<128x96xbf16>, vector<288x96xf32> -> vector<288x96xf32>
    %c18 = arith.constant 18 : index
    %c0_31 = arith.constant 0 : index
    %47 = vector.load %arg7[%c18, %c0_31] : memref<324x128xbf16, #tpu.memory_space<vmem>>, vector<288x128xbf16>
    %c1 = arith.constant 1 : index
    %c0_32 = arith.constant 0 : index
    %c0_33 = arith.constant 0 : index
    %48 = vector.load %arg4[%c1, %c0_32, %c0_33] : memref<3x128x96xbf16, #tpu.memory_space<vmem>>, vector<1x128x96xbf16>
    %49 = vector.shape_cast %48 : vector<1x128x96xbf16> to vector<128x96xbf16>
    %cst_34 = arith.constant dense<0.000000e+00> : vector<288x96xf32>
    %50 = tpu.matmul %47, %49, %cst_34 {dimension_numbers = #tpu.dot_dimension_numbers<[1], [0], [0], [1], [0, 0, 1, 1], [], []>} : vector<288x128xbf16>, vector<128x96xbf16>, vector<288x96xf32> -> vector<288x96xf32>
    %51 = arith.addf %46, %50 : vector<288x96xf32>
    %c36 = arith.constant 36 : index
    %c0_35 = arith.constant 0 : index
    %52 = vector.load %arg7[%c36, %c0_35] : memref<324x128xbf16, #tpu.memory_space<vmem>>, vector<288x128xbf16>
    %c2 = arith.constant 2 : index
    %c0_36 = arith.constant 0 : index
    %c0_37 = arith.constant 0 : index
    %53 = vector.load %arg4[%c2, %c0_36, %c0_37] : memref<3x128x96xbf16, #tpu.memory_space<vmem>>, vector<1x128x96xbf16>
    %54 = vector.shape_cast %53 : vector<1x128x96xbf16> to vector<128x96xbf16>
    %cst_38 = arith.constant dense<0.000000e+00> : vector<288x96xf32>
    %55 = tpu.matmul %52, %54, %cst_38 {dimension_numbers = #tpu.dot_dimension_numbers<[1], [0], [0], [1], [0, 0, 1, 1], [], []>} : vector<288x128xbf16>, vector<128x96xbf16>, vector<288x96xf32> -> vector<288x96xf32>
    %56 = arith.addf %51, %55 : vector<288x96xf32>
    %c0_39 = arith.constant 0 : index
    %c0_40 = arith.constant 0 : index
    %57 = vector.load %arg8[%c0_39, %c0_40] : memref<296x96xf32, #tpu.memory_space<vmem>>, vector<288x96xf32>
    tpu.vector_store %arg8[%c0_39, %c0_40], %56 {strides = array<i32>} : memref<296x96xf32, #tpu.memory_space<vmem>>, vector<288x96xf32>,
    %cst_41 = arith.constant 0.000000e+00 : f32
    %58 = vector.broadcast %cst_41 : f32 to vector<8x96xf32>
    %c288 = arith.constant 288 : index
    %c0_42 = arith.constant 0 : index
    %59 = vector.load %arg8[%c288, %c0_42] : memref<296x96xf32, #tpu.memory_space<vmem>>, vector<8x96xf32>
    tpu.vector_store %arg8[%c288, %c0_42], %58 {strides = array<i32>} : memref<296x96xf32, #tpu.memory_space<vmem>>, vector<8x96xf32>,
    %c0_43 = arith.constant 0 : index
    %c0_44 = arith.constant 0 : index
    %60 = vector.load %arg8[%c0_43, %c0_44] : memref<296x96xf32, #tpu.memory_space<vmem>>, vector<288x32xf32>
    %c1_45 = arith.constant 1 : index
    %c32 = arith.constant 32 : index
    %61 = vector.load %arg8[%c1_45, %c32] : memref<296x96xf32, #tpu.memory_space<vmem>>, vector<288x32xf32>
    %62 = arith.addf %60, %61 : vector<288x32xf32>
    %c2_46 = arith.constant 2 : index
    %c64 = arith.constant 64 : index
    %63 = vector.load %arg8[%c2_46, %c64] : memref<296x96xf32, #tpu.memory_space<vmem>>, vector<288x32xf32>
    %64 = arith.addf %62, %63 : vector<288x32xf32>
    %c0_47 = arith.constant 0 : index
    %c0_48 = arith.constant 0 : index
    %65 = vector.load %arg5[%c0_47, %c0_48] : memref<1x32xf32, #tpu.memory_space<vmem>>, vector<1x32xf32>
    %66 = vector.broadcast %65 : vector<1x32xf32> to vector<288x32xf32>
    %67 = arith.addf %64, %66 : vector<288x32xf32>
    %c0_49 = arith.constant 0 : index
    %c0_50 = arith.constant 0 : index
    %c0_51 = arith.constant 0 : index
    %68 = vector.load %arg6[%c0_49, %c0_50, %c0_51] : memref<1x288x32xf32, #tpu.memory_space<vmem>>, vector<1x288x32xf32>
    %69 = vector.shape_cast %68 : vector<1x288x32xf32> to vector<288x32xf32>
    %70 = vector.shape_cast %67 : vector<288x32xf32> to vector<1x288x32xf32>
    tpu.vector_store %arg6[%c0_49, %c0_50, %c0_51], %70 {strides = array<i32>} : memref<1x288x32xf32, #tpu.memory_space<vmem>>, vector<1x288x32xf32>,
    return
  }
  func.func @transform_0(%arg0: i32) -> (i32, i32) {
    %c0_i32 = arith.constant 0 : i32
    %c0_i32_0 = arith.constant 0 : i32
    return %arg0, %c0_i32 : i32, i32
  }
  func.func @transform_1(%arg0: i32) -> (i32, i32) {
    %c0_i32 = arith.constant 0 : i32
    %c0_i32_0 = arith.constant 0 : i32
    %c0_i32_1 = arith.constant 0 : i32
    return %c0_i32, %c0_i32_0 : i32, i32
  }
  func.func @transform_2(%arg0: i32) -> (i32, i32) {
    %c0_i32 = arith.constant 0 : i32
    %c0_i32_0 = arith.constant 0 : i32
    %c0_i32_1 = arith.constant 0 : i32
    return %c0_i32, %c0_i32_0 : i32, i32
  }
  func.func @transform_3(%arg0: i32) -> (i32, i32, i32) {
    %c0_i32 = arith.constant 0 : i32
    %c0_i32_0 = arith.constant 0 : i32
    %c0_i32_1 = arith.constant 0 : i32
    %c0_i32_2 = arith.constant 0 : i32
    return %c0_i32, %c0_i32_0, %c0_i32_1 : i32, i32, i32
  }
  func.func @transform_4(%arg0: i32) -> (i32, i32) {
    %c0_i32 = arith.constant 0 : i32
    %c0_i32_0 = arith.constant 0 : i32
    %c0_i32_1 = arith.constant 0 : i32
    return %c0_i32, %c0_i32_0 : i32, i32
  }
  func.func @transform_5(%arg0: i32) -> (i32, i32, i32) {
    %c0_i32 = arith.constant 0 : i32
    %c0_i32_0 = arith.constant 0 : i32
    %c0_i32_1 = arith.constant 0 : i32
    return %arg0, %c0_i32, %c0_i32_0 : i32, i32, i32
  }
}

</mosaic_0001>

<llo_original>
// kernel: upsample_unit_forward.2
$region0: #{upsample_unit_forward.2}
  #allocation0 [shape = 'u32[]', space=smem, size = 0x4, offset = 0x4, fixed_abs, tag = 'smem constant byte address 0x4 - core index']
  #allocation1 [shape = 'u32[144,128]{1,0:T(1,128)}', space=vmem, size = 0x12000, scoped, tag = 'internal scratch']
  %s0 = inlined_call_operand.vmem [shape: bf16[512,192], index: 0, kind: input, shape index: {}]
  %s1 = inlined_call_operand.vmem [shape: bf16[192,192], index: 1, kind: input, shape index: {}]
  %s2 = inlined_call_operand.vmem [shape: f32[1,192], index: 2, kind: input, shape index: {}]
  %s3 = inlined_call_operand.vmem [shape: bf16[128,128], index: 3, kind: input, shape index: {}]
  %s4 = inlined_call_operand.vmem [shape: f32[1,128], index: 4, kind: input, shape index: {}]
  %s5 = inlined_call_operand.vmem [shape: bf16[512,192], index: 5, kind: output, shape index: {0}]
  %s6 = inlined_call_operand.vmem [shape: bf16[512,128], index: 6, kind: output, shape index: {1}]
  %7 = xla_tuple %s5, %s6
  %s8 = sld [smem:[#allocation0]]
  $region61: #{upsample_unit_forward.2} parent=0
    _
  %s10 = ssub.s32 1, %s8
  %s11 = scalar_select 0, %s10, %s8
  loop: start=0, step=1, limit=4
  $region2: #{upsample_unit_forward.2} parent=0 // loop_pre_header
    _
  $region3: #{upsample_unit_forward.2} parent=0 // loop_header
    %s13 = sphi 0, %s17
    %p14 = scmp.ge.s32.totalorder %s13, 4
    %s23 = sphi 0, %s25
    %s26 = sphi 0, %s23
    %s27 = sphi 0, %s26
    %s43 = sphi 0, %s27
    %s47 = sphi 0, %s47
    %s49 = sphi 0, %s47
    %s50 = sphi 0, %s49
    %s64 = sphi 0, %s50
    %s68 = sphi 0, %s68
    %s70 = sphi 0, %s68
    %s71 = sphi 0, %s70
    %s85 = sphi 0, %s71
    %s89 = sphi 0, %s89
    %s91 = sphi 0, %s89
    %s92 = sphi 0, %s91
    %s106 = sphi 0, %s92
    %s110 = sphi 0, %s110
    %s112 = sphi 0, %s110
    %s113 = sphi 0, %s112
    %s127 = sphi 0, %s113
    %s133 = sphi 0, %s135
    %s136 = sphi 0, %s133
    %s137 = sphi 0, %s136
    %s153 = sphi 0, %s137
    %s159 = sphi 0, %s161
    %s162 = sphi 0, %s159
    %s163 = sphi 0, %s162
    %s179 = sphi 0, %s163
  $region4: #{upsample_unit_forward.2} parent=0 // loop_header_branch
    %16 = sbr.rel (%p14) target = $region8
  $region5: #{upsample_unit_forward.2} parent=0 // loop_body
    %s18 = ssub.s32 %s13, 1
    %s19 = ssub.s32 %s13, 2
    %s20 = sadd.s32 %s13, 1
    %s21 = ssub.s32 %s13, %s20
    %p22 = scmp.eq.s32.totalorder %s21, 0
    %s24 = sadd.s32 %s23, 1
    %s25 = scalar_select %p22, %s23, %s24
    %p28 = pneg %p22
    %p29 = scmp.eq.s32.totalorder %s13, 1
    %p30 = por %p28, %p29
    %p31 = scmp.ne.s32.totalorder %s23, %s26
    %p32 = scmp.eq.s32.totalorder %s13, 0
    %p33 = por %p31, %p32
    %p34 = scmp.ne.s32.totalorder %s23, %s26
    %p35 = scmp.eq.s32.totalorder %s18, 1
    %p36 = por %p34, %p35
    %p37 = scmp.ne.s32.totalorder %s26, %s27
    %p38 = scmp.eq.s32.totalorder %s18, 0
    %p39 = por %p37, %p38
    %p40 = scmp.ne.s32.totalorder %s26, %s27
    %p41 = scmp.eq.s32.totalorder %s19, 1
    %p42 = por %p40, %p41
    %p44 = scmp.ne.s32.totalorder %s27, %s43
    %p45 = scmp.eq.s32.totalorder %s19, 0
    %p46 = por %p44, %p45
    %s48 = sadd.s32 %s47, 1
    %p51 = scmp.eq.s32.totalorder %s13, 1
    %p52 = scmp.ne.s32.totalorder %s47, %s49
    %p53 = scmp.eq.s32.totalorder %s13, 0
    %p54 = por %p52, %p53
    %p55 = scmp.ne.s32.totalorder %s47, %s49
    %p56 = scmp.eq.s32.totalorder %s18, 1
    %p57 = por %p55, %p56
    %p58 = scmp.ne.s32.totalorder %s49, %s50
    %p59 = scmp.eq.s32.totalorder %s18, 0
    %p60 = por %p58, %p59
    %p61 = scmp.ne.s32.totalorder %s49, %s50
    %p62 = scmp.eq.s32.totalorder %s19, 1
    %p63 = por %p61, %p62
    %p65 = scmp.ne.s32.totalorder %s50, %s64
    %p66 = scmp.eq.s32.totalorder %s19, 0
    %p67 = por %p65, %p66
    %s69 = sadd.s32 %s68, 1
    %p72 = scmp.eq.s32.totalorder %s13, 1
    %p73 = scmp.ne.s32.totalorder %s68, %s70
    %p74 = scmp.eq.s32.totalorder %s13, 0
    %p75 = por %p73, %p74
    %p76 = scmp.ne.s32.totalorder %s68, %s70
    %p77 = scmp.eq.s32.totalorder %s18, 1
    %p78 = por %p76, %p77
    %p79 = scmp.ne.s32.totalorder %s70, %s71
    %p80 = scmp.eq.s32.totalorder %s18, 0
    %p81 = por %p79, %p80
    %p82 = scmp.ne.s32.totalorder %s70, %s71
    %p83 = scmp.eq.s32.totalorder %s19, 1
    %p84 = por %p82, %p83
    %p86 = scmp.ne.s32.totalorder %s71, %s85
    %p87 = scmp.eq.s32.totalorder %s19, 0
    %p88 = por %p86, %p87
    %s90 = sadd.s32 %s89, 1
    %p93 = scmp.eq.s32.totalorder %s13, 1
    %p94 = scmp.ne.s32.totalorder %s89, %s91
    %p95 = scmp.eq.s32.totalorder %s13, 0
    %p96 = por %p94, %p95
    %p97 = scmp.ne.s32.totalorder %s89, %s91
    %p98 = scmp.eq.s32.totalorder %s18, 1
    %p99 = por %p97, %p98
    %p100 = scmp.ne.s32.totalorder %s91, %s92
    %p101 = scmp.eq.s32.totalorder %s18, 0
    %p102 = por %p100, %p101
    %p103 = scmp.ne.s32.totalorder %s91, %s92
    %p104 = scmp.eq.s32.totalorder %s19, 1
    %p105 = por %p103, %p104
    %p107 = scmp.ne.s32.totalorder %s92, %s106
    %p108 = scmp.eq.s32.totalorder %s19, 0
    %p109 = por %p107, %p108
    %s111 = sadd.s32 %s110, 1
    %p114 = scmp.eq.s32.totalorder %s13, 1
    %p115 = scmp.ne.s32.totalorder %s110, %s112
    %p116 = scmp.eq.s32.totalorder %s13, 0
    %p117 = por %p115, %p116
    %p118 = scmp.ne.s32.totalorder %s110, %s112
    %p119 = scmp.eq.s32.totalorder %s18, 1
    %p120 = por %p118, %p119
    %p121 = scmp.ne.s32.totalorder %s112, %s113
    %p122 = scmp.eq.s32.totalorder %s18, 0
    %p123 = por %p121, %p122
    %p124 = scmp.ne.s32.totalorder %s112, %s113
    %p125 = scmp.eq.s32.totalorder %s19, 1
    %p126 = por %p124, %p125
    %p128 = scmp.ne.s32.totalorder %s113, %s127
    %p129 = scmp.eq.s32.totalorder %s19, 0
    %p130 = por %p128, %p129
    %s131 = ssub.s32 %s13, %s20
    %p132 = scmp.eq.s32.totalorder %s131, 0
    %s134 = sadd.s32 %s133, 1
    %s135 = scalar_select %p132, %s133, %s134
    %p138 = pneg %p132
    %p139 = scmp.eq.s32.totalorder %s13, 1
    %p140 = por %p138, %p139
    %p141 = scmp.ne.s32.totalorder %s133, %s136
    %p142 = scmp.eq.s32.totalorder %s13, 0
    %p143 = por %p141, %p142
    %p144 = scmp.ne.s32.totalorder %s133, %s136
    %p145 = scmp.eq.s32.totalorder %s18, 1
    %p146 = por %p144, %p145
    %p147 = scmp.ne.s32.totalorder %s136, %s137
    %p148 = scmp.eq.s32.totalorder %s18, 0
    %p149 = por %p147, %p148
    %p150 = scmp.ne.s32.totalorder %s136, %s137
    %p151 = scmp.eq.s32.totalorder %s19, 1
    %p152 = por %p150, %p151
    %p154 = scmp.ne.s32.totalorder %s137, %s153
    %p155 = scmp.eq.s32.totalorder %s19, 0
    %p156 = por %p154, %p155
    %s157 = ssub.s32 %s13, %s20
    %p158 = scmp.eq.s32.totalorder %s157, 0
    %s160 = sadd.s32 %s159, 1
    %s161 = scalar_select %p158, %s159, %s160
    %p164 = pneg %p158
    %p165 = scmp.eq.s32.totalorder %s13, 1
    %p166 = por %p164, %p165
    %p167 = scmp.ne.s32.totalorder %s159, %s162
    %p168 = scmp.eq.s32.totalorder %s13, 0
    %p169 = por %p167, %p168
    %p170 = scmp.ne.s32.totalorder %s159, %s162
    %p171 = scmp.eq.s32.totalorder %s18, 1
    %p172 = por %p170, %p171
    %p173 = scmp.ne.s32.totalorder %s162, %s163
    %p174 = scmp.eq.s32.totalorder %s18, 0
    %p175 = por %p173, %p174
    %p176 = scmp.ne.s32.totalorder %s162, %s163
    %p177 = scmp.eq.s32.totalorder %s19, 1
    %p178 = por %p176, %p177
    %p180 = scmp.ne.s32.totalorder %s163, %s179
    %p181 = scmp.eq.s32.totalorder %s19, 0
    %p182 = por %p180, %p181
    %p183 = scmp.le.s32.totalorder 1, %s13
    %p184 = scmp.lt.s32.totalorder %s13, 3
    %p185 = pnand %p183, %p184
    %p186 = pneg %p185
    // Predicated region
    $region9: #{upsample_unit_forward.2} parent=5 // pred_check
      _
    $region10: #{upsample_unit_forward.2} parent=5 // pred_check_branch
      %188 = sbr.rel (%p185) target = $region12
    $region11: #{upsample_unit_forward.2} parent=5 // pred_region
      %s189 = ssub.s32 %s13, 1
      // Predicated region
      $region13: #{upsample_unit_forward.2} parent=11 // pred_check
        %p190 = pneg %p60
      $region14: #{upsample_unit_forward.2} parent=11 // pred_check_branch
        %192 = sbr.rel (%p190) target = $region16
      $region15: #{upsample_unit_forward.2} parent=11 // pred_region
        _
      $region16: #{upsample_unit_forward.2} parent=11 // pred_fallthru
        _
      // Predicated region
      $region17: #{upsample_unit_forward.2} parent=11 // pred_check
        %p193 = pneg %p81
      $region18: #{upsample_unit_forward.2} parent=11 // pred_check_branch
        %195 = sbr.rel (%p193) target = $region20
      $region19: #{upsample_unit_forward.2} parent=11 // pred_region
        _
      $region20: #{upsample_unit_forward.2} parent=11 // pred_fallthru
        _
      // Predicated region
      $region21: #{upsample_unit_forward.2} parent=11 // pred_check
        %p196 = pneg %p102
      $region22: #{upsample_unit_forward.2} parent=11 // pred_check_branch
        %198 = sbr.rel (%p196) target = $region24
      $region23: #{upsample_unit_forward.2} parent=11 // pred_region
        _
      $region24: #{upsample_unit_forward.2} parent=11 // pred_fallthru
        _
      // Predicated region
      $region25: #{upsample_unit_forward.2} parent=11 // pred_check
        %p199 = pneg %p123
      $region26: #{upsample_unit_forward.2} parent=11 // pred_check_branch
        %201 = sbr.rel (%p199) target = $region28
      $region27: #{upsample_unit_forward.2} parent=11 // pred_region
        _
      $region28: #{upsample_unit_forward.2} parent=11 // pred_fallthru
        _
    $region12: #{upsample_unit_forward.2} parent=5 // pred_fallthru
      _
    %p202 = scmp.lt.s32.totalorder %s13, 2
    // Predicated region
    $region29: #{upsample_unit_forward.2} parent=5 // pred_check
      %p203 = pneg %p202
    $region30: #{upsample_unit_forward.2} parent=5 // pred_check_branch
      %205 = sbr.rel (%p203) target = $region32
    $region31: #{upsample_unit_forward.2} parent=5 // pred_region
      // Predicated region
      $region33: #{upsample_unit_forward.2} parent=31 // pred_check
        %p206 = pneg %p33
      $region34: #{upsample_unit_forward.2} parent=31 // pred_check_branch
        %208 = sbr.rel (%p206) target = $region36
      $region35: #{upsample_unit_forward.2} parent=31 // pred_region
        %s209 = smul.u32 32, %s13
        %p210 = scmp.lt.s32.totalorder %s209, 63
        %s211 = scalar_select %p210, %s209, 63
        %s212 = smul.addr %s211, 2
        %s213 = smul.addr %s212, 4
        %s214 = scalar_lea.vmem %s0, %s213
        %s215 = smul.u32 32, %s13
      $region36: #{upsample_unit_forward.2} parent=31 // pred_fallthru
        _
    $region32: #{upsample_unit_forward.2} parent=5 // pred_fallthru
      _
    %p216 = scmp.le.s32.totalorder 1, %s13
    %p217 = scmp.lt.s32.totalorder %s13, 3
    %p218 = pnand %p216, %p217
    %p219 = pneg %p218
    // Predicated region
    $region37: #{upsample_unit_forward.2} parent=5 // pred_check
      _
    $region38: #{upsample_unit_forward.2} parent=5 // pred_check_branch
      %221 = sbr.rel (%p218) target = $region40
    $region39: #{upsample_unit_forward.2} parent=5 // pred_region
      %s222 = ssub.s32 %s13, 1
      %s223 = smul.u32 32, %s18
      %p224 = scmp.lt.s32.totalorder %s223, 63
      %s225 = scalar_select %p224, %s223, 63
      %s226 = smul.addr %s225, 2
      %s227 = smul.addr %s226, 4
      %s228 = scalar_lea.vmem %s0, %s227
      %p229 = pneg %p39
      %p230 = pneg %p36
      %p231 = pneg %p60
      %p232 = pneg %p57
      %p233 = pneg %p81
      %p234 = pneg %p78
      %p235 = pneg %p102
      %p236 = pneg %p99
      %p237 = pneg %p123
      %p238 = pneg %p120
      %p239 = pneg %p149
      %p240 = pneg %p146
      %s241 = smul.u32 32, %s18
      %p242 = scmp.lt.s32.totalorder %s241, 63
      %s243 = scalar_select %p242, %s241, 63
      %s244 = smul.addr %s243, 2
      %s245 = smul.addr %s244, 4
      %s246 = scalar_lea.vmem %s5, %s245
      %p247 = pneg %p175
      %p248 = pneg %p172
      %s249 = smul.u32 32, %s18
      %p250 = scmp.lt.s32.totalorder %s249, 63
      %s251 = scalar_select %p250, %s249, 63
      %s252 = smul.addr %s251, 4
      %s253 = scalar_lea.vmem %s6, %s252
      %s254 = smul.u32 32, %s18
      %p255 = scmp.lt.s32.totalorder %s254, 63
      %s256 = scalar_select %p255, %s254, 63
      %s257 = smul.addr %s256, 2
      %s258 = smul.addr %s257, 4
      %s259 = scalar_lea.vmem %s0, %s258
      %s260 = smul.u32 32, %s18
      %s261 = smul.u32 32, %s18
      %p262 = scmp.lt.s32.totalorder %s261, 63
      %s263 = scalar_select %p262, %s261, 63
      %s264 = smul.addr %s263, 2
      %s265 = smul.addr %s264, 4
      %s266 = scalar_lea.vmem %s5, %s265
      %s267 = smul.u32 32, %s18
      %s268 = smul.u32 32, %s18
      %p269 = scmp.lt.s32.totalorder %s268, 63
      %s270 = scalar_select %p269, %s268, 63
      %s271 = smul.addr %s270, 4
      %s272 = scalar_lea.vmem %s6, %s271
      %s273 = smul.u32 32, %s18
      %v275 = vld [vmem:[%s259] sm:$0xff]
      %v276 = vld [vmem:[%s259 + $0x8] sm:$0xff]
      %v277 = vld [vmem:[%s259 + $0x10] sm:$0xff]
      %v278 = vld [vmem:[%s259 + $0x18] sm:$0xff]
      %v279 = vld [vmem:[%s259 + $0x20] sm:$0xff]
      %v280 = vld [vmem:[%s259 + $0x28] sm:$0xff]
      %v281 = vld [vmem:[%s259 + $0x30] sm:$0xff]
      %v282 = vld [vmem:[%s259 + $0x38] sm:$0xff]
      %v283 = vld [vmem:[%s259 + $0x40] sm:$0xff]
      %v284 = vld [vmem:[%s259 + $0x48] sm:$0xff]
      %v285 = vld [vmem:[%s259 + $0x50] sm:$0xff]
      %v286 = vld [vmem:[%s259 + $0x58] sm:$0xff]
      %v287 = vld [vmem:[%s259 + $0x60] sm:$0xff]
      %v288 = vld [vmem:[%s259 + $0x68] sm:$0xff]
      %v289 = vld [vmem:[%s259 + $0x70] sm:$0xff]
      %v290 = vld [vmem:[%s259 + $0x78] sm:$0xff]
      %v291 = vld [vmem:[%s259 + $0x80] sm:$0xff]
      %v292 = vld [vmem:[%s259 + $0x88] sm:$0xff]
      %v293 = vld [vmem:[%s259 + $0x90] sm:$0xff]
      %v294 = vld [vmem:[%s259 + $0x98] sm:$0xff]
      %v295 = vld [vmem:[%s259 + $0xa0] sm:$0xff]
      %v296 = vld [vmem:[%s259 + $0xa8] sm:$0xff]
      %v297 = vld [vmem:[%s259 + $0xb0] sm:$0xff]
      %v298 = vld [vmem:[%s259 + $0xb8] sm:$0xff]
      %v299 = vld [vmem:[%s259 + $0xc0] sm:$0xff]
      %v300 = vld [vmem:[%s259 + $0xc8] sm:$0xff]
      %v301 = vld [vmem:[%s259 + $0xd0] sm:$0xff]
      %v302 = vld [vmem:[%s259 + $0xd8] sm:$0xff]
      %v303 = vld [vmem:[%s259 + $0xe0] sm:$0xff]
      %v304 = vld [vmem:[%s259 + $0xe8] sm:$0xff]
      %v305 = vld [vmem:[%s259 + $0xf0] sm:$0xff]
      %v306 = vld [vmem:[%s259 + $0xf8] sm:$0xff]
      %v307 = vld [vmem:[%s1] sm:$0xff]
      %v308 = vld [vmem:[%s1 + $0x8] sm:$0xff]
      %v309 = vld [vmem:[%s1 + $0x10] sm:$0xff]
      %v310 = vld [vmem:[%s1 + $0x18] sm:$0xff]
      %v311 = vld [vmem:[%s1 + $0x20] sm:$0xff]
      %v312 = vld [vmem:[%s1 + $0x28] sm:$0xff]
      %v313 = vld [vmem:[%s1 + $0x30] sm:$0xff]
      %v314 = vld [vmem:[%s1 + $0x38] sm:$0xff]
      %v315 = vld [vmem:[%s1 + $0x40] sm:$0xff]
      %v316 = vld [vmem:[%s1 + $0x48] sm:$0xff]
      %v317 = vld [vmem:[%s1 + $0x50] sm:$0xff]
      %v318 = vld [vmem:[%s1 + $0x58] sm:$0xff]
      %v319 = vld [vmem:[%s1 + $0x60] sm:$0xff]
      %v320 = vld [vmem:[%s1 + $0x68] sm:$0xff]
      %v321 = vld [vmem:[%s1 + $0x70] sm:$0xff]
      %v322 = vld [vmem:[%s1 + $0x78] sm:$0xff]
      %v323 = vld [vmem:[%s1 + $0x80] sm:$0xff]
      %v324 = vld [vmem:[%s1 + $0x88] sm:$0xff]
      %v325 = vld [vmem:[%s1 + $0x90] sm:$0xff]
      %v326 = vld [vmem:[%s1 + $0x98] sm:$0xff]
      %v327 = vld [vmem:[%s1 + $0xa0] sm:$0xff]
      %v328 = vld [vmem:[%s1 + $0xa8] sm:$0xff]
      %v329 = vld [vmem:[%s1 + $0xb0] sm:$0xff]
      %v330 = vld [vmem:[%s1 + $0xb8] sm:$0xff]
      %v331 = vld [vmem:[%s2] sm:$0x3]
      %v333 = vlaneseq
      %v334 = vshrl.u32 %v333, 7
      %v335 = vsub.s32 0, %v334
      %v336 = vrot.slane %v331, %v335
      %v337 = vlaneseq
      %v338 = vshrl.u32 %v337, 7
      %v339 = vsub.s32 1, %v338
      %v340 = vrot.slane %v331, %v339
      %v375 = vunpack.c.l.b16 %v275
      %v376 = vunpack.c.h.b16 %v275
      %v377 = vunpack.c.l.b16 %v276
      %v378 = vunpack.c.h.b16 %v276
      %v379 = vunpack.c.l.b16 %v277
      %v380 = vunpack.c.h.b16 %v277
      %v381 = vunpack.c.l.b16 %v278
      %v382 = vunpack.c.h.b16 %v278
      %v383 = vunpack.c.l.b16 %v279
      %v384 = vunpack.c.h.b16 %v279
      %v385 = vunpack.c.l.b16 %v280
      %v386 = vunpack.c.h.b16 %v280
      %v387 = vunpack.c.l.b16 %v281
      %v388 = vunpack.c.h.b16 %v281
      %v389 = vunpack.c.l.b16 %v282
      %v390 = vunpack.c.h.b16 %v282
      %v391 = vunpack.c.l.b16 %v283
      %v392 = vunpack.c.h.b16 %v283
      %v393 = vunpack.c.l.b16 %v284
      %v394 = vunpack.c.h.b16 %v284
      %v395 = vunpack.c.l.b16 %v285
      %v396 = vunpack.c.h.b16 %v285
      %v397 = vunpack.c.l.b16 %v286
      %v398 = vunpack.c.h.b16 %v286
      %v399 = vunpack.c.l.b16 %v287
      %v400 = vunpack.c.h.b16 %v287
      %v401 = vunpack.c.l.b16 %v288
      %v402 = vunpack.c.h.b16 %v288
      %v403 = vunpack.c.l.b16 %v289
      %v404 = vunpack.c.h.b16 %v289
      %v405 = vunpack.c.l.b16 %v290
      %v406 = vunpack.c.h.b16 %v290
      %v407 = vunpack.c.l.b16 %v291
      %v408 = vunpack.c.h.b16 %v291
      %v409 = vunpack.c.l.b16 %v292
      %v410 = vunpack.c.h.b16 %v292
      %v411 = vunpack.c.l.b16 %v293
      %v412 = vunpack.c.h.b16 %v293
      %v413 = vunpack.c.l.b16 %v294
      %v414 = vunpack.c.h.b16 %v294
      %v415 = vunpack.c.l.b16 %v295
      %v416 = vunpack.c.h.b16 %v295
      %v417 = vunpack.c.l.b16 %v296
      %v418 = vunpack.c.h.b16 %v296
      %v419 = vunpack.c.l.b16 %v297
      %v420 = vunpack.c.h.b16 %v297
      %v421 = vunpack.c.l.b16 %v298
      %v422 = vunpack.c.h.b16 %v298
      %v423 = vunpack.c.l.b16 %v299
      %v424 = vunpack.c.h.b16 %v299
      %v425 = vunpack.c.l.b16 %v300
      %v426 = vunpack.c.h.b16 %v300
      %v427 = vunpack.c.l.b16 %v301
      %v428 = vunpack.c.h.b16 %v301
      %v429 = vunpack.c.l.b16 %v302
      %v430 = vunpack.c.h.b16 %v302
      %v431 = vunpack.c.l.b16 %v303
      %v432 = vunpack.c.h.b16 %v303
      %v433 = vunpack.c.l.b16 %v304
      %v434 = vunpack.c.h.b16 %v304
      %v435 = vunpack.c.l.b16 %v305
      %v436 = vunpack.c.h.b16 %v305
      %v437 = vunpack.c.l.b16 %v306
      %v438 = vunpack.c.h.b16 %v306
      %v439 = vpack.c.b16 %v377, %v375
      %v440 = vpack.c.b16 %v378, %v376
      %v441 = vpack.c.b16 %v381, %v379
      %v442 = vpack.c.b16 %v382, %v380
      %v443 = vpack.c.b16 %v385, %v383
      %v444 = vpack.c.b16 %v386, %v384
      %v445 = vpack.c.b16 %v389, %v387
      %v446 = vpack.c.b16 %v390, %v388
      %v447 = vpack.c.b16 %v393, %v391
      %v448 = vpack.c.b16 %v394, %v392
      %v449 = vpack.c.b16 %v397, %v395
      %v450 = vpack.c.b16 %v398, %v396
      %v451 = vpack.c.b16 %v401, %v399
      %v452 = vpack.c.b16 %v402, %v400
      %v453 = vpack.c.b16 %v405, %v403
      %v454 = vpack.c.b16 %v406, %v404
      %v455 = vpack.c.b16 %v409, %v407
      %v456 = vpack.c.b16 %v410, %v408
      %v457 = vpack.c.b16 %v413, %v411
      %v458 = vpack.c.b16 %v414, %v412
      %v459 = vpack.c.b16 %v417, %v415
      %v460 = vpack.c.b16 %v418, %v416
      %v461 = vpack.c.b16 %v421, %v419
      %v462 = vpack.c.b16 %v422, %v420
      %v463 = vpack.c.b16 %v425, %v423
      %v464 = vpack.c.b16 %v426, %v424
      %v465 = vpack.c.b16 %v429, %v427
      %v466 = vpack.c.b16 %v430, %v428
      %v467 = vpack.c.b16 %v433, %v431
      %v468 = vpack.c.b16 %v434, %v432
      %v469 = vpack.c.b16 %v437, %v435
      %v470 = vpack.c.b16 %v438, %v436
      %v511 = vunpack.c.l.b16 %v307
      %v512 = vunpack.c.h.b16 %v307
      %v513 = vunpack.c.l.b16 %v308
      %v514 = vunpack.c.h.b16 %v308
      %v515 = vunpack.c.l.b16 %v309
      %v516 = vunpack.c.h.b16 %v309
      %v517 = vunpack.c.l.b16 %v310
      %v518 = vunpack.c.h.b16 %v310
      %v519 = vunpack.c.l.b16 %v311
      %v520 = vunpack.c.h.b16 %v311
      %v521 = vunpack.c.l.b16 %v312
      %v522 = vunpack.c.h.b16 %v312
      %v523 = vunpack.c.l.b16 %v313
      %v524 = vunpack.c.h.b16 %v313
      %v525 = vunpack.c.l.b16 %v314
      %v526 = vunpack.c.h.b16 %v314
      %v527 = vunpack.c.l.b16 %v315
      %v528 = vunpack.c.h.b16 %v315
      %v529 = vunpack.c.l.b16 %v316
      %v530 = vunpack.c.h.b16 %v316
      %v531 = vunpack.c.l.b16 %v317
      %v532 = vunpack.c.h.b16 %v317
      %v533 = vunpack.c.l.b16 %v318
      %v534 = vunpack.c.h.b16 %v318
      %v535 = vunpack.c.l.b16 %v319
      %v536 = vunpack.c.h.b16 %v319
      %v537 = vunpack.c.l.b16 %v320
      %v538 = vunpack.c.h.b16 %v320
      %v539 = vunpack.c.l.b16 %v321
      %v540 = vunpack.c.h.b16 %v321
      %v541 = vunpack.c.l.b16 %v322
      %v542 = vunpack.c.h.b16 %v322
      %v543 = vunpack.c.l.b16 %v323
      %v544 = vunpack.c.h.b16 %v323
      %v545 = vunpack.c.l.b16 %v324
      %v546 = vunpack.c.h.b16 %v324
      %v547 = vunpack.c.l.b16 %v325
      %v548 = vunpack.c.h.b16 %v325
      %v549 = vunpack.c.l.b16 %v326
      %v550 = vunpack.c.h.b16 %v326
      %v551 = vunpack.c.l.b16 %v327
      %v552 = vunpack.c.h.b16 %v327
      %v553 = vunpack.c.l.b16 %v328
      %v554 = vunpack.c.h.b16 %v328
      %v555 = vunpack.c.l.b16 %v329
      %v556 = vunpack.c.h.b16 %v329
      %v557 = vunpack.c.l.b16 %v330
      %v558 = vunpack.c.h.b16 %v330
      %v559 = vpack.c.b16 %v513, %v511
      %v560 = vpack.c.b16 %v514, %v512
      %v561 = vpack.c.b16 %v517, %v515
      %v562 = vpack.c.b16 %v518, %v516
      %v563 = vpack.c.b16 %v521, %v519
      %v564 = vpack.c.b16 %v522, %v520
      %v565 = vpack.c.b16 %v525, %v523
      %v566 = vpack.c.b16 %v526, %v524
      %v567 = vpack.c.b16 %v529, %v527
      %v568 = vpack.c.b16 %v530, %v528
      %v569 = vpack.c.b16 %v533, %v531
      %v570 = vpack.c.b16 %v534, %v532
      %v571 = vpack.c.b16 %v537, %v535
      %v572 = vpack.c.b16 %v538, %v536
      %v573 = vpack.c.b16 %v541, %v539
      %v574 = vpack.c.b16 %v542, %v540
      %v575 = vpack.c.b16 %v545, %v543
      %v576 = vpack.c.b16 %v546, %v544
      %v577 = vpack.c.b16 %v549, %v547
      %v578 = vpack.c.b16 %v550, %v548
      %v579 = vpack.c.b16 %v553, %v551
      %v580 = vpack.c.b16 %v554, %v552
      %v581 = vpack.c.b16 %v557, %v555
      %v582 = vpack.c.b16 %v558, %v556
      %vm607 = vcmask 523264
      %v609 = vsel %vm607, %v440, 0
      %v612 = vsel %vm607, %v442, 0
      %v615 = vsel %vm607, %v444, 0
      %v618 = vsel %vm607, %v446, 0
      %v621 = vsel %vm607, %v448, 0
      %v624 = vsel %vm607, %v450, 0
      %v627 = vsel %vm607, %v452, 0
      %v630 = vsel %vm607, %v454, 0
      %v633 = vsel %vm607, %v456, 0
      %v636 = vsel %vm607, %v458, 0
      %v639 = vsel %vm607, %v460, 0
      %v642 = vsel %vm607, %v462, 0
      %v645 = vsel %vm607, %v464, 0
      %v648 = vsel %vm607, %v466, 0
      %v651 = vsel %vm607, %v468, 0
      %v654 = vsel %vm607, %v470, 0
      %656 = vmatprep.subr.bf16.mxu0 %v560
      %657 = vmatpush1.bf16.msra.mxu0 %v559
      %658 = vmatprep.subr.bf16.mxu0 %v562
      %659 = vmatpush1.bf16.msra.mxu0 %v561
      %660 = vmatprep.subr.bf16.mxu0 %v564
      %661 = vmatpush1.bf16.msra.mxu0 %v563
      %662 = vmatprep.subr.bf16.mxu0 %v566
      %663 = vmatpush1.bf16.msra.mxu0 %v565
      %664 = vmatprep.subr.bf16.mxu0 %v568
      %665 = vmatpush1.bf16.msra.mxu0 %v567
      %666 = vmatprep.subr.bf16.mxu0 %v570
      %667 = vmatpush1.bf16.msra.mxu0 %v569
      %668 = vmatprep.subr.bf16.mxu0 %v572
      %669 = vmatpush1.bf16.msra.mxu0 %v571
      %670 = vmatprep.subr.bf16.mxu0 %v574
      %671 = vmatpush1.bf16.msra.mxu0 %v573
      %672 = vmatprep.subr.bf16.mxu0 %v576
      %673 = vmatpush1.bf16.msra.mxu0 %v575
      %674 = vmatprep.subr.bf16.mxu0 %v578
      %675 = vmatpush1.bf16.msra.mxu0 %v577
      %676 = vmatprep.subr.bf16.mxu0 %v580
      %677 = vmatpush1.bf16.msra.mxu0 %v579
      %678 = vmatprep.subr.bf16.mxu0 %v582
      %679 = vmatpush1.bf16.msra.mxu0 %v581
      %680 = vmatprep.subr.bf16.mxu0 0
      %681 = vmatpush1.bf16.msra.mxu0 0
      %682 = vmatprep.subr.bf16.mxu0 0
      %683 = vmatpush1.bf16.msra.mxu0 0
      %684 = vmatprep.subr.bf16.mxu0 0
      %685 = vmatpush1.bf16.msra.mxu0 0
      %686 = vmatprep.subr.bf16.mxu0 0
      %687 = vmatpush1.bf16.msra.mxu0 0
      %688 = vmatprep.mubr.bf16.mxu0 %v609
      %689 = vmatmul.mubr.bf16.gmra.mrb[0].mxu0 %v439
      %v690 = vpop.f32.mrb[0].mxu0
      %v691 = vadd.f32 %v336, %v690
      %v692 = vpop.f32.mrb[0].mxu0
      %v693 = vadd.f32 %v340, %v692
      %v694 = vpop.f32.mrb[0].mxu0
      %v695 = vadd.f32 %v336, %v694
      %v696 = vpop.f32.mrb[0].mxu0
      %v697 = vadd.f32 %v340, %v696
      %698 = vmatprep.mubr.bf16.mxu0 %v612
      %699 = vmatmul.mubr.bf16.gmra.mrb[0].mxu0 %v441
      %v700 = vpop.f32.mrb[0].mxu0
      %v701 = vadd.f32 %v336, %v700
      %v702 = vpop.f32.mrb[0].mxu0
      %v703 = vadd.f32 %v340, %v702
      %v704 = vpop.f32.mrb[0].mxu0
      %v705 = vadd.f32 %v336, %v704
      %v706 = vpop.f32.mrb[0].mxu0
      %v707 = vadd.f32 %v340, %v706
      %708 = vmatprep.mubr.bf16.mxu0 %v615
      %709 = vmatmul.mubr.bf16.gmra.mrb[0].mxu0 %v443
      %v710 = vpop.f32.mrb[0].mxu0
      %v711 = vadd.f32 %v336, %v710
      %v712 = vpop.f32.mrb[0].mxu0
      %v713 = vadd.f32 %v340, %v712
      %v714 = vpop.f32.mrb[0].mxu0
      %v715 = vadd.f32 %v336, %v714
      %v716 = vpop.f32.mrb[0].mxu0
      %v717 = vadd.f32 %v340, %v716
      %718 = vmatprep.mubr.bf16.mxu0 %v618
      %719 = vmatmul.mubr.bf16.gmra.mrb[0].mxu0 %v445
      %v720 = vpop.f32.mrb[0].mxu0
      %v721 = vadd.f32 %v336, %v720
      %v722 = vpop.f32.mrb[0].mxu0
      %v723 = vadd.f32 %v340, %v722
      %v724 = vpop.f32.mrb[0].mxu0
      %v725 = vadd.f32 %v336, %v724
      %v726 = vpop.f32.mrb[0].mxu0
      %v727 = vadd.f32 %v340, %v726
      %728 = vmatprep.mubr.bf16.mxu0 %v621
      %729 = vmatmul.mubr.bf16.gmra.mrb[0].mxu0 %v447
      %v730 = vpop.f32.mrb[0].mxu0
      %v731 = vadd.f32 %v336, %v730
      %v732 = vpop.f32.mrb[0].mxu0
      %v733 = vadd.f32 %v340, %v732
      %v734 = vpop.f32.mrb[0].mxu0
      %v735 = vadd.f32 %v336, %v734
      %v736 = vpop.f32.mrb[0].mxu0
      %v737 = vadd.f32 %v340, %v736
      %738 = vmatprep.mubr.bf16.mxu0 %v624
      %739 = vmatmul.mubr.bf16.gmra.mrb[0].mxu0 %v449
      %v740 = vpop.f32.mrb[0].mxu0
      %v741 = vadd.f32 %v336, %v740
      %v742 = vpop.f32.mrb[0].mxu0
      %v743 = vadd.f32 %v340, %v742
      %v744 = vpop.f32.mrb[0].mxu0
      %v745 = vadd.f32 %v336, %v744
      %v746 = vpop.f32.mrb[0].mxu0
      %v747 = vadd.f32 %v340, %v746
      %748 = vmatprep.mubr.bf16.mxu0 %v627
      %749 = vmatmul.mubr.bf16.gmra.mrb[0].mxu0 %v451
      %v750 = vpop.f32.mrb[0].mxu0
      %v751 = vadd.f32 %v336, %v750
      %v752 = vpop.f32.mrb[0].mxu0
      %v753 = vadd.f32 %v340, %v752
      %v754 = vpop.f32.mrb[0].mxu0
      %v755 = vadd.f32 %v336, %v754
      %v756 = vpop.f32.mrb[0].mxu0
      %v757 = vadd.f32 %v340, %v756
      %758 = vmatprep.mubr.bf16.mxu0 %v630
      %759 = vmatmul.mubr.bf16.gmra.mrb[0].mxu0 %v453
      %v760 = vpop.f32.mrb[0].mxu0
      %v761 = vadd.f32 %v336, %v760
      %v762 = vpop.f32.mrb[0].mxu0
      %v763 = vadd.f32 %v340, %v762
      %v764 = vpop.f32.mrb[0].mxu0
      %v765 = vadd.f32 %v336, %v764
      %v766 = vpop.f32.mrb[0].mxu0
      %v767 = vadd.f32 %v340, %v766
      %768 = vmatprep.mubr.bf16.mxu0 %v633
      %769 = vmatmul.mubr.bf16.gmra.mrb[0].mxu0 %v455
      %v770 = vpop.f32.mrb[0].mxu0
      %v771 = vadd.f32 %v336, %v770
      %v772 = vpop.f32.mrb[0].mxu0
      %v773 = vadd.f32 %v340, %v772
      %v774 = vpop.f32.mrb[0].mxu0
      %v775 = vadd.f32 %v336, %v774
      %v776 = vpop.f32.mrb[0].mxu0
      %v777 = vadd.f32 %v340, %v776
      %778 = vmatprep.mubr.bf16.mxu0 %v636
      %779 = vmatmul.mubr.bf16.gmra.mrb[0].mxu0 %v457
      %v780 = vpop.f32.mrb[0].mxu0
      %v781 = vadd.f32 %v336, %v780
      %v782 = vpop.f32.mrb[0].mxu0
      %v783 = vadd.f32 %v340, %v782
      %v784 = vpop.f32.mrb[0].mxu0
      %v785 = vadd.f32 %v336, %v784
      %v786 = vpop.f32.mrb[0].mxu0
      %v787 = vadd.f32 %v340, %v786
      %788 = vmatprep.mubr.bf16.mxu0 %v639
      %789 = vmatmul.mubr.bf16.gmra.mrb[0].mxu0 %v459
      %v790 = vpop.f32.mrb[0].mxu0
      %v791 = vadd.f32 %v336, %v790
      %v792 = vpop.f32.mrb[0].mxu0
      %v793 = vadd.f32 %v340, %v792
      %v794 = vpop.f32.mrb[0].mxu0
      %v795 = vadd.f32 %v336, %v794
      %v796 = vpop.f32.mrb[0].mxu0
      %v797 = vadd.f32 %v340, %v796
      %798 = vmatprep.mubr.bf16.mxu0 %v642
      %799 = vmatmul.mubr.bf16.gmra.mrb[0].mxu0 %v461
      %v800 = vpop.f32.mrb[0].mxu0
      %v801 = vadd.f32 %v336, %v800
      %v802 = vpop.f32.mrb[0].mxu0
      %v803 = vadd.f32 %v340, %v802
      %v804 = vpop.f32.mrb[0].mxu0
      %v805 = vadd.f32 %v336, %v804
      %v806 = vpop.f32.mrb[0].mxu0
      %v807 = vadd.f32 %v340, %v806
      %808 = vmatprep.mubr.bf16.mxu0 %v645
      %809 = vmatmul.mubr.bf16.gmra.mrb[0].mxu0 %v463
      %v810 = vpop.f32.mrb[0].mxu0
      %v811 = vadd.f32 %v336, %v810
      %v812 = vpop.f32.mrb[0].mxu0
      %v813 = vadd.f32 %v340, %v812
      %v814 = vpop.f32.mrb[0].mxu0
      %v815 = vadd.f32 %v336, %v814
      %v816 = vpop.f32.mrb[0].mxu0
      %v817 = vadd.f32 %v340, %v816
      %818 = vmatprep.mubr.bf16.mxu0 %v648
      %819 = vmatmul.mubr.bf16.gmra.mrb[0].mxu0 %v465
      %v820 = vpop.f32.mrb[0].mxu0
      %v821 = vadd.f32 %v336, %v820
      %v822 = vpop.f32.mrb[0].mxu0
      %v823 = vadd.f32 %v340, %v822
      %v824 = vpop.f32.mrb[0].mxu0
      %v825 = vadd.f32 %v336, %v824
      %v826 = vpop.f32.mrb[0].mxu0
      %v827 = vadd.f32 %v340, %v826
      %828 = vmatprep.mubr.bf16.mxu0 %v651
      %829 = vmatmul.mubr.bf16.gmra.mrb[0].mxu0 %v467
      %v830 = vpop.f32.mrb[0].mxu0
      %v831 = vadd.f32 %v336, %v830
      %v832 = vpop.f32.mrb[0].mxu0
      %v833 = vadd.f32 %v340, %v832
      %v834 = vpop.f32.mrb[0].mxu0
      %v835 = vadd.f32 %v336, %v834
      %v836 = vpop.f32.mrb[0].mxu0
      %v837 = vadd.f32 %v340, %v836
      %838 = vmatprep.mubr.bf16.mxu0 %v654
      %839 = vmatmul.mubr.bf16.gmra.mrb[0].mxu0 %v469
      %v840 = vpop.f32.mrb[0].mxu0
      %v841 = vadd.f32 %v336, %v840
      %v842 = vpop.f32.mrb[0].mxu0
      %v843 = vadd.f32 %v340, %v842
      %v844 = vpop.f32.mrb[0].mxu0
      %v845 = vadd.f32 %v336, %v844
      %v846 = vpop.f32.mrb[0].mxu0
      %v847 = vadd.f32 %v340, %v846
      %848 = vdwg.mxu0
      %v849 = vmax.f32 %v691, 0.0
      %v850 = vmax.f32 %v693, 0.0
      %v851 = vmax.f32 %v695, 0.0
      %v852 = vmax.f32 %v697, 0.0
      %v853 = vmax.f32 %v701, 0.0
      %v854 = vmax.f32 %v703, 0.0
      %v855 = vmax.f32 %v705, 0.0
      %v856 = vmax.f32 %v707, 0.0
      %v857 = vmax.f32 %v711, 0.0
      %v858 = vmax.f32 %v713, 0.0
      %v859 = vmax.f32 %v715, 0.0
      %v860 = vmax.f32 %v717, 0.0
      %v861 = vmax.f32 %v721, 0.0
      %v862 = vmax.f32 %v723, 0.0
      %v863 = vmax.f32 %v725, 0.0
      %v864 = vmax.f32 %v727, 0.0
      %v865 = vmax.f32 %v731, 0.0
      %v866 = vmax.f32 %v733, 0.0
      %v867 = vmax.f32 %v735, 0.0
      %v868 = vmax.f32 %v737, 0.0
      %v869 = vmax.f32 %v741, 0.0
      %v870 = vmax.f32 %v743, 0.0
      %v871 = vmax.f32 %v745, 0.0
      %v872 = vmax.f32 %v747, 0.0
      %v873 = vmax.f32 %v751, 0.0
      %v874 = vmax.f32 %v753, 0.0
      %v875 = vmax.f32 %v755, 0.0
      %v876 = vmax.f32 %v757, 0.0
      %v877 = vmax.f32 %v761, 0.0
      %v878 = vmax.f32 %v763, 0.0
      %v879 = vmax.f32 %v765, 0.0
      %v880 = vmax.f32 %v767, 0.0
      %v881 = vmax.f32 %v771, 0.0
      %v882 = vmax.f32 %v773, 0.0
      %v883 = vmax.f32 %v775, 0.0
      %v884 = vmax.f32 %v777, 0.0
      %v885 = vmax.f32 %v781, 0.0
      %v886 = vmax.f32 %v783, 0.0
      %v887 = vmax.f32 %v785, 0.0
      %v888 = vmax.f32 %v787, 0.0
      %v889 = vmax.f32 %v791, 0.0
      %v890 = vmax.f32 %v793, 0.0
      %v891 = vmax.f32 %v795, 0.0
      %v892 = vmax.f32 %v797, 0.0
      %v893 = vmax.f32 %v801, 0.0
      %v894 = vmax.f32 %v803, 0.0
      %v895 = vmax.f32 %v805, 0.0
      %v896 = vmax.f32 %v807, 0.0
      %v897 = vmax.f32 %v811, 0.0
      %v898 = vmax.f32 %v813, 0.0
      %v899 = vmax.f32 %v815, 0.0
      %v900 = vmax.f32 %v817, 0.0
      %v901 = vmax.f32 %v821, 0.0
      %v902 = vmax.f32 %v823, 0.0
      %v903 = vmax.f32 %v825, 0.0
      %v904 = vmax.f32 %v827, 0.0
      %v905 = vmax.f32 %v831, 0.0
      %v906 = vmax.f32 %v833, 0.0
      %v907 = vmax.f32 %v835, 0.0
      %v908 = vmax.f32 %v837, 0.0
      %v909 = vmax.f32 %v841, 0.0
      %v910 = vmax.f32 %v843, 0.0
      %v911 = vmax.f32 %v845, 0.0
      %v912 = vmax.f32 %v847, 0.0
      %v913 = vpack.c.bf16 %v851, %v849
      %v914 = vpack.c.bf16 %v852, %v850
      %v915 = vpack.c.bf16 %v855, %v853
      %v916 = vpack.c.bf16 %v856, %v854
      %v917 = vpack.c.bf16 %v859, %v857
      %v918 = vpack.c.bf16 %v860, %v858
      %v919 = vpack.c.bf16 %v863, %v861
      %v920 = vpack.c.bf16 %v864, %v862
      %v921 = vpack.c.bf16 %v867, %v865
      %v922 = vpack.c.bf16 %v868, %v866
      %v923 = vpack.c.bf16 %v871, %v869
      %v924 = vpack.c.bf16 %v872, %v870
      %v925 = vpack.c.bf16 %v875, %v873
      %v926 = vpack.c.bf16 %v876, %v874
      %v927 = vpack.c.bf16 %v879, %v877
      %v928 = vpack.c.bf16 %v880, %v878
      %v929 = vpack.c.bf16 %v883, %v881
      %v930 = vpack.c.bf16 %v884, %v882
      %v931 = vpack.c.bf16 %v887, %v885
      %v932 = vpack.c.bf16 %v888, %v886
      %v933 = vpack.c.bf16 %v891, %v889
      %v934 = vpack.c.bf16 %v892, %v890
      %v935 = vpack.c.bf16 %v895, %v893
      %v936 = vpack.c.bf16 %v896, %v894
      %v937 = vpack.c.bf16 %v899, %v897
      %v938 = vpack.c.bf16 %v900, %v898
      %v939 = vpack.c.bf16 %v903, %v901
      %v940 = vpack.c.bf16 %v904, %v902
      %v941 = vpack.c.bf16 %v907, %v905
      %v942 = vpack.c.bf16 %v908, %v906
      %v943 = vpack.c.bf16 %v911, %v909
      %v944 = vpack.c.bf16 %v912, %v910
      %v977 = vunpack.c.l.b16 %v913
      %v978 = vunpack.c.l.b16 %v914
      %v979 = vunpack.c.h.b16 %v913
      %v980 = vunpack.c.h.b16 %v914
      %v981 = vunpack.c.l.b16 %v915
      %v982 = vunpack.c.l.b16 %v916
      %v983 = vunpack.c.h.b16 %v915
      %v984 = vunpack.c.h.b16 %v916
      %v985 = vunpack.c.l.b16 %v917
      %v986 = vunpack.c.l.b16 %v918
      %v987 = vunpack.c.h.b16 %v917
      %v988 = vunpack.c.h.b16 %v918
      %v989 = vunpack.c.l.b16 %v919
      %v990 = vunpack.c.l.b16 %v920
      %v991 = vunpack.c.h.b16 %v919
      %v992 = vunpack.c.h.b16 %v920
      %v993 = vunpack.c.l.b16 %v921
      %v994 = vunpack.c.l.b16 %v922
      %v995 = vunpack.c.h.b16 %v921
      %v996 = vunpack.c.h.b16 %v922
      %v997 = vunpack.c.l.b16 %v923
      %v998 = vunpack.c.l.b16 %v924
      %v999 = vunpack.c.h.b16 %v923
      %v1000 = vunpack.c.h.b16 %v924
      %v1001 = vunpack.c.l.b16 %v925
      %v1002 = vunpack.c.l.b16 %v926
      %v1003 = vunpack.c.h.b16 %v925
      %v1004 = vunpack.c.h.b16 %v926
      %v1005 = vunpack.c.l.b16 %v927
      %v1006 = vunpack.c.l.b16 %v928
      %v1007 = vunpack.c.h.b16 %v927
      %v1008 = vunpack.c.h.b16 %v928
      %v1009 = vunpack.c.l.b16 %v929
      %v1010 = vunpack.c.l.b16 %v930
      %v1011 = vunpack.c.h.b16 %v929
      %v1012 = vunpack.c.h.b16 %v930
      %v1013 = vunpack.c.l.b16 %v931
      %v1014 = vunpack.c.l.b16 %v932
      %v1015 = vunpack.c.h.b16 %v931
      %v1016 = vunpack.c.h.b16 %v932
      %v1017 = vunpack.c.l.b16 %v933
      %v1018 = vunpack.c.l.b16 %v934
      %v1019 = vunpack.c.h.b16 %v933
      %v1020 = vunpack.c.h.b16 %v934
      %v1021 = vunpack.c.l.b16 %v935
      %v1022 = vunpack.c.l.b16 %v936
      %v1023 = vunpack.c.h.b16 %v935
      %v1024 = vunpack.c.h.b16 %v936
      %v1025 = vunpack.c.l.b16 %v937
      %v1026 = vunpack.c.l.b16 %v938
      %v1027 = vunpack.c.h.b16 %v937
      %v1028 = vunpack.c.h.b16 %v938
      %v1029 = vunpack.c.l.b16 %v939
      %v1030 = vunpack.c.l.b16 %v940
      %v1031 = vunpack.c.h.b16 %v939
      %v1032 = vunpack.c.h.b16 %v940
      %v1033 = vunpack.c.l.b16 %v941
      %v1034 = vunpack.c.l.b16 %v942
      %v1035 = vunpack.c.h.b16 %v941
      %v1036 = vunpack.c.h.b16 %v942
      %v1037 = vunpack.c.l.b16 %v943
      %v1038 = vunpack.c.l.b16 %v944
      %v1039 = vunpack.c.h.b16 %v943
      %v1040 = vunpack.c.h.b16 %v944
      %v1041 = vpack.c.b16 %v978, %v977
      %v1042 = vpack.c.b16 %v980, %v979
      %v1043 = vpack.c.b16 %v982, %v981
      %v1044 = vpack.c.b16 %v984, %v983
      %v1045 = vpack.c.b16 %v986, %v985
      %v1046 = vpack.c.b16 %v988, %v987
      %v1047 = vpack.c.b16 %v990, %v989
      %v1048 = vpack.c.b16 %v992, %v991
      %v1049 = vpack.c.b16 %v994, %v993
      %v1050 = vpack.c.b16 %v996, %v995
      %v1051 = vpack.c.b16 %v998, %v997
      %v1052 = vpack.c.b16 %v1000, %v999
      %v1053 = vpack.c.b16 %v1002, %v1001
      %v1054 = vpack.c.b16 %v1004, %v1003
      %v1055 = vpack.c.b16 %v1006, %v1005
      %v1056 = vpack.c.b16 %v1008, %v1007
      %v1057 = vpack.c.b16 %v1010, %v1009
      %v1058 = vpack.c.b16 %v1012, %v1011
      %v1059 = vpack.c.b16 %v1014, %v1013
      %v1060 = vpack.c.b16 %v1016, %v1015
      %v1061 = vpack.c.b16 %v1018, %v1017
      %v1062 = vpack.c.b16 %v1020, %v1019
      %v1063 = vpack.c.b16 %v1022, %v1021
      %v1064 = vpack.c.b16 %v1024, %v1023
      %v1065 = vpack.c.b16 %v1026, %v1025
      %v1066 = vpack.c.b16 %v1028, %v1027
      %v1067 = vpack.c.b16 %v1030, %v1029
      %v1068 = vpack.c.b16 %v1032, %v1031
      %v1069 = vpack.c.b16 %v1034, %v1033
      %v1070 = vpack.c.b16 %v1036, %v1035
      %v1071 = vpack.c.b16 %v1038, %v1037
      %v1072 = vpack.c.b16 %v1040, %v1039
      %vm1105 = vcmask 1043456
      %vm1106 = vcmask 523268
      %vm1107 = vmor %vm1106, %vm1105
      %1108 = vst.msk [vmem:[%s266] sm:$0xff] %vm1107, %v1041
      %1109 = vst.msk [vmem:[%s266 + $0x8] sm:$0xff] %vm1107, %v1042
      %1110 = vst.msk [vmem:[%s266 + $0x10] sm:$0xff] %vm1107, %v1043
      %1111 = vst.msk [vmem:[%s266 + $0x18] sm:$0xff] %vm1107, %v1044
      %1112 = vst.msk [vmem:[%s266 + $0x20] sm:$0xff] %vm1107, %v1045
      %1113 = vst.msk [vmem:[%s266 + $0x28] sm:$0xff] %vm1107, %v1046
      %1114 = vst.msk [vmem:[%s266 + $0x30] sm:$0xff] %vm1107, %v1047
      %1115 = vst.msk [vmem:[%s266 + $0x38] sm:$0xff] %vm1107, %v1048
      %1116 = vst.msk [vmem:[%s266 + $0x40] sm:$0xff] %vm1107, %v1049
      %1117 = vst.msk [vmem:[%s266 + $0x48] sm:$0xff] %vm1107, %v1050
      %1118 = vst.msk [vmem:[%s266 + $0x50] sm:$0xff] %vm1107, %v1051
      %1119 = vst.msk [vmem:[%s266 + $0x58] sm:$0xff] %vm1107, %v1052
      %1120 = vst.msk [vmem:[%s266 + $0x60] sm:$0xff] %vm1107, %v1053
      %1121 = vst.msk [vmem:[%s266 + $0x68] sm:$0xff] %vm1107, %v1054
      %1122 = vst.msk [vmem:[%s266 + $0x70] sm:$0xff] %vm1107, %v1055
      %1123 = vst.msk [vmem:[%s266 + $0x78] sm:$0xff] %vm1107, %v1056
      %1124 = vst.msk [vmem:[%s266 + $0x80] sm:$0xff] %vm1107, %v1057
      %1125 = vst.msk [vmem:[%s266 + $0x88] sm:$0xff] %vm1107, %v1058
      %1126 = vst.msk [vmem:[%s266 + $0x90] sm:$0xff] %vm1107, %v1059
      %1127 = vst.msk [vmem:[%s266 + $0x98] sm:$0xff] %vm1107, %v1060
      %1128 = vst.msk [vmem:[%s266 + $0xa0] sm:$0xff] %vm1107, %v1061
      %1129 = vst.msk [vmem:[%s266 + $0xa8] sm:$0xff] %vm1107, %v1062
      %1130 = vst.msk [vmem:[%s266 + $0xb0] sm:$0xff] %vm1107, %v1063
      %1131 = vst.msk [vmem:[%s266 + $0xb8] sm:$0xff] %vm1107, %v1064
      %1132 = vst.msk [vmem:[%s266 + $0xc0] sm:$0xff] %vm1107, %v1065
      %1133 = vst.msk [vmem:[%s266 + $0xc8] sm:$0xff] %vm1107, %v1066
      %1134 = vst.msk [vmem:[%s266 + $0xd0] sm:$0xff] %vm1107, %v1067
      %1135 = vst.msk [vmem:[%s266 + $0xd8] sm:$0xff] %vm1107, %v1068
      %1136 = vst.msk [vmem:[%s266 + $0xe0] sm:$0xff] %vm1107, %v1069
      %1137 = vst.msk [vmem:[%s266 + $0xe8] sm:$0xff] %vm1107, %v1070
      %1138 = vst.msk [vmem:[%s266 + $0xf0] sm:$0xff] %vm1107, %v1071
      %1139 = vst.msk [vmem:[%s266 + $0xf8] sm:$0xff] %vm1107, %v1072
      %v1140 = vld [vmem:[%s3] sm:$0xf]
      %v1141 = vld [vmem:[%s3 + $0x4] sm:$0xf]
      %v1142 = vld [vmem:[%s3 + $0x8] sm:$0xf]
      %v1143 = vld [vmem:[%s3 + $0xc] sm:$0xf]
      %v1144 = vld [vmem:[%s3 + $0x10] sm:$0xf]
      %v1145 = vld [vmem:[%s3 + $0x14] sm:$0xf]
      %v1146 = vld [vmem:[%s3 + $0x18] sm:$0xf]
      %v1147 = vld [vmem:[%s3 + $0x1c] sm:$0xf]
      %v1148 = vld [vmem:[%s3 + $0x20] sm:$0xf]
      %v1149 = vld [vmem:[%s3 + $0x24] sm:$0xf]
      %v1150 = vld [vmem:[%s3 + $0x28] sm:$0xf]
      %v1151 = vld [vmem:[%s3 + $0x2c] sm:$0xf]
      %v1152 = vld [vmem:[%s3 + $0x30] sm:$0xf]
      %v1153 = vld [vmem:[%s3 + $0x34] sm:$0xf]
      %v1154 = vld [vmem:[%s3 + $0x38] sm:$0xf]
      %v1155 = vld [vmem:[%s3 + $0x3c] sm:$0xf]
      %v1156 = vld [vmem:[%s4] sm:$0x1]
      %v1158 = vlaneseq
      %v1159 = vshrl.u32 %v1158, 7
      %v1160 = vsub.s32 0, %v1159
      %v1161 = vrot.slane %v1156, %v1160
      %v1179 = vunpack.c.l.b16 %v1140
      %v1180 = vunpack.c.l.b16 %v1141
      %v1181 = vunpack.c.l.b16 %v1142
      %v1182 = vunpack.c.l.b16 %v1143
      %v1183 = vunpack.c.l.b16 %v1144
      %v1184 = vunpack.c.l.b16 %v1145
      %v1185 = vunpack.c.l.b16 %v1146
      %v1186 = vunpack.c.l.b16 %v1147
      %v1187 = vunpack.c.l.b16 %v1148
      %v1188 = vunpack.c.l.b16 %v1149
      %v1189 = vunpack.c.l.b16 %v1150
      %v1190 = vunpack.c.l.b16 %v1151
      %v1191 = vunpack.c.l.b16 %v1152
      %v1192 = vunpack.c.l.b16 %v1153
      %v1193 = vunpack.c.l.b16 %v1154
      %v1194 = vunpack.c.l.b16 %v1155
      %v1195 = vpack.c.b16 %v1180, %v1179
      %v1196 = vpack.c.b16 %v1182, %v1181
      %v1197 = vpack.c.b16 %v1184, %v1183
      %v1198 = vpack.c.b16 %v1186, %v1185
      %v1199 = vpack.c.b16 %v1188, %v1187
      %v1200 = vpack.c.b16 %v1190, %v1189
      %v1201 = vpack.c.b16 %v1192, %v1191
      %v1202 = vpack.c.b16 %v1194, %v1193
      %1211 = vmatprep.subr.bf16.mxu0 0
      %1212 = vmatpush1.bf16.msra.mxu0 %v1195
      %1213 = vmatprep.subr.bf16.mxu0 0
      %1214 = vmatpush1.bf16.msra.mxu0 %v1196
      %1215 = vmatprep.subr.bf16.mxu0 0
      %1216 = vmatpush1.bf16.msra.mxu0 %v1197
      %1217 = vmatprep.subr.bf16.mxu0 0
      %1218 = vmatpush1.bf16.msra.mxu0 %v1198
      %1219 = vmatprep.subr.bf16.mxu0 0
      %1220 = vmatpush1.bf16.msra.mxu0 %v1199
      %1221 = vmatprep.subr.bf16.mxu0 0
      %1222 = vmatpush1.bf16.msra.mxu0 %v1200
      %1223 = vmatprep.subr.bf16.mxu0 0
      %1224 = vmatpush1.bf16.msra.mxu0 %v1201
      %1225 = vmatprep.subr.bf16.mxu0 0
      %1226 = vmatpush1.bf16.msra.mxu0 %v1202
      %1227 = vmatprep.subr.bf16.mxu0 0
      %1228 = vmatpush1.bf16.msra.mxu0 0
      %1229 = vmatprep.subr.bf16.mxu0 0
      %1230 = vmatpush1.bf16.msra.mxu0 0
      %1231 = vmatprep.subr.bf16.mxu0 0
      %1232 = vmatpush1.bf16.msra.mxu0 0
      %1233 = vmatprep.subr.bf16.mxu0 0
      %1234 = vmatpush1.bf16.msra.mxu0 0
      %1235 = vmatprep.subr.bf16.mxu0 0
      %1236 = vmatpush1.bf16.msra.mxu0 0
      %1237 = vmatprep.subr.bf16.mxu0 0
      %1238 = vmatpush1.bf16.msra.mxu0 0
      %1239 = vmatprep.subr.bf16.mxu0 0
      %1240 = vmatpush1.bf16.msra.mxu0 0
      %1241 = vmatprep.subr.bf16.mxu0 0
      %1242 = vmatpush1.bf16.msra.mxu0 0
      %1243 = vmatprep.mubr.bf16.mxu0 0
      %1244 = vmatmul.mubr.bf16.gmra.mrb[0].mxu0 %v913
      %v1245 = vpop.f32.mrb[0].mxu0
      %v1246 = vadd.f32 %v1161, %v1245
      %v1247 = vpop.f32.mrb[0].mxu0
      %v1248 = vpop.f32.mrb[0].mxu0
      %v1249 = vadd.f32 %v1161, %v1248
      %v1250 = vpop.f32.mrb[0].mxu0
      %1251 = vmatprep.mubr.bf16.mxu0 0
      %1252 = vmatmul.mubr.bf16.gmra.mrb[0].mxu0 %v915
      %v1253 = vpop.f32.mrb[0].mxu0
      %v1254 = vadd.f32 %v1161, %v1253
      %v1255 = vpop.f32.mrb[0].mxu0
      %v1256 = vpop.f32.mrb[0].mxu0
      %v1257 = vadd.f32 %v1161, %v1256
      %v1258 = vpop.f32.mrb[0].mxu0
      %1259 = vmatprep.mubr.bf16.mxu0 0
      %1260 = vmatmul.mubr.bf16.gmra.mrb[0].mxu0 %v917
      %v1261 = vpop.f32.mrb[0].mxu0
      %v1262 = vadd.f32 %v1161, %v1261
      %v1263 = vpop.f32.mrb[0].mxu0
      %v1264 = vpop.f32.mrb[0].mxu0
      %v1265 = vadd.f32 %v1161, %v1264
      %v1266 = vpop.f32.mrb[0].mxu0
      %1267 = vmatprep.mubr.bf16.mxu0 0
      %1268 = vmatmul.mubr.bf16.gmra.mrb[0].mxu0 %v919
      %v1269 = vpop.f32.mrb[0].mxu0
      %v1270 = vadd.f32 %v1161, %v1269
      %v1271 = vpop.f32.mrb[0].mxu0
      %v1272 = vpop.f32.mrb[0].mxu0
      %v1273 = vadd.f32 %v1161, %v1272
      %v1274 = vpop.f32.mrb[0].mxu0
      %1275 = vmatprep.mubr.bf16.mxu0 0
      %1276 = vmatmul.mubr.bf16.gmra.mrb[0].mxu0 %v921
      %v1277 = vpop.f32.mrb[0].mxu0
      %v1278 = vadd.f32 %v1161, %v1277
      %v1279 = vpop.f32.mrb[0].mxu0
      %v1280 = vpop.f32.mrb[0].mxu0
      %v1281 = vadd.f32 %v1161, %v1280
      %v1282 = vpop.f32.mrb[0].mxu0
      %1283 = vmatprep.mubr.bf16.mxu0 0
      %1284 = vmatmul.mubr.bf16.gmra.mrb[0].mxu0 %v923
      %v1285 = vpop.f32.mrb[0].mxu0
      %v1286 = vadd.f32 %v1161, %v1285
      %v1287 = vpop.f32.mrb[0].mxu0
      %v1288 = vpop.f32.mrb[0].mxu0
      %v1289 = vadd.f32 %v1161, %v1288
      %v1290 = vpop.f32.mrb[0].mxu0
      %1291 = vmatprep.mubr.bf16.mxu0 0
      %1292 = vmatmul.mubr.bf16.gmra.mrb[0].mxu0 %v925
      %v1293 = vpop.f32.mrb[0].mxu0
      %v1294 = vadd.f32 %v1161, %v1293
      %v1295 = vpop.f32.mrb[0].mxu0
      %v1296 = vpop.f32.mrb[0].mxu0
      %v1297 = vadd.f32 %v1161, %v1296
      %v1298 = vpop.f32.mrb[0].mxu0
      %1299 = vmatprep.mubr.bf16.mxu0 0
      %1300 = vmatmul.mubr.bf16.gmra.mrb[0].mxu0 %v927
      %v1301 = vpop.f32.mrb[0].mxu0
      %v1302 = vadd.f32 %v1161, %v1301
      %v1303 = vpop.f32.mrb[0].mxu0
      %v1304 = vpop.f32.mrb[0].mxu0
      %v1305 = vadd.f32 %v1161, %v1304
      %v1306 = vpop.f32.mrb[0].mxu0
      %1307 = vmatprep.mubr.bf16.mxu0 0
      %1308 = vmatmul.mubr.bf16.gmra.mrb[0].mxu0 %v929
      %v1309 = vpop.f32.mrb[0].mxu0
      %v1310 = vadd.f32 %v1161, %v1309
      %v1311 = vpop.f32.mrb[0].mxu0
      %v1312 = vpop.f32.mrb[0].mxu0
      %v1313 = vadd.f32 %v1161, %v1312
      %v1314 = vpop.f32.mrb[0].mxu0
      %1315 = vmatprep.mubr.bf16.mxu0 0
      %1316 = vmatmul.mubr.bf16.gmra.mrb[0].mxu0 %v931
      %v1317 = vpop.f32.mrb[0].mxu0
      %v1318 = vadd.f32 %v1161, %v1317
      %v1319 = vpop.f32.mrb[0].mxu0
      %v1320 = vpop.f32.mrb[0].mxu0
      %v1321 = vadd.f32 %v1161, %v1320
      %v1322 = vpop.f32.mrb[0].mxu0
      %1323 = vmatprep.mubr.bf16.mxu0 0
      %1324 = vmatmul.mubr.bf16.gmra.mrb[0].mxu0 %v933
      %v1325 = vpop.f32.mrb[0].mxu0
      %v1326 = vadd.f32 %v1161, %v1325
      %v1327 = vpop.f32.mrb[0].mxu0
      %v1328 = vpop.f32.mrb[0].mxu0
      %v1329 = vadd.f32 %v1161, %v1328
      %v1330 = vpop.f32.mrb[0].mxu0
      %1331 = vmatprep.mubr.bf16.mxu0 0
      %1332 = vmatmul.mubr.bf16.gmra.mrb[0].mxu0 %v935
      %v1333 = vpop.f32.mrb[0].mxu0
      %v1334 = vadd.f32 %v1161, %v1333
      %v1335 = vpop.f32.mrb[0].mxu0
      %v1336 = vpop.f32.mrb[0].mxu0
      %v1337 = vadd.f32 %v1161, %v1336
      %v1338 = vpop.f32.mrb[0].mxu0
      %1339 = vmatprep.mubr.bf16.mxu0 0
      %1340 = vmatmul.mubr.bf16.gmra.mrb[0].mxu0 %v937
      %v1341 = vpop.f32.mrb[0].mxu0
      %v1342 = vadd.f32 %v1161, %v1341
      %v1343 = vpop.f32.mrb[0].mxu0
      %v1344 = vpop.f32.mrb[0].mxu0
      %v1345 = vadd.f32 %v1161, %v1344
      %v1346 = vpop.f32.mrb[0].mxu0
      %1347 = vmatprep.mubr.bf16.mxu0 0
      %1348 = vmatmul.mubr.bf16.gmra.mrb[0].mxu0 %v939
      %v1349 = vpop.f32.mrb[0].mxu0
      %v1350 = vadd.f32 %v1161, %v1349
      %v1351 = vpop.f32.mrb[0].mxu0
      %v1352 = vpop.f32.mrb[0].mxu0
      %v1353 = vadd.f32 %v1161, %v1352
      %v1354 = vpop.f32.mrb[0].mxu0
      %1355 = vmatprep.mubr.bf16.mxu0 0
      %1356 = vmatmul.mubr.bf16.gmra.mrb[0].mxu0 %v941
      %v1357 = vpop.f32.mrb[0].mxu0
      %v1358 = vadd.f32 %v1161, %v1357
      %v1359 = vpop.f32.mrb[0].mxu0
      %v1360 = vpop.f32.mrb[0].mxu0
      %v1361 = vadd.f32 %v1161, %v1360
      %v1362 = vpop.f32.mrb[0].mxu0
      %1363 = vmatprep.mubr.bf16.mxu0 0
      %1364 = vmatmul.mubr.bf16.gmra.mrb[0].mxu0 %v943
      %v1365 = vpop.f32.mrb[0].mxu0
      %v1366 = vadd.f32 %v1161, %v1365
      %v1367 = vpop.f32.mrb[0].mxu0
      %v1368 = vpop.f32.mrb[0].mxu0
      %v1369 = vadd.f32 %v1161, %v1368
      %v1370 = vpop.f32.mrb[0].mxu0
      %1371 = vdwg.mxu0
      %v1372 = vmax.f32 %v1246, 0.0
      %v1373 = vmax.f32 %v1249, 0.0
      %v1374 = vmax.f32 %v1254, 0.0
      %v1375 = vmax.f32 %v1257, 0.0
      %v1376 = vmax.f32 %v1262, 0.0
      %v1377 = vmax.f32 %v1265, 0.0
      %v1378 = vmax.f32 %v1270, 0.0
      %v1379 = vmax.f32 %v1273, 0.0
      %v1380 = vmax.f32 %v1278, 0.0
      %v1381 = vmax.f32 %v1281, 0.0
      %v1382 = vmax.f32 %v1286, 0.0
      %v1383 = vmax.f32 %v1289, 0.0
      %v1384 = vmax.f32 %v1294, 0.0
      %v1385 = vmax.f32 %v1297, 0.0
      %v1386 = vmax.f32 %v1302, 0.0
      %v1387 = vmax.f32 %v1305, 0.0
      %v1388 = vmax.f32 %v1310, 0.0
      %v1389 = vmax.f32 %v1313, 0.0
      %v1390 = vmax.f32 %v1318, 0.0
      %v1391 = vmax.f32 %v1321, 0.0
      %v1392 = vmax.f32 %v1326, 0.0
      %v1393 = vmax.f32 %v1329, 0.0
      %v1394 = vmax.f32 %v1334, 0.0
      %v1395 = vmax.f32 %v1337, 0.0
      %v1396 = vmax.f32 %v1342, 0.0
      %v1397 = vmax.f32 %v1345, 0.0
      %v1398 = vmax.f32 %v1350, 0.0
      %v1399 = vmax.f32 %v1353, 0.0
      %v1400 = vmax.f32 %v1358, 0.0
      %v1401 = vmax.f32 %v1361, 0.0
      %v1402 = vmax.f32 %v1366, 0.0
      %v1403 = vmax.f32 %v1369, 0.0
      %v1404 = vpack.c.bf16 %v1373, %v1372
      %v1405 = vpack.c.bf16 %v1375, %v1374
      %v1406 = vpack.c.bf16 %v1377, %v1376
      %v1407 = vpack.c.bf16 %v1379, %v1378
      %v1408 = vpack.c.bf16 %v1381, %v1380
      %v1409 = vpack.c.bf16 %v1383, %v1382
      %v1410 = vpack.c.bf16 %v1385, %v1384
      %v1411 = vpack.c.bf16 %v1387, %v1386
      %v1412 = vpack.c.bf16 %v1389, %v1388
      %v1413 = vpack.c.bf16 %v1391, %v1390
      %v1414 = vpack.c.bf16 %v1393, %v1392
      %v1415 = vpack.c.bf16 %v1395, %v1394
      %v1416 = vpack.c.bf16 %v1397, %v1396
      %v1417 = vpack.c.bf16 %v1399, %v1398
      %v1418 = vpack.c.bf16 %v1401, %v1400
      %v1419 = vpack.c.bf16 %v1403, %v1402
      %v1436 = vunpack.c.l.b16 %v1404
      %v1437 = vunpack.c.h.b16 %v1404
      %v1438 = vunpack.c.l.b16 %v1405
      %v1439 = vunpack.c.h.b16 %v1405
      %v1440 = vunpack.c.l.b16 %v1406
      %v1441 = vunpack.c.h.b16 %v1406
      %v1442 = vunpack.c.l.b16 %v1407
      %v1443 = vunpack.c.h.b16 %v1407
      %v1444 = vunpack.c.l.b16 %v1408
      %v1445 = vunpack.c.h.b16 %v1408
      %v1446 = vunpack.c.l.b16 %v1409
      %v1447 = vunpack.c.h.b16 %v1409
      %v1448 = vunpack.c.l.b16 %v1410
      %v1449 = vunpack.c.h.b16 %v1410
      %v1450 = vunpack.c.l.b16 %v1411
      %v1451 = vunpack.c.h.b16 %v1411
      %v1452 = vunpack.c.l.b16 %v1412
      %v1453 = vunpack.c.h.b16 %v1412
      %v1454 = vunpack.c.l.b16 %v1413
      %v1455 = vunpack.c.h.b16 %v1413
      %v1456 = vunpack.c.l.b16 %v1414
      %v1457 = vunpack.c.h.b16 %v1414
      %v1458 = vunpack.c.l.b16 %v1415
      %v1459 = vunpack.c.h.b16 %v1415
      %v1460 = vunpack.c.l.b16 %v1416
      %v1461 = vunpack.c.h.b16 %v1416
      %v1462 = vunpack.c.l.b16 %v1417
      %v1463 = vunpack.c.h.b16 %v1417
      %v1464 = vunpack.c.l.b16 %v1418
      %v1465 = vunpack.c.h.b16 %v1418
      %v1466 = vunpack.c.l.b16 %v1419
      %v1467 = vunpack.c.h.b16 %v1419
      %v1468 = vpack.c.b16 %v1436, %v1436
      %v1469 = vpack.c.b16 %v1437, %v1437
      %v1470 = vpack.c.b16 %v1438, %v1438
      %v1471 = vpack.c.b16 %v1439, %v1439
      %v1472 = vpack.c.b16 %v1440, %v1440
      %v1473 = vpack.c.b16 %v1441, %v1441
      %v1474 = vpack.c.b16 %v1442, %v1442
      %v1475 = vpack.c.b16 %v1443, %v1443
      %v1476 = vpack.c.b16 %v1444, %v1444
      %v1477 = vpack.c.b16 %v1445, %v1445
      %v1478 = vpack.c.b16 %v1446, %v1446
      %v1479 = vpack.c.b16 %v1447, %v1447
      %v1480 = vpack.c.b16 %v1448, %v1448
      %v1481 = vpack.c.b16 %v1449, %v1449
      %v1482 = vpack.c.b16 %v1450, %v1450
      %v1483 = vpack.c.b16 %v1451, %v1451
      %v1484 = vpack.c.b16 %v1452, %v1452
      %v1485 = vpack.c.b16 %v1453, %v1453
      %v1486 = vpack.c.b16 %v1454, %v1454
      %v1487 = vpack.c.b16 %v1455, %v1455
      %v1488 = vpack.c.b16 %v1456, %v1456
      %v1489 = vpack.c.b16 %v1457, %v1457
      %v1490 = vpack.c.b16 %v1458, %v1458
      %v1491 = vpack.c.b16 %v1459, %v1459
      %v1492 = vpack.c.b16 %v1460, %v1460
      %v1493 = vpack.c.b16 %v1461, %v1461
      %v1494 = vpack.c.b16 %v1462, %v1462
      %v1495 = vpack.c.b16 %v1463, %v1463
      %v1496 = vpack.c.b16 %v1464, %v1464
      %v1497 = vpack.c.b16 %v1465, %v1465
      %v1498 = vpack.c.b16 %v1466, %v1466
      %v1499 = vpack.c.b16 %v1467, %v1467
      %1532 = vst [vmem:[%s272] sm:$0xf] %v1468
      %1533 = vst [vmem:[%s272 + $0x4] sm:$0xf] %v1469
      %1534 = vst [vmem:[%s272 + $0x8] sm:$0xf] %v1470
      %1535 = vst [vmem:[%s272 + $0xc] sm:$0xf] %v1471
      %1536 = vst [vmem:[%s272 + $0x10] sm:$0xf] %v1472
      %1537 = vst [vmem:[%s272 + $0x14] sm:$0xf] %v1473
      %1538 = vst [vmem:[%s272 + $0x18] sm:$0xf] %v1474
      %1539 = vst [vmem:[%s272 + $0x1c] sm:$0xf] %v1475
      %1540 = vst [vmem:[%s272 + $0x20] sm:$0xf] %v1476
      %1541 = vst [vmem:[%s272 + $0x24] sm:$0xf] %v1477
      %1542 = vst [vmem:[%s272 + $0x28] sm:$0xf] %v1478
      %1543 = vst [vmem:[%s272 + $0x2c] sm:$0xf] %v1479
      %1544 = vst [vmem:[%s272 + $0x30] sm:$0xf] %v1480
      %1545 = vst [vmem:[%s272 + $0x34] sm:$0xf] %v1481
      %1546 = vst [vmem:[%s272 + $0x38] sm:$0xf] %v1482
      %1547 = vst [vmem:[%s272 + $0x3c] sm:$0xf] %v1483
      %1548 = vst [vmem:[%s272 + $0x40] sm:$0xf] %v1484
      %1549 = vst [vmem:[%s272 + $0x44] sm:$0xf] %v1485
      %1550 = vst [vmem:[%s272 + $0x48] sm:$0xf] %v1486
      %1551 = vst [vmem:[%s272 + $0x4c] sm:$0xf] %v1487
      %1552 = vst [vmem:[%s272 + $0x50] sm:$0xf] %v1488
      %1553 = vst [vmem:[%s272 + $0x54] sm:$0xf] %v1489
      %1554 = vst [vmem:[%s272 + $0x58] sm:$0xf] %v1490
      %1555 = vst [vmem:[%s272 + $0x5c] sm:$0xf] %v1491
      %1556 = vst [vmem:[%s272 + $0x60] sm:$0xf] %v1492
      %1557 = vst [vmem:[%s272 + $0x64] sm:$0xf] %v1493
      %1558 = vst [vmem:[%s272 + $0x68] sm:$0xf] %v1494
      %1559 = vst [vmem:[%s272 + $0x6c] sm:$0xf] %v1495
      %1560 = vst [vmem:[%s272 + $0x70] sm:$0xf] %v1496
      %1561 = vst [vmem:[%s272 + $0x74] sm:$0xf] %v1497
      %1562 = vst [vmem:[%s272 + $0x78] sm:$0xf] %v1498
      %1563 = vst [vmem:[%s272 + $0x7c] sm:$0xf] %v1499
      %s1564 = smul.u32 32, %s18
      %p1565 = scmp.lt.s32.totalorder %s1564, 63
      %s1566 = scalar_select %p1565, %s1564, 63
      %s1567 = smul.addr %s1566, 2
      %s1568 = smul.addr %s1567, 4
      %s1569 = scalar_lea.vmem %s5, %s1568
      %s1570 = smul.u32 32, %s18
      %p1571 = scmp.lt.s32.totalorder %s1570, 63
      %s1572 = scalar_select %p1571, %s1570, 63
      %s1573 = smul.addr %s1572, 4
      %s1574 = scalar_lea.vmem %s6, %s1573
      // Predicated region
      $region41: #{upsample_unit_forward.2} parent=39 // pred_check
        %p1575 = pneg %p146
      $region42: #{upsample_unit_forward.2} parent=39 // pred_check_branch
        %1577 = sbr.rel (%p1575) target = $region44
      $region43: #{upsample_unit_forward.2} parent=39 // pred_region
        %s1578 = smul.u32 32, %s18
      $region44: #{upsample_unit_forward.2} parent=39 // pred_fallthru
        _
      // Predicated region
      $region45: #{upsample_unit_forward.2} parent=39 // pred_check
        %p1579 = pneg %p172
      $region46: #{upsample_unit_forward.2} parent=39 // pred_check_branch
        %1581 = sbr.rel (%p1579) target = $region48
      $region47: #{upsample_unit_forward.2} parent=39 // pred_region
        %s1582 = smul.u32 32, %s18
      $region48: #{upsample_unit_forward.2} parent=39 // pred_fallthru
        _
    $region40: #{upsample_unit_forward.2} parent=5 // pred_fallthru
      _
    %p1583 = scmp.le.s32.totalorder 2, %s13
    // Predicated region
    $region49: #{upsample_unit_forward.2} parent=5 // pred_check
      %p1584 = pneg %p1583
    $region50: #{upsample_unit_forward.2} parent=5 // pred_check_branch
      %1586 = sbr.rel (%p1584) target = $region52
    $region51: #{upsample_unit_forward.2} parent=5 // pred_region
      %s1587 = ssub.s32 %s13, 2
      // Predicated region
      $region53: #{upsample_unit_forward.2} parent=51 // pred_check
        %p1588 = pneg %p152
      $region54: #{upsample_unit_forward.2} parent=51 // pred_check_branch
        %1590 = sbr.rel (%p1588) target = $region56
      $region55: #{upsample_unit_forward.2} parent=51 // pred_region
        %s1591 = smul.u32 32, %s19
        %p1592 = scmp.lt.s32.totalorder %s1591, 63
        %s1593 = scalar_select %p1592, %s1591, 63
        %s1594 = smul.addr %s1593, 2
        %s1595 = smul.addr %s1594, 4
        %s1596 = scalar_lea.vmem %s5, %s1595
      $region56: #{upsample_unit_forward.2} parent=51 // pred_fallthru
        _
      // Predicated region
      $region57: #{upsample_unit_forward.2} parent=51 // pred_check
        %p1597 = pneg %p178
      $region58: #{upsample_unit_forward.2} parent=51 // pred_check_branch
        %1599 = sbr.rel (%p1597) target = $region60
      $region59: #{upsample_unit_forward.2} parent=51 // pred_region
        %s1600 = smul.u32 32, %s19
        %p1601 = scmp.lt.s32.totalorder %s1600, 63
        %s1602 = scalar_select %p1601, %s1600, 63
        %s1603 = smul.addr %s1602, 4
        %s1604 = scalar_lea.vmem %s6, %s1603
      $region60: #{upsample_unit_forward.2} parent=51 // pred_fallthru
        _
    $region52: #{upsample_unit_forward.2} parent=5 // pred_fallthru
      _
  $region6: #{upsample_unit_forward.2} parent=0 // loop_footer
    %s17 = sadd.s32 1, %s13
  $region7: #{upsample_unit_forward.2} parent=0 // loop_footer_branch
    %12 = sbr.rel target = $region3
  $region8: #{upsample_unit_forward.2} parent=0 // loop_exit
    _

// kernel: upsample_unit_forward.3
$region0: #{upsample_unit_forward.3}
  #allocation0 [shape = 'u32[]', space=smem, size = 0x4, offset = 0x4, fixed_abs, tag = 'smem constant byte address 0x4 - core index']
  #allocation1 [shape = 'u32[144,128]{1,0:T(1,128)}', space=vmem, size = 0x12000, scoped, tag = 'internal scratch']
  #allocation2 [shape = 'bf16[324,128]{1,0:T(8,128)(2,1)}', space=vmem, size = 0x14800, scoped, tag = 'scratch operand']
  #allocation3 [shape = 'f32[296,96]{1,0:T(8,128)}', space=vmem, size = 0x25000, scoped, tag = 'scratch operand']
  %s0 = inlined_call_operand.vmem [shape: bf16[512,192], index: 0, kind: input, shape index: {}]
  %s1 = inlined_call_operand.vmem [shape: bf16[128,128], index: 1, kind: input, shape index: {}]
  %s2 = inlined_call_operand.vmem [shape: f32[1,128], index: 2, kind: input, shape index: {}]
  %s3 = inlined_call_operand.vmem [shape: bf16[3,128,96], index: 3, kind: input, shape index: {}]
  %s4 = inlined_call_operand.vmem [shape: f32[1,32], index: 4, kind: input, shape index: {}]
  %s5 = inlined_call_operand.vmem [shape: f32[2,288,32], index: 5, kind: output, shape index: {}]
  %s6 = sld [smem:[#allocation0]]
  $region94: #{upsample_unit_forward.3} parent=0
    _
  %s8 = ssub.s32 1, %s6
  %s9 = scalar_select 0, %s8, %s6
  $region1: #{upsample_unit_forward.3} parent=0
    #allocation4 [shape = 'u8[131072]{0}', space=vmem, size = 0x20000, scoped, tag = 'input window, operand 0']
    loop: start=0, step=1, limit=4
    $region2: #{upsample_unit_forward.3} parent=1 // loop_pre_header
      _
    $region3: #{upsample_unit_forward.3} parent=1 // loop_header
      %s11 = sphi 0, %s15
      %p12 = scmp.ge.s32.totalorder %s11, 4
      %s21 = sphi 0, %s23
      %s24 = sphi 0, %s21
      %s25 = sphi 0, %s24
      %s41 = sphi 0, %s25
      %s45 = sphi 0, %s45
      %s47 = sphi 0, %s45
      %s48 = sphi 0, %s47
      %s62 = sphi 0, %s48
      %s66 = sphi 0, %s66
      %s68 = sphi 0, %s66
      %s69 = sphi 0, %s68
      %s83 = sphi 0, %s69
      %s87 = sphi 0, %s87
      %s89 = sphi 0, %s87
      %s90 = sphi 0, %s89
      %s104 = sphi 0, %s90
      %s108 = sphi 0, %s108
      %s110 = sphi 0, %s108
      %s111 = sphi 0, %s110
      %s125 = sphi 0, %s111
      %s131 = sphi 0, %s133
      %s134 = sphi 0, %s131
      %s135 = sphi 0, %s134
      %s151 = sphi 0, %s135
    $region4: #{upsample_unit_forward.3} parent=1 // loop_header_branch
      %14 = sbr.rel (%p12) target = $region8
    $region5: #{upsample_unit_forward.3} parent=1 // loop_body
      %s16 = ssub.s32 %s11, 1
      %s17 = ssub.s32 %s11, 2
      %s18 = sadd.s32 %s11, 1
      %s19 = ssub.s32 %s11, %s18
      %p20 = scmp.eq.s32.totalorder %s19, 0
      %s22 = sadd.s32 %s21, 1
      %s23 = scalar_select %p20, %s21, %s22
      %p26 = pneg %p20
      %p27 = scmp.eq.s32.totalorder %s11, 1
      %p28 = por %p26, %p27
      %p29 = scmp.ne.s32.totalorder %s21, %s24
      %p30 = scmp.eq.s32.totalorder %s11, 0
      %p31 = por %p29, %p30
      %p32 = scmp.ne.s32.totalorder %s21, %s24
      %p33 = scmp.eq.s32.totalorder %s16, 1
      %p34 = por %p32, %p33
      %p35 = scmp.ne.s32.totalorder %s24, %s25
      %p36 = scmp.eq.s32.totalorder %s16, 0
      %p37 = por %p35, %p36
      %p38 = scmp.ne.s32.totalorder %s24, %s25
      %p39 = scmp.eq.s32.totalorder %s17, 1
      %p40 = por %p38, %p39
      %p42 = scmp.ne.s32.totalorder %s25, %s41
      %p43 = scmp.eq.s32.totalorder %s17, 0
      %p44 = por %p42, %p43
      %s46 = sadd.s32 %s45, 1
      %p49 = scmp.eq.s32.totalorder %s11, 1
      %p50 = scmp.ne.s32.totalorder %s45, %s47
      %p51 = scmp.eq.s32.totalorder %s11, 0
      %p52 = por %p50, %p51
      %p53 = scmp.ne.s32.totalorder %s45, %s47
      %p54 = scmp.eq.s32.totalorder %s16, 1
      %p55 = por %p53, %p54
      %p56 = scmp.ne.s32.totalorder %s47, %s48
      %p57 = scmp.eq.s32.totalorder %s16, 0
      %p58 = por %p56, %p57
      %p59 = scmp.ne.s32.totalorder %s47, %s48
      %p60 = scmp.eq.s32.totalorder %s17, 1
      %p61 = por %p59, %p60
      %p63 = scmp.ne.s32.totalorder %s48, %s62
      %p64 = scmp.eq.s32.totalorder %s17, 0
      %p65 = por %p63, %p64
      %s67 = sadd.s32 %s66, 1
      %p70 = scmp.eq.s32.totalorder %s11, 1
      %p71 = scmp.ne.s32.totalorder %s66, %s68
      %p72 = scmp.eq.s32.totalorder %s11, 0
      %p73 = por %p71, %p72
      %p74 = scmp.ne.s32.totalorder %s66, %s68
      %p75 = scmp.eq.s32.totalorder %s16, 1
      %p76 = por %p74, %p75
      %p77 = scmp.ne.s32.totalorder %s68, %s69
      %p78 = scmp.eq.s32.totalorder %s16, 0
      %p79 = por %p77, %p78
      %p80 = scmp.ne.s32.totalorder %s68, %s69
      %p81 = scmp.eq.s32.totalorder %s17, 1
      %p82 = por %p80, %p81
      %p84 = scmp.ne.s32.totalorder %s69, %s83
      %p85 = scmp.eq.s32.totalorder %s17, 0
      %p86 = por %p84, %p85
      %s88 = sadd.s32 %s87, 1
      %p91 = scmp.eq.s32.totalorder %s11, 1
      %p92 = scmp.ne.s32.totalorder %s87, %s89
      %p93 = scmp.eq.s32.totalorder %s11, 0
      %p94 = por %p92, %p93
      %p95 = scmp.ne.s32.totalorder %s87, %s89
      %p96 = scmp.eq.s32.totalorder %s16, 1
      %p97 = por %p95, %p96
      %p98 = scmp.ne.s32.totalorder %s89, %s90
      %p99 = scmp.eq.s32.totalorder %s16, 0
      %p100 = por %p98, %p99
      %p101 = scmp.ne.s32.totalorder %s89, %s90
      %p102 = scmp.eq.s32.totalorder %s17, 1
      %p103 = por %p101, %p102
      %p105 = scmp.ne.s32.totalorder %s90, %s104
      %p106 = scmp.eq.s32.totalorder %s17, 0
      %p107 = por %p105, %p106
      %s109 = sadd.s32 %s108, 1
      %p112 = scmp.eq.s32.totalorder %s11, 1
      %p113 = scmp.ne.s32.totalorder %s108, %s110
      %p114 = scmp.eq.s32.totalorder %s11, 0
      %p115 = por %p113, %p114
      %p116 = scmp.ne.s32.totalorder %s108, %s110
      %p117 = scmp.eq.s32.totalorder %s16, 1
      %p118 = por %p116, %p117
      %p119 = scmp.ne.s32.totalorder %s110, %s111
      %p120 = scmp.eq.s32.totalorder %s16, 0
      %p121 = por %p119, %p120
      %p122 = scmp.ne.s32.totalorder %s110, %s111
      %p123 = scmp.eq.s32.totalorder %s17, 1
      %p124 = por %p122, %p123
      %p126 = scmp.ne.s32.totalorder %s111, %s125
      %p127 = scmp.eq.s32.totalorder %s17, 0
      %p128 = por %p126, %p127
      %s129 = ssub.s32 %s11, %s18
      %p130 = scmp.eq.s32.totalorder %s129, 0
      %s132 = sadd.s32 %s131, 1
      %s133 = scalar_select %p130, %s131, %s132
      %p136 = pneg %p130
      %p137 = scmp.eq.s32.totalorder %s11, 1
      %p138 = por %p136, %p137
      %p139 = scmp.ne.s32.totalorder %s131, %s134
      %p140 = scmp.eq.s32.totalorder %s11, 0
      %p141 = por %p139, %p140
      %p142 = scmp.ne.s32.totalorder %s131, %s134
      %p143 = scmp.eq.s32.totalorder %s16, 1
      %p144 = por %p142, %p143
      %p145 = scmp.ne.s32.totalorder %s134, %s135
      %p146 = scmp.eq.s32.totalorder %s16, 0
      %p147 = por %p145, %p146
      %p148 = scmp.ne.s32.totalorder %s134, %s135
      %p149 = scmp.eq.s32.totalorder %s17, 1
      %p150 = por %p148, %p149
      %p152 = scmp.ne.s32.totalorder %s135, %s151
      %p153 = scmp.eq.s32.totalorder %s17, 0
      %p154 = por %p152, %p153
      %p155 = scmp.le.s32.totalorder 1, %s11
      %p156 = scmp.lt.s32.totalorder %s11, 3
      %p157 = pnand %p155, %p156
      %p158 = pneg %p157
      // Predicated region
      $region9: #{upsample_unit_forward.3} parent=5 // pred_check
        _
      $region10: #{upsample_unit_forward.3} parent=5 // pred_check_branch
        %160 = sbr.rel (%p157) target = $region12
      $region11: #{upsample_unit_forward.3} parent=5 // pred_region
        %s161 = ssub.s32 %s11, 1
        // Predicated region
        $region13: #{upsample_unit_forward.3} parent=11 // pred_check
          %p162 = pneg %p58
        $region14: #{upsample_unit_forward.3} parent=11 // pred_check_branch
          %164 = sbr.rel (%p162) target = $region16
        $region15: #{upsample_unit_forward.3} parent=11 // pred_region
          _
        $region16: #{upsample_unit_forward.3} parent=11 // pred_fallthru
          _
        // Predicated region
        $region17: #{upsample_unit_forward.3} parent=11 // pred_check
          %p165 = pneg %p79
        $region18: #{upsample_unit_forward.3} parent=11 // pred_check_branch
          %167 = sbr.rel (%p165) target = $region20
        $region19: #{upsample_unit_forward.3} parent=11 // pred_region
          _
        $region20: #{upsample_unit_forward.3} parent=11 // pred_fallthru
          _
        // Predicated region
        $region21: #{upsample_unit_forward.3} parent=11 // pred_check
          %p168 = pneg %p100
        $region22: #{upsample_unit_forward.3} parent=11 // pred_check_branch
          %170 = sbr.rel (%p168) target = $region24
        $region23: #{upsample_unit_forward.3} parent=11 // pred_region
          _
        $region24: #{upsample_unit_forward.3} parent=11 // pred_fallthru
          _
        // Predicated region
        $region25: #{upsample_unit_forward.3} parent=11 // pred_check
          %p171 = pneg %p121
        $region26: #{upsample_unit_forward.3} parent=11 // pred_check_branch
          %173 = sbr.rel (%p171) target = $region28
        $region27: #{upsample_unit_forward.3} parent=11 // pred_region
          _
        $region28: #{upsample_unit_forward.3} parent=11 // pred_fallthru
          _
      $region12: #{upsample_unit_forward.3} parent=5 // pred_fallthru
        _
      %p174 = scmp.lt.s32.totalorder %s11, 2
      // Predicated region
      $region29: #{upsample_unit_forward.3} parent=5 // pred_check
        %p175 = pneg %p174
      $region30: #{upsample_unit_forward.3} parent=5 // pred_check_branch
        %177 = sbr.rel (%p175) target = $region32
      $region31: #{upsample_unit_forward.3} parent=5 // pred_region
        // Predicated region
        $region33: #{upsample_unit_forward.3} parent=31 // pred_check
          %p178 = pneg %p31
        $region34: #{upsample_unit_forward.3} parent=31 // pred_check_branch
          %180 = sbr.rel (%p178) target = $region36
        $region35: #{upsample_unit_forward.3} parent=31 // pred_region
          %s181 = sand.u32 %s21, 1
          %s182 = sand.u32 %s21, 1
          %s183 = smul.addr %s182, 128
          %s184 = scalar_lea.vmem [#allocation4], %s183
          %s185 = smul.u32 32, %s11
          %s186 = smul.addr %s185, 2
          %s187 = smul.addr %s186, 4
          %s188 = scalar_lea.vmem %s0, %s187
          // Predicated region
          $region37: #{upsample_unit_forward.3} parent=35 // pred_check
            _
          $region38: #{upsample_unit_forward.3} parent=35 // pred_check_branch
            %190 = sbr.rel (0) target = $region40
          $region39: #{upsample_unit_forward.3} parent=35 // pred_region
            // Predicated region
            $region41: #{upsample_unit_forward.3} parent=39 // pred_check
              _
            $region42: #{upsample_unit_forward.3} parent=39 // pred_check_branch
              %192 = sbr.rel target = $region44
            $region43: #{upsample_unit_forward.3} parent=39 // pred_region
              // Predicated region
              $region56: #{upsample_unit_forward.3} parent=43 // pred_check
                _
              $region57: #{upsample_unit_forward.3} parent=43 // pred_check_branch
                %269 = sbr.rel (0) target = $region59
              $region58: #{upsample_unit_forward.3} parent=43 // pred_region
                loop: start=0, step=1, limit=1
                $region60: #{upsample_unit_forward.3} parent=58 // loop_pre_header
                  _
                $region61: #{upsample_unit_forward.3} parent=58 // loop_header
                  %s271 = sphi 0, %s275
                  %p272 = scmp.ge.s32.totalorder %s271, 1
                  %s276 = sphi %s188, %s188
                  %s277 = sphi %s184, %s184
                $region62: #{upsample_unit_forward.3} parent=58 // loop_header_branch
                  %274 = sbr.rel (%p272) target = $region66
                $region63: #{upsample_unit_forward.3} parent=58 // loop_body
                  _
                $region64: #{upsample_unit_forward.3} parent=58 // loop_footer
                  %s275 = sadd.s32 1, %s271
                $region65: #{upsample_unit_forward.3} parent=58 // loop_footer_branch
                  %270 = sbr.rel target = $region61
                $region66: #{upsample_unit_forward.3} parent=58 // loop_exit
                  _
                loop: start=0, step=1, limit=1
                $region67: #{upsample_unit_forward.3} parent=58 // loop_pre_header
                  _
                $region68: #{upsample_unit_forward.3} parent=58 // loop_header
                  %s280 = sphi 0, %s284
                  %p281 = scmp.ge.s32.totalorder %s280, 1
                  %s285 = sphi %s188, %s188
                  %s286 = sphi %s184, %s184
                $region69: #{upsample_unit_forward.3} parent=58 // loop_header_branch
                  %283 = sbr.rel (%p281) target = $region73
                $region70: #{upsample_unit_forward.3} parent=58 // loop_body
                  %v287 = vld [vmem:[%s285] sm:$0xf]
                  %288 = vst [vmem:[%s286] sm:$0xf] %v287
                  %v289 = vld [vmem:[%s285 + $0x8] sm:$0xf]
                  %290 = vst [vmem:[%s286 + $0x4] sm:$0xf] %v289
                  %v291 = vld [vmem:[%s285 + $0x10] sm:$0xf]
                  %292 = vst [vmem:[%s286 + $0x8] sm:$0xf] %v291
                  %v293 = vld [vmem:[%s285 + $0x18] sm:$0xf]
                  %294 = vst [vmem:[%s286 + $0xc] sm:$0xf] %v293
                  %v295 = vld [vmem:[%s285 + $0x20] sm:$0xf]
                  %296 = vst [vmem:[%s286 + $0x10] sm:$0xf] %v295
                  %v297 = vld [vmem:[%s285 + $0x28] sm:$0xf]
                  %298 = vst [vmem:[%s286 + $0x14] sm:$0xf] %v297
                  %v299 = vld [vmem:[%s285 + $0x30] sm:$0xf]
                  %300 = vst [vmem:[%s286 + $0x18] sm:$0xf] %v299
                  %v301 = vld [vmem:[%s285 + $0x38] sm:$0xf]
                  %302 = vst [vmem:[%s286 + $0x1c] sm:$0xf] %v301
                  %v303 = vld [vmem:[%s285 + $0x40] sm:$0xf]
                  %304 = vst [vmem:[%s286 + $0x20] sm:$0xf] %v303
                  %v305 = vld [vmem:[%s285 + $0x48] sm:$0xf]
                  %306 = vst [vmem:[%s286 + $0x24] sm:$0xf] %v305
                  %v307 = vld [vmem:[%s285 + $0x50] sm:$0xf]
                  %308 = vst [vmem:[%s286 + $0x28] sm:$0xf] %v307
                  %v309 = vld [vmem:[%s285 + $0x58] sm:$0xf]
                  %310 = vst [vmem:[%s286 + $0x2c] sm:$0xf] %v309
                  %v311 = vld [vmem:[%s285 + $0x60] sm:$0xf]
                  %312 = vst [vmem:[%s286 + $0x30] sm:$0xf] %v311
                  %v313 = vld [vmem:[%s285 + $0x68] sm:$0xf]
                  %314 = vst [vmem:[%s286 + $0x34] sm:$0xf] %v313
                  %v315 = vld [vmem:[%s285 + $0x70] sm:$0xf]
                  %316 = vst [vmem:[%s286 + $0x38] sm:$0xf] %v315
                  %v317 = vld [vmem:[%s285 + $0x78] sm:$0xf]
                  %318 = vst [vmem:[%s286 + $0x3c] sm:$0xf] %v317
                  %v319 = vld [vmem:[%s285 + $0x80] sm:$0xf]
                  %320 = vst [vmem:[%s286 + $0x40] sm:$0xf] %v319
                  %v321 = vld [vmem:[%s285 + $0x88] sm:$0xf]
                  %322 = vst [vmem:[%s286 + $0x44] sm:$0xf] %v321
                  %v323 = vld [vmem:[%s285 + $0x90] sm:$0xf]
                  %324 = vst [vmem:[%s286 + $0x48] sm:$0xf] %v323
                  %v325 = vld [vmem:[%s285 + $0x98] sm:$0xf]
                  %326 = vst [vmem:[%s286 + $0x4c] sm:$0xf] %v325
                  %v327 = vld [vmem:[%s285 + $0xa0] sm:$0xf]
                  %328 = vst [vmem:[%s286 + $0x50] sm:$0xf] %v327
                  %v329 = vld [vmem:[%s285 + $0xa8] sm:$0xf]
                  %330 = vst [vmem:[%s286 + $0x54] sm:$0xf] %v329
                  %v331 = vld [vmem:[%s285 + $0xb0] sm:$0xf]
                  %332 = vst [vmem:[%s286 + $0x58] sm:$0xf] %v331
                  %v333 = vld [vmem:[%s285 + $0xb8] sm:$0xf]
                  %334 = vst [vmem:[%s286 + $0x5c] sm:$0xf] %v333
                  %v335 = vld [vmem:[%s285 + $0xc0] sm:$0xf]
                  %336 = vst [vmem:[%s286 + $0x60] sm:$0xf] %v335
                  %v337 = vld [vmem:[%s285 + $0xc8] sm:$0xf]
                  %338 = vst [vmem:[%s286 + $0x64] sm:$0xf] %v337
                  %v339 = vld [vmem:[%s285 + $0xd0] sm:$0xf]
                  %340 = vst [vmem:[%s286 + $0x68] sm:$0xf] %v339
                  %v341 = vld [vmem:[%s285 + $0xd8] sm:$0xf]
                  %342 = vst [vmem:[%s286 + $0x6c] sm:$0xf] %v341
                  %v343 = vld [vmem:[%s285 + $0xe0] sm:$0xf]
                  %344 = vst [vmem:[%s286 + $0x70] sm:$0xf] %v343
                  %v345 = vld [vmem:[%s285 + $0xe8] sm:$0xf]
                  %346 = vst [vmem:[%s286 + $0x74] sm:$0xf] %v345
                  %v347 = vld [vmem:[%s285 + $0xf0] sm:$0xf]
                  %348 = vst [vmem:[%s286 + $0x78] sm:$0xf] %v347
                  %v349 = vld [vmem:[%s285 + $0xf8] sm:$0xf]
                  %350 = vst [vmem:[%s286 + $0x7c] sm:$0xf] %v349
                $region71: #{upsample_unit_forward.3} parent=58 // loop_footer
                  %s284 = sadd.s32 1, %s280
                $region72: #{upsample_unit_forward.3} parent=58 // loop_footer_branch
                  %279 = sbr.rel target = $region68
                $region73: #{upsample_unit_forward.3} parent=58 // loop_exit
                  _
              $region59: #{upsample_unit_forward.3} parent=43 // pred_fallthru
                _
            $region44: #{upsample_unit_forward.3} parent=39 // pred_fallthru
              _
            // Predicated region
            $region45: #{upsample_unit_forward.3} parent=39 // pred_check
              _
            $region46: #{upsample_unit_forward.3} parent=39 // pred_check_branch
              %194 = sbr.rel (0) target = $region48
            $region47: #{upsample_unit_forward.3} parent=39 // pred_region
              loop: start=0, step=1, limit=1
              $region49: #{upsample_unit_forward.3} parent=47 // loop_pre_header
                _
              $region50: #{upsample_unit_forward.3} parent=47 // loop_header
                %s197 = sphi 0, %s201
                %p198 = scmp.ge.s32.totalorder %s197, 1
                %s202 = sphi %s188, %s188
                %s203 = sphi %s184, %s184
              $region51: #{upsample_unit_forward.3} parent=47 // loop_header_branch
                %200 = sbr.rel (%p198) target = $region55
              $region52: #{upsample_unit_forward.3} parent=47 // loop_body
                %v204 = vld [vmem:[%s202] sm:$0xf]
                %205 = vst [vmem:[%s203] sm:$0xf] %v204
                %v206 = vld [vmem:[%s202 + $0x8] sm:$0xf]
                %207 = vst [vmem:[%s203 + $0x4] sm:$0xf] %v206
                %v208 = vld [vmem:[%s202 + $0x10] sm:$0xf]
                %209 = vst [vmem:[%s203 + $0x8] sm:$0xf] %v208
                %v210 = vld [vmem:[%s202 + $0x18] sm:$0xf]
                %211 = vst [vmem:[%s203 + $0xc] sm:$0xf] %v210
                %v212 = vld [vmem:[%s202 + $0x20] sm:$0xf]
                %213 = vst [vmem:[%s203 + $0x10] sm:$0xf] %v212
                %v214 = vld [vmem:[%s202 + $0x28] sm:$0xf]
                %215 = vst [vmem:[%s203 + $0x14] sm:$0xf] %v214
                %v216 = vld [vmem:[%s202 + $0x30] sm:$0xf]
                %217 = vst [vmem:[%s203 + $0x18] sm:$0xf] %v216
                %v218 = vld [vmem:[%s202 + $0x38] sm:$0xf]
                %219 = vst [vmem:[%s203 + $0x1c] sm:$0xf] %v218
                %v220 = vld [vmem:[%s202 + $0x40] sm:$0xf]
                %221 = vst [vmem:[%s203 + $0x20] sm:$0xf] %v220
                %v222 = vld [vmem:[%s202 + $0x48] sm:$0xf]
                %223 = vst [vmem:[%s203 + $0x24] sm:$0xf] %v222
                %v224 = vld [vmem:[%s202 + $0x50] sm:$0xf]
                %225 = vst [vmem:[%s203 + $0x28] sm:$0xf] %v224
                %v226 = vld [vmem:[%s202 + $0x58] sm:$0xf]
                %227 = vst [vmem:[%s203 + $0x2c] sm:$0xf] %v226
                %v228 = vld [vmem:[%s202 + $0x60] sm:$0xf]
                %229 = vst [vmem:[%s203 + $0x30] sm:$0xf] %v228
                %v230 = vld [vmem:[%s202 + $0x68] sm:$0xf]
                %231 = vst [vmem:[%s203 + $0x34] sm:$0xf] %v230
                %v232 = vld [vmem:[%s202 + $0x70] sm:$0xf]
                %233 = vst [vmem:[%s203 + $0x38] sm:$0xf] %v232
                %v234 = vld [vmem:[%s202 + $0x78] sm:$0xf]
                %235 = vst [vmem:[%s203 + $0x3c] sm:$0xf] %v234
                %v236 = vld [vmem:[%s202 + $0x80] sm:$0xf]
                %237 = vst [vmem:[%s203 + $0x40] sm:$0xf] %v236
                %v238 = vld [vmem:[%s202 + $0x88] sm:$0xf]
                %239 = vst [vmem:[%s203 + $0x44] sm:$0xf] %v238
                %v240 = vld [vmem:[%s202 + $0x90] sm:$0xf]
                %241 = vst [vmem:[%s203 + $0x48] sm:$0xf] %v240
                %v242 = vld [vmem:[%s202 + $0x98] sm:$0xf]
                %243 = vst [vmem:[%s203 + $0x4c] sm:$0xf] %v242
                %v244 = vld [vmem:[%s202 + $0xa0] sm:$0xf]
                %245 = vst [vmem:[%s203 + $0x50] sm:$0xf] %v244
                %v246 = vld [vmem:[%s202 + $0xa8] sm:$0xf]
                %247 = vst [vmem:[%s203 + $0x54] sm:$0xf] %v246
                %v248 = vld [vmem:[%s202 + $0xb0] sm:$0xf]
                %249 = vst [vmem:[%s203 + $0x58] sm:$0xf] %v248
                %v250 = vld [vmem:[%s202 + $0xb8] sm:$0xf]
                %251 = vst [vmem:[%s203 + $0x5c] sm:$0xf] %v250
                %v252 = vld [vmem:[%s202 + $0xc0] sm:$0xf]
                %253 = vst [vmem:[%s203 + $0x60] sm:$0xf] %v252
                %v254 = vld [vmem:[%s202 + $0xc8] sm:$0xf]
                %255 = vst [vmem:[%s203 + $0x64] sm:$0xf] %v254
                %v256 = vld [vmem:[%s202 + $0xd0] sm:$0xf]
                %257 = vst [vmem:[%s203 + $0x68] sm:$0xf] %v256
                %v258 = vld [vmem:[%s202 + $0xd8] sm:$0xf]
                %259 = vst [vmem:[%s203 + $0x6c] sm:$0xf] %v258
                %v260 = vld [vmem:[%s202 + $0xe0] sm:$0xf]
                %261 = vst [vmem:[%s203 + $0x70] sm:$0xf] %v260
                %v262 = vld [vmem:[%s202 + $0xe8] sm:$0xf]
                %263 = vst [vmem:[%s203 + $0x74] sm:$0xf] %v262
                %v264 = vld [vmem:[%s202 + $0xf0] sm:$0xf]
                %265 = vst [vmem:[%s203 + $0x78] sm:$0xf] %v264
                %v266 = vld [vmem:[%s202 + $0xf8] sm:$0xf]
                %267 = vst [vmem:[%s203 + $0x7c] sm:$0xf] %v266
              $region53: #{upsample_unit_forward.3} parent=47 // loop_footer
                %s201 = sadd.s32 1, %s197
              $region54: #{upsample_unit_forward.3} parent=47 // loop_footer_branch
                %196 = sbr.rel target = $region50
              $region55: #{upsample_unit_forward.3} parent=47 // loop_exit
                _
            $region48: #{upsample_unit_forward.3} parent=39 // pred_fallthru
              _
          $region40: #{upsample_unit_forward.3} parent=35 // pred_fallthru
            _
          %351 = vnop
        $region36: #{upsample_unit_forward.3} parent=31 // pred_fallthru
          _
      $region32: #{upsample_unit_forward.3} parent=5 // pred_fallthru
        _
      %p352 = scmp.le.s32.totalorder 1, %s11
      %p353 = scmp.lt.s32.totalorder %s11, 3
      %p354 = pnand %p352, %p353
      %p355 = pneg %p354
      // Predicated region
      $region74: #{upsample_unit_forward.3} parent=5 // pred_check
        _
      $region75: #{upsample_unit_forward.3} parent=5 // pred_check_branch
        %357 = sbr.rel (%p354) target = $region77
      $region76: #{upsample_unit_forward.3} parent=5 // pred_region
        %s358 = ssub.s32 %s11, 1
        %s359 = sand.u32 %s24, 1
        %s360 = sand.u32 %s24, 1
        %s361 = smul.addr %s360, 128
        %s362 = scalar_lea.vmem [#allocation4], %s361
        // Predicated region
        $region78: #{upsample_unit_forward.3} parent=76 // pred_check
          %p363 = pneg %p37
        $region79: #{upsample_unit_forward.3} parent=76 // pred_check_branch
          %365 = sbr.rel (%p363) target = $region81
        $region80: #{upsample_unit_forward.3} parent=76 // pred_region
          _
        $region81: #{upsample_unit_forward.3} parent=76 // pred_fallthru
          _
        %s366 = sand.u32 %s24, 1
        %s367 = sand.u32 %s24, 1
        %s368 = smul.addr %s367, 128
        %s369 = scalar_lea.vmem [#allocation4], %s368
        %p370 = pneg %p37
        %p371 = pneg %p34
        %p372 = pneg %p58
        %p373 = pneg %p55
        %p374 = pneg %p79
        %p375 = pneg %p76
        %p376 = pneg %p100
        %p377 = pneg %p97
        %p378 = pneg %p121
        %p379 = pneg %p118
        %p380 = pneg %p147
        %p381 = pneg %p144
        %p382 = scmp.lt.s32.totalorder %s16, 1
        %s383 = scalar_select %p382, %s16, 1
        %s384 = smul.addr %s383, 36
        %s385 = smul.addr %s384, 8
        %s386 = scalar_lea.vmem %s5, %s385
        %s387 = smul.u32 32, %s16
        %p388 = scmp.lt.s32.totalorder %s16, 1
        %s389 = scalar_select %p388, %s16, 1
        %s390 = smul.addr %s389, 36
        %s391 = smul.addr %s390, 8
        %s392 = scalar_lea.vmem %s5, %s391
        %394 = vst [vmem:[#allocation2] sm:$0xf] 0
        %395 = vst [vmem:[#allocation2 + $0x4] sm:$0xf] 0
        %396 = vst [vmem:[#allocation2 + $0x8] sm:$0xf] 0
        %397 = vst [vmem:[#allocation2 + $0xc] sm:$0xf] 0
        %398 = vst [vmem:[#allocation2 + $0x10] sm:$0xf] 0
        %399 = vst [vmem:[#allocation2 + $0x14] sm:$0xf] 0
        %400 = vst [vmem:[#allocation2 + $0x18] sm:$0xf] 0
        %401 = vst [vmem:[#allocation2 + $0x1c] sm:$0xf] 0
        %402 = vst [vmem:[#allocation2 + $0x20] sm:$0xf] 0
        %403 = vst [vmem:[#allocation2 + $0x24] sm:$0xf] 0
        %404 = vst [vmem:[#allocation2 + $0x28] sm:$0xf] 0
        %405 = vst [vmem:[#allocation2 + $0x2c] sm:$0xf] 0
        %406 = vst [vmem:[#allocation2 + $0x30] sm:$0xf] 0
        %407 = vst [vmem:[#allocation2 + $0x34] sm:$0xf] 0
        %408 = vst [vmem:[#allocation2 + $0x38] sm:$0xf] 0
        %409 = vst [vmem:[#allocation2 + $0x3c] sm:$0xf] 0
        %410 = vst [vmem:[#allocation2 + $0x40] sm:$0xf] 0
        %411 = vst [vmem:[#allocation2 + $0x44] sm:$0xf] 0
        %412 = vst [vmem:[#allocation2 + $0x48] sm:$0xf] 0
        %413 = vst [vmem:[#allocation2 + $0x4c] sm:$0xf] 0
        %414 = vst [vmem:[#allocation2 + $0x50] sm:$0xf] 0
        %415 = vst [vmem:[#allocation2 + $0x54] sm:$0xf] 0
        %416 = vst [vmem:[#allocation2 + $0x58] sm:$0xf] 0
        %417 = vst [vmem:[#allocation2 + $0x5c] sm:$0xf] 0
        %418 = vst [vmem:[#allocation2 + $0x60] sm:$0xf] 0
        %419 = vst [vmem:[#allocation2 + $0x64] sm:$0xf] 0
        %420 = vst [vmem:[#allocation2 + $0x68] sm:$0xf] 0
        %421 = vst [vmem:[#allocation2 + $0x6c] sm:$0xf] 0
        %422 = vst [vmem:[#allocation2 + $0x70] sm:$0xf] 0
        %423 = vst [vmem:[#allocation2 + $0x74] sm:$0xf] 0
        %424 = vst [vmem:[#allocation2 + $0x78] sm:$0xf] 0
        %425 = vst [vmem:[#allocation2 + $0x7c] sm:$0xf] 0
        %426 = vst [vmem:[#allocation2 + $0x80] sm:$0xf] 0
        %427 = vst [vmem:[#allocation2 + $0x84] sm:$0xf] 0
        %428 = vst [vmem:[#allocation2 + $0x88] sm:$0xf] 0
        %429 = vst [vmem:[#allocation2 + $0x8c] sm:$0xf] 0
        %430 = vst [vmem:[#allocation2 + $0x90] sm:$0xf] 0
        %431 = vst [vmem:[#allocation2 + $0x94] sm:$0xf] 0
        %432 = vst [vmem:[#allocation2 + $0x98] sm:$0xf] 0
        %433 = vst [vmem:[#allocation2 + $0x9c] sm:$0xf] 0
        %434 = vst [vmem:[#allocation2 + $0xa0] sm:$0x3] 0
        %v435 = vld [vmem:[%s362] sm:$0xf]
        %v436 = vld [vmem:[%s362 + $0x4] sm:$0xf]
        %v437 = vld [vmem:[%s362 + $0x8] sm:$0xf]
        %v438 = vld [vmem:[%s362 + $0xc] sm:$0xf]
        %v439 = vld [vmem:[%s362 + $0x10] sm:$0xf]
        %v440 = vld [vmem:[%s362 + $0x14] sm:$0xf]
        %v441 = vld [vmem:[%s362 + $0x18] sm:$0xf]
        %v442 = vld [vmem:[%s362 + $0x1c] sm:$0xf]
        %v443 = vld [vmem:[%s362 + $0x20] sm:$0xf]
        %v444 = vld [vmem:[%s362 + $0x24] sm:$0xf]
        %v445 = vld [vmem:[%s362 + $0x28] sm:$0xf]
        %v446 = vld [vmem:[%s362 + $0x2c] sm:$0xf]
        %v447 = vld [vmem:[%s362 + $0x30] sm:$0xf]
        %v448 = vld [vmem:[%s362 + $0x34] sm:$0xf]
        %v449 = vld [vmem:[%s362 + $0x38] sm:$0xf]
        %v450 = vld [vmem:[%s362 + $0x3c] sm:$0xf]
        %v451 = vld [vmem:[%s362 + $0x40] sm:$0xf]
        %v452 = vld [vmem:[%s362 + $0x44] sm:$0xf]
        %v453 = vld [vmem:[%s362 + $0x48] sm:$0xf]
        %v454 = vld [vmem:[%s362 + $0x4c] sm:$0xf]
        %v455 = vld [vmem:[%s362 + $0x50] sm:$0xf]
        %v456 = vld [vmem:[%s362 + $0x54] sm:$0xf]
        %v457 = vld [vmem:[%s362 + $0x58] sm:$0xf]
        %v458 = vld [vmem:[%s362 + $0x5c] sm:$0xf]
        %v459 = vld [vmem:[%s362 + $0x60] sm:$0xf]
        %v460 = vld [vmem:[%s362 + $0x64] sm:$0xf]
        %v461 = vld [vmem:[%s362 + $0x68] sm:$0xf]
        %v462 = vld [vmem:[%s362 + $0x6c] sm:$0xf]
        %v463 = vld [vmem:[%s362 + $0x70] sm:$0xf]
        %v464 = vld [vmem:[%s362 + $0x74] sm:$0xf]
        %v465 = vld [vmem:[%s362 + $0x78] sm:$0xf]
        %v466 = vld [vmem:[%s362 + $0x7c] sm:$0xf]
        %v467 = vld [vmem:[%s1] sm:$0xf]
        %v468 = vld [vmem:[%s1 + $0x4] sm:$0xf]
        %v469 = vld [vmem:[%s1 + $0x8] sm:$0xf]
        %v470 = vld [vmem:[%s1 + $0xc] sm:$0xf]
        %v471 = vld [vmem:[%s1 + $0x10] sm:$0xf]
        %v472 = vld [vmem:[%s1 + $0x14] sm:$0xf]
        %v473 = vld [vmem:[%s1 + $0x18] sm:$0xf]
        %v474 = vld [vmem:[%s1 + $0x1c] sm:$0xf]
        %v475 = vld [vmem:[%s1 + $0x20] sm:$0xf]
        %v476 = vld [vmem:[%s1 + $0x24] sm:$0xf]
        %v477 = vld [vmem:[%s1 + $0x28] sm:$0xf]
        %v478 = vld [vmem:[%s1 + $0x2c] sm:$0xf]
        %v479 = vld [vmem:[%s1 + $0x30] sm:$0xf]
        %v480 = vld [vmem:[%s1 + $0x34] sm:$0xf]
        %v481 = vld [vmem:[%s1 + $0x38] sm:$0xf]
        %v482 = vld [vmem:[%s1 + $0x3c] sm:$0xf]
        %v483 = vld [vmem:[%s2] sm:$0x1]
        %v485 = vlaneseq
        %v486 = vshrl.u32 %v485, 7
        %v487 = vsub.s32 0, %v486
        %v488 = vrot.slane %v483, %v487
        %v522 = vunpack.c.l.b16 %v435
        %v523 = vunpack.c.l.b16 %v436
        %v524 = vunpack.c.l.b16 %v437
        %v525 = vunpack.c.l.b16 %v438
        %v526 = vunpack.c.l.b16 %v439
        %v527 = vunpack.c.l.b16 %v440
        %v528 = vunpack.c.l.b16 %v441
        %v529 = vunpack.c.l.b16 %v442
        %v530 = vunpack.c.l.b16 %v443
        %v531 = vunpack.c.l.b16 %v444
        %v532 = vunpack.c.l.b16 %v445
        %v533 = vunpack.c.l.b16 %v446
        %v534 = vunpack.c.l.b16 %v447
        %v535 = vunpack.c.l.b16 %v448
        %v536 = vunpack.c.l.b16 %v449
        %v537 = vunpack.c.l.b16 %v450
        %v538 = vunpack.c.l.b16 %v451
        %v539 = vunpack.c.l.b16 %v452
        %v540 = vunpack.c.l.b16 %v453
        %v541 = vunpack.c.l.b16 %v454
        %v542 = vunpack.c.l.b16 %v455
        %v543 = vunpack.c.l.b16 %v456
        %v544 = vunpack.c.l.b16 %v457
        %v545 = vunpack.c.l.b16 %v458
        %v546 = vunpack.c.l.b16 %v459
        %v547 = vunpack.c.l.b16 %v460
        %v548 = vunpack.c.l.b16 %v461
        %v549 = vunpack.c.l.b16 %v462
        %v550 = vunpack.c.l.b16 %v463
        %v551 = vunpack.c.l.b16 %v464
        %v552 = vunpack.c.l.b16 %v465
        %v553 = vunpack.c.l.b16 %v466
        %v554 = vpack.c.b16 %v523, %v522
        %v555 = vpack.c.b16 %v525, %v524
        %v556 = vpack.c.b16 %v527, %v526
        %v557 = vpack.c.b16 %v529, %v528
        %v558 = vpack.c.b16 %v531, %v530
        %v559 = vpack.c.b16 %v533, %v532
        %v560 = vpack.c.b16 %v535, %v534
        %v561 = vpack.c.b16 %v537, %v536
        %v562 = vpack.c.b16 %v539, %v538
        %v563 = vpack.c.b16 %v541, %v540
        %v564 = vpack.c.b16 %v543, %v542
        %v565 = vpack.c.b16 %v545, %v544
        %v566 = vpack.c.b16 %v547, %v546
        %v567 = vpack.c.b16 %v549, %v548
        %v568 = vpack.c.b16 %v551, %v550
        %v569 = vpack.c.b16 %v553, %v552
        %v602 = vunpack.c.l.b16 %v467
        %v603 = vunpack.c.l.b16 %v468
        %v604 = vunpack.c.l.b16 %v469
        %v605 = vunpack.c.l.b16 %v470
        %v606 = vunpack.c.l.b16 %v471
        %v607 = vunpack.c.l.b16 %v472
        %v608 = vunpack.c.l.b16 %v473
        %v609 = vunpack.c.l.b16 %v474
        %v610 = vunpack.c.l.b16 %v475
        %v611 = vunpack.c.l.b16 %v476
        %v612 = vunpack.c.l.b16 %v477
        %v613 = vunpack.c.l.b16 %v478
        %v614 = vunpack.c.l.b16 %v479
        %v615 = vunpack.c.l.b16 %v480
        %v616 = vunpack.c.l.b16 %v481
        %v617 = vunpack.c.l.b16 %v482
        %v618 = vpack.c.b16 %v603, %v602
        %v619 = vpack.c.b16 %v605, %v604
        %v620 = vpack.c.b16 %v607, %v606
        %v621 = vpack.c.b16 %v609, %v608
        %v622 = vpack.c.b16 %v611, %v610
        %v623 = vpack.c.b16 %v613, %v612
        %v624 = vpack.c.b16 %v615, %v614
        %v625 = vpack.c.b16 %v617, %v616
        %634 = vmatprep.subr.bf16.mxu0 0
        %635 = vmatpush1.bf16.msra.mxu0 %v618
        %636 = vmatprep.subr.bf16.mxu0 0
        %637 = vmatpush1.bf16.msra.mxu0 %v619
        %638 = vmatprep.subr.bf16.mxu0 0
        %639 = vmatpush1.bf16.msra.mxu0 %v620
        %640 = vmatprep.subr.bf16.mxu0 0
        %641 = vmatpush1.bf16.msra.mxu0 %v621
        %642 = vmatprep.subr.bf16.mxu0 0
        %643 = vmatpush1.bf16.msra.mxu0 %v622
        %644 = vmatprep.subr.bf16.mxu0 0
        %645 = vmatpush1.bf16.msra.mxu0 %v623
        %646 = vmatprep.subr.bf16.mxu0 0
        %647 = vmatpush1.bf16.msra.mxu0 %v624
        %648 = vmatprep.subr.bf16.mxu0 0
        %649 = vmatpush1.bf16.msra.mxu0 %v625
        %650 = vmatprep.subr.bf16.mxu0 0
        %651 = vmatpush1.bf16.msra.mxu0 0
        %652 = vmatprep.subr.bf16.mxu0 0
        %653 = vmatpush1.bf16.msra.mxu0 0
        %654 = vmatprep.subr.bf16.mxu0 0
        %655 = vmatpush1.bf16.msra.mxu0 0
        %656 = vmatprep.subr.bf16.mxu0 0
        %657 = vmatpush1.bf16.msra.mxu0 0
        %658 = vmatprep.subr.bf16.mxu0 0
        %659 = vmatpush1.bf16.msra.mxu0 0
        %660 = vmatprep.subr.bf16.mxu0 0
        %661 = vmatpush1.bf16.msra.mxu0 0
        %662 = vmatprep.subr.bf16.mxu0 0
        %663 = vmatpush1.bf16.msra.mxu0 0
        %664 = vmatprep.subr.bf16.mxu0 0
        %665 = vmatpush1.bf16.msra.mxu0 0
        %666 = vmatprep.mubr.bf16.mxu0 0
        %667 = vmatmul.mubr.bf16.gmra.mrb[0].mxu0 %v554
        %v668 = vpop.f32.mrb[0].mxu0
        %v669 = vadd.f32 %v488, %v668
        %v670 = vpop.f32.mrb[0].mxu0
        %v671 = vpop.f32.mrb[0].mxu0
        %v672 = vadd.f32 %v488, %v671
        %v673 = vpop.f32.mrb[0].mxu0
        %674 = vmatprep.mubr.bf16.mxu0 0
        %675 = vmatmul.mubr.bf16.gmra.mrb[0].mxu0 %v555
        %v676 = vpop.f32.mrb[0].mxu0
        %v677 = vadd.f32 %v488, %v676
        %v678 = vpop.f32.mrb[0].mxu0
        %v679 = vpop.f32.mrb[0].mxu0
        %v680 = vadd.f32 %v488, %v679
        %v681 = vpop.f32.mrb[0].mxu0
        %682 = vmatprep.mubr.bf16.mxu0 0
        %683 = vmatmul.mubr.bf16.gmra.mrb[0].mxu0 %v556
        %v684 = vpop.f32.mrb[0].mxu0
        %v685 = vadd.f32 %v488, %v684
        %v686 = vpop.f32.mrb[0].mxu0
        %v687 = vpop.f32.mrb[0].mxu0
        %v688 = vadd.f32 %v488, %v687
        %v689 = vpop.f32.mrb[0].mxu0
        %690 = vmatprep.mubr.bf16.mxu0 0
        %691 = vmatmul.mubr.bf16.gmra.mrb[0].mxu0 %v557
        %v692 = vpop.f32.mrb[0].mxu0
        %v693 = vadd.f32 %v488, %v692
        %v694 = vpop.f32.mrb[0].mxu0
        %v695 = vpop.f32.mrb[0].mxu0
        %v696 = vadd.f32 %v488, %v695
        %v697 = vpop.f32.mrb[0].mxu0
        %698 = vmatprep.mubr.bf16.mxu0 0
        %699 = vmatmul.mubr.bf16.gmra.mrb[0].mxu0 %v558
        %v700 = vpop.f32.mrb[0].mxu0
        %v701 = vadd.f32 %v488, %v700
        %v702 = vpop.f32.mrb[0].mxu0
        %v703 = vpop.f32.mrb[0].mxu0
        %v704 = vadd.f32 %v488, %v703
        %v705 = vpop.f32.mrb[0].mxu0
        %706 = vmatprep.mubr.bf16.mxu0 0
        %707 = vmatmul.mubr.bf16.gmra.mrb[0].mxu0 %v559
        %v708 = vpop.f32.mrb[0].mxu0
        %v709 = vadd.f32 %v488, %v708
        %v710 = vpop.f32.mrb[0].mxu0
        %v711 = vpop.f32.mrb[0].mxu0
        %v712 = vadd.f32 %v488, %v711
        %v713 = vpop.f32.mrb[0].mxu0
        %714 = vmatprep.mubr.bf16.mxu0 0
        %715 = vmatmul.mubr.bf16.gmra.mrb[0].mxu0 %v560
        %v716 = vpop.f32.mrb[0].mxu0
        %v717 = vadd.f32 %v488, %v716
        %v718 = vpop.f32.mrb[0].mxu0
        %v719 = vpop.f32.mrb[0].mxu0
        %v720 = vadd.f32 %v488, %v719
        %v721 = vpop.f32.mrb[0].mxu0
        %722 = vmatprep.mubr.bf16.mxu0 0
        %723 = vmatmul.mubr.bf16.gmra.mrb[0].mxu0 %v561
        %v724 = vpop.f32.mrb[0].mxu0
        %v725 = vadd.f32 %v488, %v724
        %v726 = vpop.f32.mrb[0].mxu0
        %v727 = vpop.f32.mrb[0].mxu0
        %v728 = vadd.f32 %v488, %v727
        %v729 = vpop.f32.mrb[0].mxu0
        %730 = vmatprep.mubr.bf16.mxu0 0
        %731 = vmatmul.mubr.bf16.gmra.mrb[0].mxu0 %v562
        %v732 = vpop.f32.mrb[0].mxu0
        %v733 = vadd.f32 %v488, %v732
        %v734 = vpop.f32.mrb[0].mxu0
        %v735 = vpop.f32.mrb[0].mxu0
        %v736 = vadd.f32 %v488, %v735
        %v737 = vpop.f32.mrb[0].mxu0
        %738 = vmatprep.mubr.bf16.mxu0 0
        %739 = vmatmul.mubr.bf16.gmra.mrb[0].mxu0 %v563
        %v740 = vpop.f32.mrb[0].mxu0
        %v741 = vadd.f32 %v488, %v740
        %v742 = vpop.f32.mrb[0].mxu0
        %v743 = vpop.f32.mrb[0].mxu0
        %v744 = vadd.f32 %v488, %v743
        %v745 = vpop.f32.mrb[0].mxu0
        %746 = vmatprep.mubr.bf16.mxu0 0
        %747 = vmatmul.mubr.bf16.gmra.mrb[0].mxu0 %v564
        %v748 = vpop.f32.mrb[0].mxu0
        %v749 = vadd.f32 %v488, %v748
        %v750 = vpop.f32.mrb[0].mxu0
        %v751 = vpop.f32.mrb[0].mxu0
        %v752 = vadd.f32 %v488, %v751
        %v753 = vpop.f32.mrb[0].mxu0
        %754 = vmatprep.mubr.bf16.mxu0 0
        %755 = vmatmul.mubr.bf16.gmra.mrb[0].mxu0 %v565
        %v756 = vpop.f32.mrb[0].mxu0
        %v757 = vadd.f32 %v488, %v756
        %v758 = vpop.f32.mrb[0].mxu0
        %v759 = vpop.f32.mrb[0].mxu0
        %v760 = vadd.f32 %v488, %v759
        %v761 = vpop.f32.mrb[0].mxu0
        %762 = vmatprep.mubr.bf16.mxu0 0
        %763 = vmatmul.mubr.bf16.gmra.mrb[0].mxu0 %v566
        %v764 = vpop.f32.mrb[0].mxu0
        %v765 = vadd.f32 %v488, %v764
        %v766 = vpop.f32.mrb[0].mxu0
        %v767 = vpop.f32.mrb[0].mxu0
        %v768 = vadd.f32 %v488, %v767
        %v769 = vpop.f32.mrb[0].mxu0
        %770 = vmatprep.mubr.bf16.mxu0 0
        %771 = vmatmul.mubr.bf16.gmra.mrb[0].mxu0 %v567
        %v772 = vpop.f32.mrb[0].mxu0
        %v773 = vadd.f32 %v488, %v772
        %v774 = vpop.f32.mrb[0].mxu0
        %v775 = vpop.f32.mrb[0].mxu0
        %v776 = vadd.f32 %v488, %v775
        %v777 = vpop.f32.mrb[0].mxu0
        %778 = vmatprep.mubr.bf16.mxu0 0
        %779 = vmatmul.mubr.bf16.gmra.mrb[0].mxu0 %v568
        %v780 = vpop.f32.mrb[0].mxu0
        %v781 = vadd.f32 %v488, %v780
        %v782 = vpop.f32.mrb[0].mxu0
        %v783 = vpop.f32.mrb[0].mxu0
        %v784 = vadd.f32 %v488, %v783
        %v785 = vpop.f32.mrb[0].mxu0
        %786 = vmatprep.mubr.bf16.mxu0 0
        %787 = vmatmul.mubr.bf16.gmra.mrb[0].mxu0 %v569
        %v788 = vpop.f32.mrb[0].mxu0
        %v789 = vadd.f32 %v488, %v788
        %v790 = vpop.f32.mrb[0].mxu0
        %v791 = vpop.f32.mrb[0].mxu0
        %v792 = vadd.f32 %v488, %v791
        %v793 = vpop.f32.mrb[0].mxu0
        %794 = vdwg.mxu0
        %v795 = vmax.f32 %v669, 0.0
        %v796 = vmax.f32 %v672, 0.0
        %v797 = vmax.f32 %v677, 0.0
        %v798 = vmax.f32 %v680, 0.0
        %v799 = vmax.f32 %v685, 0.0
        %v800 = vmax.f32 %v688, 0.0
        %v801 = vmax.f32 %v693, 0.0
        %v802 = vmax.f32 %v696, 0.0
        %v803 = vmax.f32 %v701, 0.0
        %v804 = vmax.f32 %v704, 0.0
        %v805 = vmax.f32 %v709, 0.0
        %v806 = vmax.f32 %v712, 0.0
        %v807 = vmax.f32 %v717, 0.0
        %v808 = vmax.f32 %v720, 0.0
        %v809 = vmax.f32 %v725, 0.0
        %v810 = vmax.f32 %v728, 0.0
        %v811 = vmax.f32 %v733, 0.0
        %v812 = vmax.f32 %v736, 0.0
        %v813 = vmax.f32 %v741, 0.0
        %v814 = vmax.f32 %v744, 0.0
        %v815 = vmax.f32 %v749, 0.0
        %v816 = vmax.f32 %v752, 0.0
        %v817 = vmax.f32 %v757, 0.0
        %v818 = vmax.f32 %v760, 0.0
        %v819 = vmax.f32 %v765, 0.0
        %v820 = vmax.f32 %v768, 0.0
        %v821 = vmax.f32 %v773, 0.0
        %v822 = vmax.f32 %v776, 0.0
        %v823 = vmax.f32 %v781, 0.0
        %v824 = vmax.f32 %v784, 0.0
        %v825 = vmax.f32 %v789, 0.0
        %v826 = vmax.f32 %v792, 0.0
        %v827 = vpack.c.bf16 %v796, %v795
        %v828 = vpack.c.bf16 %v798, %v797
        %v829 = vpack.c.bf16 %v800, %v799
        %v830 = vpack.c.bf16 %v802, %v801
        %v831 = vpack.c.bf16 %v804, %v803
        %v832 = vpack.c.bf16 %v806, %v805
        %v833 = vpack.c.bf16 %v808, %v807
        %v834 = vpack.c.bf16 %v810, %v809
        %v835 = vpack.c.bf16 %v812, %v811
        %v836 = vpack.c.bf16 %v814, %v813
        %v837 = vpack.c.bf16 %v816, %v815
        %v838 = vpack.c.bf16 %v818, %v817
        %v839 = vpack.c.bf16 %v820, %v819
        %v840 = vpack.c.bf16 %v822, %v821
        %v841 = vpack.c.bf16 %v824, %v823
        %v842 = vpack.c.bf16 %v826, %v825
        %v844 = vunpack.c.l.b16 %v827
        %v845 = vunpack.c.h.b16 %v827
        %v846 = vpack.c.b16 %v844, %v844
        %v847 = vpack.c.b16 %v845, %v845
        %vm848 = vsmask.f32 1280
        %vm849 = vsmask.f32 5392
        %vm850 = vmor %vm848, %vm849
        %v852 = vshrl.u32 %v846, 16
        %v854 = vrot.slane %v852, 6
        %v855 = vshll.u32 %v846, 16
        %v857 = vrot.slane %v855, 7
        %v858 = vor.u32 %v854, %v857
        %v859 = vrot.slane %v858, 4
        %v861 = vshrl.u32 %v847, 16
        %v863 = vrot.slane %v861, 6
        %v864 = vshll.u32 %v847, 16
        %v866 = vrot.slane %v864, 7
        %v867 = vor.u32 %v863, %v866
        %v868 = vsel %vm850, %v859, %v867
        %v869 = vrot.slane %v867, 4
        %vm873 = vcmask 1043457
        %vm874 = vsmask.f32 7942
        %vm875 = vmand %vm873, %vm874
        %v876 = vld [vmem:[#allocation2 + $0x8] sm:$0xe]
        %v877 = vsel %vm875, %v858, %v876
        %878 = vst [vmem:[#allocation2 + $0x8] sm:$0xe] %v877
        %879 = vst [vmem:[#allocation2 + $0xc] sm:$0xf] %v868
        %vm880 = vcmask 1041408
        %vm881 = vmand %vm880, %vm848
        %v882 = vld [vmem:[#allocation2 + $0x10] sm:$0x3]
        %v883 = vsel %vm881, %v869, %v882
        %884 = vst [vmem:[#allocation2 + $0x10] sm:$0x3] %v883
        %v886 = vunpack.c.l.b16 %v828
        %v887 = vunpack.c.h.b16 %v828
        %v888 = vpack.c.b16 %v886, %v886
        %v889 = vpack.c.b16 %v887, %v887
        %vm890 = vsmask.f32 2304
        %vm891 = vsmask.f32 6416
        %vm892 = vmor %vm890, %vm891
        %v894 = vshrl.u32 %v888, 16
        %v896 = vrot.slane %v894, 5
        %v897 = vshll.u32 %v888, 16
        %v899 = vrot.slane %v897, 6
        %v900 = vor.u32 %v896, %v899
        %v901 = vrot.slane %v900, 4
        %v903 = vshrl.u32 %v889, 16
        %v905 = vrot.slane %v903, 5
        %v906 = vshll.u32 %v889, 16
        %v908 = vrot.slane %v906, 6
        %v909 = vor.u32 %v905, %v908
        %v910 = vsel %vm892, %v901, %v909
        %v911 = vrot.slane %v909, 4
        %vm915 = vcmask 1043458
        %vm916 = vsmask.f32 7946
        %vm917 = vmand %vm915, %vm916
        %v918 = vld [vmem:[#allocation2 + $0x10] sm:$0xc]
        %v919 = vsel %vm917, %v900, %v918
        %920 = vst [vmem:[#allocation2 + $0x10] sm:$0xc] %v919
        %921 = vst [vmem:[#allocation2 + $0x14] sm:$0xf] %v910
        %vm922 = vcmask 1042432
        %vm923 = vmand %vm922, %vm890
        %v924 = vld [vmem:[#allocation2 + $0x18] sm:$0x7]
        %v925 = vsel %vm923, %v911, %v924
        %926 = vst [vmem:[#allocation2 + $0x18] sm:$0x7] %v925
        %v928 = vunpack.c.l.b16 %v829
        %v929 = vunpack.c.h.b16 %v829
        %v930 = vpack.c.b16 %v928, %v928
        %v931 = vpack.c.b16 %v929, %v929
        %vm932 = vsmask.f32 3328
        %vm933 = vsmask.f32 7440
        %vm934 = vmor %vm932, %vm933
        %v936 = vshll.u32 %v930, 16
        %v938 = vrot.slane %v936, 5
        %v939 = vshrl.u32 %v930, 16
        %v941 = vrot.slane %v939, 4
        %v942 = vor.u32 %v941, %v938
        %v943 = vrot.slane %v942, 4
        %v945 = vshll.u32 %v931, 16
        %v947 = vrot.slane %v945, 5
        %v948 = vsel %vm934, %v943, %v947
        %v949 = vshrl.u32 %v931, 16
        %v951 = vrot.slane %v949, 4
        %v952 = vor.u32 %v951, %v947
        %v953 = vrot.slane %v952, 4
        %vm957 = vcmask 1043459
        %vm958 = vsmask.f32 7950
        %vm959 = vmand %vm957, %vm958
        %v960 = vld [vmem:[#allocation2 + $0x18] sm:$0x8]
        %v961 = vsel %vm959, %v938, %v960
        %962 = vst [vmem:[#allocation2 + $0x18] sm:$0x8] %v961
        %963 = vst [vmem:[#allocation2 + $0x1c] sm:$0xf] %v948
        %vm964 = vcmask 1043456
        %vm965 = vmand %vm964, %vm932
        %v966 = vld [vmem:[#allocation2 + $0x20] sm:$0xf]
        %v967 = vsel %vm965, %v953, %v966
        %968 = vst [vmem:[#allocation2 + $0x20] sm:$0xf] %v967
        %v970 = vunpack.c.l.b16 %v830
        %v971 = vunpack.c.h.b16 %v830
        %v972 = vpack.c.b16 %v970, %v970
        %v973 = vpack.c.b16 %v971, %v971
        %vm974 = vsmask.f32 256
        %vm975 = vsmask.f32 4368
        %vm976 = vmor %vm974, %vm975
        %v978 = vshrl.u32 %v972, 16
        %v980 = vrot.slane %v978, 7
        %v981 = vshll.u32 %v972, 16
        %v983 = vor.u32 %v980, %v981
        %v984 = vrot.slane %v980, 4
        %v986 = vshrl.u32 %v973, 16
        %v988 = vrot.slane %v986, 7
        %v989 = vshll.u32 %v973, 16
        %v991 = vor.u32 %v988, %v989
        %v992 = vsel %vm976, %v984, %v991
        %v993 = vrot.slane %v988, 4
        %vm997 = vsmask.f32 7938
        %vm998 = vmand %vm964, %vm997
        %v999 = vld [vmem:[#allocation2 + $0x24] sm:$0xf]
        %v1000 = vsel %vm998, %v983, %v999
        %1001 = vst [vmem:[#allocation2 + $0x24] sm:$0xf] %v1000
        %1002 = vst [vmem:[#allocation2 + $0x28] sm:$0xf] %v992
        %vm1003 = vcmask 1040384
        %vm1004 = vmand %vm1003, %vm974
        %v1005 = vld [vmem:[#allocation2 + $0x2c] sm:$0x1]
        %v1006 = vsel %vm1004, %v993, %v1005
        %1007 = vst [vmem:[#allocation2 + $0x2c] sm:$0x1] %v1006
        %v1009 = vunpack.c.l.b16 %v831
        %v1010 = vunpack.c.h.b16 %v831
        %v1011 = vpack.c.b16 %v1009, %v1009
        %v1012 = vpack.c.b16 %v1010, %v1010
        %v1014 = vshrl.u32 %v1011, 16
        %v1016 = vrot.slane %v1014, 6
        %v1017 = vshll.u32 %v1011, 16
        %v1019 = vrot.slane %v1017, 7
        %v1020 = vor.u32 %v1016, %v1019
        %v1021 = vrot.slane %v1020, 4
        %v1023 = vshrl.u32 %v1012, 16
        %v1025 = vrot.slane %v1023, 6
        %v1026 = vshll.u32 %v1012, 16
        %v1028 = vrot.slane %v1026, 7
        %v1029 = vor.u32 %v1025, %v1028
        %v1030 = vsel %vm850, %v1021, %v1029
        %v1031 = vrot.slane %v1029, 4
        %v1035 = vld [vmem:[#allocation2 + $0x2c] sm:$0xe]
        %v1036 = vsel %vm875, %v1020, %v1035
        %1037 = vst [vmem:[#allocation2 + $0x2c] sm:$0xe] %v1036
        %1038 = vst [vmem:[#allocation2 + $0x30] sm:$0xf] %v1030
        %v1039 = vld [vmem:[#allocation2 + $0x34] sm:$0x3]
        %v1040 = vsel %vm881, %v1031, %v1039
        %1041 = vst [vmem:[#allocation2 + $0x34] sm:$0x3] %v1040
        %v1043 = vunpack.c.l.b16 %v832
        %v1044 = vunpack.c.h.b16 %v832
        %v1045 = vpack.c.b16 %v1043, %v1043
        %v1046 = vpack.c.b16 %v1044, %v1044
        %v1048 = vshrl.u32 %v1045, 16
        %v1050 = vrot.slane %v1048, 5
        %v1051 = vshll.u32 %v1045, 16
        %v1053 = vrot.slane %v1051, 6
        %v1054 = vor.u32 %v1050, %v1053
        %v1055 = vrot.slane %v1054, 4
        %v1057 = vshrl.u32 %v1046, 16
        %v1059 = vrot.slane %v1057, 5
        %v1060 = vshll.u32 %v1046, 16
        %v1062 = vrot.slane %v1060, 6
        %v1063 = vor.u32 %v1059, %v1062
        %v1064 = vsel %vm892, %v1055, %v1063
        %v1065 = vrot.slane %v1063, 4
        %v1069 = vld [vmem:[#allocation2 + $0x34] sm:$0xc]
        %v1070 = vsel %vm917, %v1054, %v1069
        %1071 = vst [vmem:[#allocation2 + $0x34] sm:$0xc] %v1070
        %1072 = vst [vmem:[#allocation2 + $0x38] sm:$0xf] %v1064
        %v1073 = vld [vmem:[#allocation2 + $0x3c] sm:$0x7]
        %v1074 = vsel %vm923, %v1065, %v1073
        %1075 = vst [vmem:[#allocation2 + $0x3c] sm:$0x7] %v1074
        %v1077 = vunpack.c.l.b16 %v833
        %v1078 = vunpack.c.h.b16 %v833
        %v1079 = vpack.c.b16 %v1077, %v1077
        %v1080 = vpack.c.b16 %v1078, %v1078
        %v1082 = vshll.u32 %v1079, 16
        %v1084 = vrot.slane %v1082, 5
        %v1085 = vshrl.u32 %v1079, 16
        %v1087 = vrot.slane %v1085, 4
        %v1088 = vor.u32 %v1087, %v1084
        %v1089 = vrot.slane %v1088, 4
        %v1091 = vshll.u32 %v1080, 16
        %v1093 = vrot.slane %v1091, 5
        %v1094 = vsel %vm934, %v1089, %v1093
        %v1095 = vshrl.u32 %v1080, 16
        %v1097 = vrot.slane %v1095, 4
        %v1098 = vor.u32 %v1097, %v1093
        %v1099 = vrot.slane %v1098, 4
        %v1103 = vld [vmem:[#allocation2 + $0x3c] sm:$0x8]
        %v1104 = vsel %vm959, %v1084, %v1103
        %1105 = vst [vmem:[#allocation2 + $0x3c] sm:$0x8] %v1104
        %1106 = vst [vmem:[#allocation2 + $0x40] sm:$0xf] %v1094
        %v1107 = vld [vmem:[#allocation2 + $0x44] sm:$0xf]
        %v1108 = vsel %vm965, %v1099, %v1107
        %1109 = vst [vmem:[#allocation2 + $0x44] sm:$0xf] %v1108
        %v1111 = vunpack.c.l.b16 %v834
        %v1112 = vunpack.c.h.b16 %v834
        %v1113 = vpack.c.b16 %v1111, %v1111
        %v1114 = vpack.c.b16 %v1112, %v1112
        %v1116 = vshrl.u32 %v1113, 16
        %v1118 = vrot.slane %v1116, 7
        %v1119 = vshll.u32 %v1113, 16
        %v1121 = vor.u32 %v1118, %v1119
        %v1122 = vrot.slane %v1118, 4
        %v1124 = vshrl.u32 %v1114, 16
        %v1126 = vrot.slane %v1124, 7
        %v1127 = vshll.u32 %v1114, 16
        %v1129 = vor.u32 %v1126, %v1127
        %v1130 = vsel %vm976, %v1122, %v1129
        %v1131 = vrot.slane %v1126, 4
        %v1135 = vld [vmem:[#allocation2 + $0x48] sm:$0xf]
        %v1136 = vsel %vm998, %v1121, %v1135
        %1137 = vst [vmem:[#allocation2 + $0x48] sm:$0xf] %v1136
        %1138 = vst [vmem:[#allocation2 + $0x4c] sm:$0xf] %v1130
        %v1139 = vld [vmem:[#allocation2 + $0x50] sm:$0x1]
        %v1140 = vsel %vm1004, %v1131, %v1139
        %1141 = vst [vmem:[#allocation2 + $0x50] sm:$0x1] %v1140
        %v1143 = vunpack.c.l.b16 %v835
        %v1144 = vunpack.c.h.b16 %v835
        %v1145 = vpack.c.b16 %v1143, %v1143
        %v1146 = vpack.c.b16 %v1144, %v1144
        %v1148 = vshrl.u32 %v1145, 16
        %v1150 = vrot.slane %v1148, 6
        %v1151 = vshll.u32 %v1145, 16
        %v1153 = vrot.slane %v1151, 7
        %v1154 = vor.u32 %v1150, %v1153
        %v1155 = vrot.slane %v1154, 4
        %v1157 = vshrl.u32 %v1146, 16
        %v1159 = vrot.slane %v1157, 6
        %v1160 = vshll.u32 %v1146, 16
        %v1162 = vrot.slane %v1160, 7
        %v1163 = vor.u32 %v1159, %v1162
        %v1164 = vsel %vm850, %v1155, %v1163
        %v1165 = vrot.slane %v1163, 4
        %v1169 = vld [vmem:[#allocation2 + $0x50] sm:$0xe]
        %v1170 = vsel %vm875, %v1154, %v1169
        %1171 = vst [vmem:[#allocation2 + $0x50] sm:$0xe] %v1170
        %1172 = vst [vmem:[#allocation2 + $0x54] sm:$0xf] %v1164
        %v1173 = vld [vmem:[#allocation2 + $0x58] sm:$0x3]
        %v1174 = vsel %vm881, %v1165, %v1173
        %1175 = vst [vmem:[#allocation2 + $0x58] sm:$0x3] %v1174
        %v1177 = vunpack.c.l.b16 %v836
        %v1178 = vunpack.c.h.b16 %v836
        %v1179 = vpack.c.b16 %v1177, %v1177
        %v1180 = vpack.c.b16 %v1178, %v1178
        %v1182 = vshrl.u32 %v1179, 16
        %v1184 = vrot.slane %v1182, 5
        %v1185 = vshll.u32 %v1179, 16
        %v1187 = vrot.slane %v1185, 6
        %v1188 = vor.u32 %v1184, %v1187
        %v1189 = vrot.slane %v1188, 4
        %v1191 = vshrl.u32 %v1180, 16
        %v1193 = vrot.slane %v1191, 5
        %v1194 = vshll.u32 %v1180, 16
        %v1196 = vrot.slane %v1194, 6
        %v1197 = vor.u32 %v1193, %v1196
        %v1198 = vsel %vm892, %v1189, %v1197
        %v1199 = vrot.slane %v1197, 4
        %v1203 = vld [vmem:[#allocation2 + $0x58] sm:$0xc]
        %v1204 = vsel %vm917, %v1188, %v1203
        %1205 = vst [vmem:[#allocation2 + $0x58] sm:$0xc] %v1204
        %1206 = vst [vmem:[#allocation2 + $0x5c] sm:$0xf] %v1198
        %v1207 = vld [vmem:[#allocation2 + $0x60] sm:$0x7]
        %v1208 = vsel %vm923, %v1199, %v1207
        %1209 = vst [vmem:[#allocation2 + $0x60] sm:$0x7] %v1208
        %v1211 = vunpack.c.l.b16 %v837
        %v1212 = vunpack.c.h.b16 %v837
        %v1213 = vpack.c.b16 %v1211, %v1211
        %v1214 = vpack.c.b16 %v1212, %v1212
        %v1216 = vshll.u32 %v1213, 16
        %v1218 = vrot.slane %v1216, 5
        %v1219 = vshrl.u32 %v1213, 16
        %v1221 = vrot.slane %v1219, 4
        %v1222 = vor.u32 %v1221, %v1218
        %v1223 = vrot.slane %v1222, 4
        %v1225 = vshll.u32 %v1214, 16
        %v1227 = vrot.slane %v1225, 5
        %v1228 = vsel %vm934, %v1223, %v1227
        %v1229 = vshrl.u32 %v1214, 16
        %v1231 = vrot.slane %v1229, 4
        %v1232 = vor.u32 %v1231, %v1227
        %v1233 = vrot.slane %v1232, 4
        %v1237 = vld [vmem:[#allocation2 + $0x60] sm:$0x8]
        %v1238 = vsel %vm959, %v1218, %v1237
        %1239 = vst [vmem:[#allocation2 + $0x60] sm:$0x8] %v1238
        %1240 = vst [vmem:[#allocation2 + $0x64] sm:$0xf] %v1228
        %v1241 = vld [vmem:[#allocation2 + $0x68] sm:$0xf]
        %v1242 = vsel %vm965, %v1233, %v1241
        %1243 = vst [vmem:[#allocation2 + $0x68] sm:$0xf] %v1242
        %v1245 = vunpack.c.l.b16 %v838
        %v1246 = vunpack.c.h.b16 %v838
        %v1247 = vpack.c.b16 %v1245, %v1245
        %v1248 = vpack.c.b16 %v1246, %v1246
        %v1250 = vshrl.u32 %v1247, 16
        %v1252 = vrot.slane %v1250, 7
        %v1253 = vshll.u32 %v1247, 16
        %v1255 = vor.u32 %v1252, %v1253
        %v1256 = vrot.slane %v1252, 4
        %v1258 = vshrl.u32 %v1248, 16
        %v1260 = vrot.slane %v1258, 7
        %v1261 = vshll.u32 %v1248, 16
        %v1263 = vor.u32 %v1260, %v1261
        %v1264 = vsel %vm976, %v1256, %v1263
        %v1265 = vrot.slane %v1260, 4
        %v1269 = vld [vmem:[#allocation2 + $0x6c] sm:$0xf]
        %v1270 = vsel %vm998, %v1255, %v1269
        %1271 = vst [vmem:[#allocation2 + $0x6c] sm:$0xf] %v1270
        %1272 = vst [vmem:[#allocation2 + $0x70] sm:$0xf] %v1264
        %v1273 = vld [vmem:[#allocation2 + $0x74] sm:$0x1]
        %v1274 = vsel %vm1004, %v1265, %v1273
        %1275 = vst [vmem:[#allocation2 + $0x74] sm:$0x1] %v1274
        %v1277 = vunpack.c.l.b16 %v839
        %v1278 = vunpack.c.h.b16 %v839
        %v1279 = vpack.c.b16 %v1277, %v1277
        %v1280 = vpack.c.b16 %v1278, %v1278
        %v1282 = vshrl.u32 %v1279, 16
        %v1284 = vrot.slane %v1282, 6
        %v1285 = vshll.u32 %v1279, 16
        %v1287 = vrot.slane %v1285, 7
        %v1288 = vor.u32 %v1284, %v1287
        %v1289 = vrot.slane %v1288, 4
        %v1291 = vshrl.u32 %v1280, 16
        %v1293 = vrot.slane %v1291, 6
        %v1294 = vshll.u32 %v1280, 16
        %v1296 = vrot.slane %v1294, 7
        %v1297 = vor.u32 %v1293, %v1296
        %v1298 = vsel %vm850, %v1289, %v1297
        %v1299 = vrot.slane %v1297, 4
        %v1303 = vld [vmem:[#allocation2 + $0x74] sm:$0xe]
        %v1304 = vsel %vm875, %v1288, %v1303
        %1305 = vst [vmem:[#allocation2 + $0x74] sm:$0xe] %v1304
        %1306 = vst [vmem:[#allocation2 + $0x78] sm:$0xf] %v1298
        %v1307 = vld [vmem:[#allocation2 + $0x7c] sm:$0x3]
        %v1308 = vsel %vm881, %v1299, %v1307
        %1309 = vst [vmem:[#allocation2 + $0x7c] sm:$0x3] %v1308
        %v1311 = vunpack.c.l.b16 %v840
        %v1312 = vunpack.c.h.b16 %v840
        %v1313 = vpack.c.b16 %v1311, %v1311
        %v1314 = vpack.c.b16 %v1312, %v1312
        %v1316 = vshrl.u32 %v1313, 16
        %v1318 = vrot.slane %v1316, 5
        %v1319 = vshll.u32 %v1313, 16
        %v1321 = vrot.slane %v1319, 6
        %v1322 = vor.u32 %v1318, %v1321
        %v1323 = vrot.slane %v1322, 4
        %v1325 = vshrl.u32 %v1314, 16
        %v1327 = vrot.slane %v1325, 5
        %v1328 = vshll.u32 %v1314, 16
        %v1330 = vrot.slane %v1328, 6
        %v1331 = vor.u32 %v1327, %v1330
        %v1332 = vsel %vm892, %v1323, %v1331
        %v1333 = vrot.slane %v1331, 4
        %v1337 = vld [vmem:[#allocation2 + $0x7c] sm:$0xc]
        %v1338 = vsel %vm917, %v1322, %v1337
        %1339 = vst [vmem:[#allocation2 + $0x7c] sm:$0xc] %v1338
        %1340 = vst [vmem:[#allocation2 + $0x80] sm:$0xf] %v1332
        %v1341 = vld [vmem:[#allocation2 + $0x84] sm:$0x7]
        %v1342 = vsel %vm923, %v1333, %v1341
        %1343 = vst [vmem:[#allocation2 + $0x84] sm:$0x7] %v1342
        %v1345 = vunpack.c.l.b16 %v841
        %v1346 = vunpack.c.h.b16 %v841
        %v1347 = vpack.c.b16 %v1345, %v1345
        %v1348 = vpack.c.b16 %v1346, %v1346
        %v1350 = vshll.u32 %v1347, 16
        %v1352 = vrot.slane %v1350, 5
        %v1353 = vshrl.u32 %v1347, 16
        %v1355 = vrot.slane %v1353, 4
        %v1356 = vor.u32 %v1355, %v1352
        %v1357 = vrot.slane %v1356, 4
        %v1359 = vshll.u32 %v1348, 16
        %v1361 = vrot.slane %v1359, 5
        %v1362 = vsel %vm934, %v1357, %v1361
        %v1363 = vshrl.u32 %v1348, 16
        %v1365 = vrot.slane %v1363, 4
        %v1366 = vor.u32 %v1365, %v1361
        %v1367 = vrot.slane %v1366, 4
        %v1371 = vld [vmem:[#allocation2 + $0x84] sm:$0x8]
        %v1372 = vsel %vm959, %v1352, %v1371
        %1373 = vst [vmem:[#allocation2 + $0x84] sm:$0x8] %v1372
        %1374 = vst [vmem:[#allocation2 + $0x88] sm:$0xf] %v1362
        %v1375 = vld [vmem:[#allocation2 + $0x8c] sm:$0xf]
        %v1376 = vsel %vm965, %v1367, %v1375
        %1377 = vst [vmem:[#allocation2 + $0x8c] sm:$0xf] %v1376
        %v1379 = vunpack.c.l.b16 %v842
        %v1380 = vunpack.c.h.b16 %v842
        %v1381 = vpack.c.b16 %v1379, %v1379
        %v1382 = vpack.c.b16 %v1380, %v1380
        %v1384 = vshrl.u32 %v1381, 16
        %v1386 = vrot.slane %v1384, 7
        %v1387 = vshll.u32 %v1381, 16
        %v1389 = vor.u32 %v1386, %v1387
        %v1390 = vrot.slane %v1386, 4
        %v1392 = vshrl.u32 %v1382, 16
        %v1394 = vrot.slane %v1392, 7
        %v1395 = vshll.u32 %v1382, 16
        %v1397 = vor.u32 %v1394, %v1395
        %v1398 = vsel %vm976, %v1390, %v1397
        %v1399 = vrot.slane %v1394, 4
        %v1403 = vld [vmem:[#allocation2 + $0x90] sm:$0xf]
        %v1404 = vsel %vm998, %v1389, %v1403
        %1405 = vst [vmem:[#allocation2 + $0x90] sm:$0xf] %v1404
        %1406 = vst [vmem:[#allocation2 + $0x94] sm:$0xf] %v1398
        %v1407 = vld [vmem:[#allocation2 + $0x98] sm:$0x1]
        %v1408 = vsel %vm1004, %v1399, %v1407
        %1409 = vst [vmem:[#allocation2 + $0x98] sm:$0x1] %v1408
        %v1410 = vld [vmem:[#allocation2] sm:$0xf]
        %v1411 = vld [vmem:[#allocation2 + $0x4] sm:$0xf]
        %v1412 = vld [vmem:[#allocation2 + $0x8] sm:$0xf]
        %v1413 = vld [vmem:[#allocation2 + $0xc] sm:$0xf]
        %v1414 = vld [vmem:[#allocation2 + $0x10] sm:$0xf]
        %v1415 = vld [vmem:[#allocation2 + $0x14] sm:$0xf]
        %v1416 = vld [vmem:[#allocation2 + $0x18] sm:$0xf]
        %v1417 = vld [vmem:[#allocation2 + $0x1c] sm:$0xf]
        %v1418 = vld [vmem:[#allocation2 + $0x20] sm:$0xf]
        %v1419 = vld [vmem:[#allocation2 + $0x24] sm:$0xf]
        %v1420 = vld [vmem:[#allocation2 + $0x28] sm:$0xf]
        %v1421 = vld [vmem:[#allocation2 + $0x2c] sm:$0xf]
        %v1422 = vld [vmem:[#allocation2 + $0x30] sm:$0xf]
        %v1423 = vld [vmem:[#allocation2 + $0x34] sm:$0xf]
        %v1424 = vld [vmem:[#allocation2 + $0x38] sm:$0xf]
        %v1425 = vld [vmem:[#allocation2 + $0x3c] sm:$0xf]
        %v1426 = vld [vmem:[#allocation2 + $0x40] sm:$0xf]
        %v1427 = vld [vmem:[#allocation2 + $0x44] sm:$0xf]
        %v1428 = vld [vmem:[#allocation2 + $0x48] sm:$0xf]
        %v1429 = vld [vmem:[#allocation2 + $0x4c] sm:$0xf]
        %v1430 = vld [vmem:[#allocation2 + $0x50] sm:$0xf]
        %v1431 = vld [vmem:[#allocation2 + $0x54] sm:$0xf]
        %v1432 = vld [vmem:[#allocation2 + $0x58] sm:$0xf]
        %v1433 = vld [vmem:[#allocation2 + $0x5c] sm:$0xf]
        %v1434 = vld [vmem:[#allocation2 + $0x60] sm:$0xf]
        %v1435 = vld [vmem:[#allocation2 + $0x64] sm:$0xf]
        %v1436 = vld [vmem:[#allocation2 + $0x68] sm:$0xf]
        %v1437 = vld [vmem:[#allocation2 + $0x6c] sm:$0xf]
        %v1438 = vld [vmem:[#allocation2 + $0x70] sm:$0xf]
        %v1439 = vld [vmem:[#allocation2 + $0x74] sm:$0xf]
        %v1440 = vld [vmem:[#allocation2 + $0x78] sm:$0xf]
        %v1441 = vld [vmem:[#allocation2 + $0x7c] sm:$0xf]
        %v1442 = vld [vmem:[#allocation2 + $0x80] sm:$0xf]
        %v1443 = vld [vmem:[#allocation2 + $0x84] sm:$0xf]
        %v1444 = vld [vmem:[#allocation2 + $0x88] sm:$0xf]
        %v1445 = vld [vmem:[#allocation2 + $0x8c] sm:$0xf]
        %v1446 = vld [vmem:[%s3] sm:$0xf]
        %v1447 = vld [vmem:[%s3 + $0x4] sm:$0xf]
        %v1448 = vld [vmem:[%s3 + $0x8] sm:$0xf]
        %v1449 = vld [vmem:[%s3 + $0xc] sm:$0xf]
        %v1450 = vld [vmem:[%s3 + $0x10] sm:$0xf]
        %v1451 = vld [vmem:[%s3 + $0x14] sm:$0xf]
        %v1452 = vld [vmem:[%s3 + $0x18] sm:$0xf]
        %v1453 = vld [vmem:[%s3 + $0x1c] sm:$0xf]
        %v1454 = vld [vmem:[%s3 + $0x20] sm:$0xf]
        %v1455 = vld [vmem:[%s3 + $0x24] sm:$0xf]
        %v1456 = vld [vmem:[%s3 + $0x28] sm:$0xf]
        %v1457 = vld [vmem:[%s3 + $0x2c] sm:$0xf]
        %v1458 = vld [vmem:[%s3 + $0x30] sm:$0xf]
        %v1459 = vld [vmem:[%s3 + $0x34] sm:$0xf]
        %v1460 = vld [vmem:[%s3 + $0x38] sm:$0xf]
        %v1461 = vld [vmem:[%s3 + $0x3c] sm:$0xf]
        %v1462 = vld [vmem:[#allocation2 + $0x8] sm:$0xe]
        %v1463 = vld [vmem:[#allocation2 + $0x90] sm:$0xf]
        %v1464 = vld [vmem:[#allocation2 + $0x94] sm:$0xf]
        %v1465 = vld [vmem:[#allocation2 + $0x98] sm:$0x1]
        %s1466 = scalar_lea.vmem %s3, 64
        %v1467 = vld [vmem:[%s1466] sm:$0xf]
        %v1468 = vld [vmem:[%s1466 + $0x4] sm:$0xf]
        %v1469 = vld [vmem:[%s1466 + $0x8] sm:$0xf]
        %v1470 = vld [vmem:[%s1466 + $0xc] sm:$0xf]
        %v1471 = vld [vmem:[%s1466 + $0x10] sm:$0xf]
        %v1472 = vld [vmem:[%s1466 + $0x14] sm:$0xf]
        %v1473 = vld [vmem:[%s1466 + $0x18] sm:$0xf]
        %v1474 = vld [vmem:[%s1466 + $0x1c] sm:$0xf]
        %v1475 = vld [vmem:[%s1466 + $0x20] sm:$0xf]
        %v1476 = vld [vmem:[%s1466 + $0x24] sm:$0xf]
        %v1477 = vld [vmem:[%s1466 + $0x28] sm:$0xf]
        %v1478 = vld [vmem:[%s1466 + $0x2c] sm:$0xf]
        %v1479 = vld [vmem:[%s1466 + $0x30] sm:$0xf]
        %v1480 = vld [vmem:[%s1466 + $0x34] sm:$0xf]
        %v1481 = vld [vmem:[%s1466 + $0x38] sm:$0xf]
        %v1482 = vld [vmem:[%s1466 + $0x3c] sm:$0xf]
        %v1520 = vunpack.c.l.b16 %v1462
        %v1521 = vunpack.c.l.b16 %v1413
        %v1522 = vunpack.c.l.b16 %v1414
        %v1523 = vunpack.c.l.b16 %v1415
        %v1524 = vunpack.c.l.b16 %v1416
        %v1525 = vunpack.c.l.b16 %v1417
        %v1526 = vunpack.c.l.b16 %v1418
        %v1527 = vunpack.c.l.b16 %v1419
        %v1528 = vunpack.c.l.b16 %v1420
        %v1529 = vunpack.c.l.b16 %v1421
        %v1530 = vunpack.c.l.b16 %v1422
        %v1531 = vunpack.c.l.b16 %v1423
        %v1532 = vunpack.c.l.b16 %v1424
        %v1533 = vunpack.c.l.b16 %v1425
        %v1534 = vunpack.c.l.b16 %v1426
        %v1535 = vunpack.c.l.b16 %v1427
        %v1536 = vunpack.c.l.b16 %v1428
        %v1537 = vunpack.c.l.b16 %v1429
        %v1538 = vunpack.c.l.b16 %v1430
        %v1539 = vunpack.c.l.b16 %v1431
        %v1540 = vunpack.c.l.b16 %v1432
        %v1541 = vunpack.c.l.b16 %v1433
        %v1542 = vunpack.c.l.b16 %v1434
        %v1543 = vunpack.c.l.b16 %v1435
        %v1544 = vunpack.c.l.b16 %v1436
        %v1545 = vunpack.c.l.b16 %v1437
        %v1546 = vunpack.c.l.b16 %v1438
        %v1547 = vunpack.c.l.b16 %v1439
        %v1548 = vunpack.c.l.b16 %v1440
        %v1549 = vunpack.c.l.b16 %v1441
        %v1550 = vunpack.c.l.b16 %v1442
        %v1551 = vunpack.c.l.b16 %v1443
        %v1552 = vunpack.c.l.b16 %v1444
        %v1553 = vunpack.c.l.b16 %v1445
        %v1554 = vunpack.c.l.b16 %v1463
        %v1555 = vunpack.c.l.b16 %v1464
        %v1556 = vunpack.c.l.b16 %v1465
        %v1557 = vpack.c.b16 %v1521, %v1520
        %v1558 = vpack.c.b16 %v1523, %v1522
        %v1559 = vpack.c.b16 %v1525, %v1524
        %v1560 = vpack.c.b16 %v1527, %v1526
        %v1561 = vpack.c.b16 %v1529, %v1528
        %v1562 = vpack.c.b16 %v1531, %v1530
        %v1563 = vpack.c.b16 %v1533, %v1532
        %v1564 = vpack.c.b16 %v1535, %v1534
        %v1565 = vpack.c.b16 %v1537, %v1536
        %v1566 = vpack.c.b16 %v1539, %v1538
        %v1567 = vpack.c.b16 %v1541, %v1540
        %v1568 = vpack.c.b16 %v1543, %v1542
        %v1569 = vpack.c.b16 %v1545, %v1544
        %v1570 = vpack.c.b16 %v1547, %v1546
        %v1571 = vpack.c.b16 %v1549, %v1548
        %v1572 = vpack.c.b16 %v1551, %v1550
        %v1573 = vpack.c.b16 %v1553, %v1552
        %v1574 = vpack.c.b16 %v1555, %v1554
        %v1575 = vpack.c.b16 %v1556, %v1556
        %vm1576 = vcmask 1046528
        %v1577 = vrot.slane %v1557, 1
        %v1578 = vrot.slane %v1558, 1
        %v1579 = vsel %vm1576, %v1577, %v1578
        %v1580 = vrot.slane %v1559, 1
        %v1581 = vsel %vm1576, %v1578, %v1580
        %v1582 = vrot.slane %v1560, 1
        %v1583 = vsel %vm1576, %v1580, %v1582
        %v1584 = vrot.slane %v1561, 1
        %v1585 = vsel %vm1576, %v1582, %v1584
        %v1586 = vrot.slane %v1562, 1
        %v1587 = vsel %vm1576, %v1584, %v1586
        %v1588 = vrot.slane %v1563, 1
        %v1589 = vsel %vm1576, %v1586, %v1588
        %v1590 = vrot.slane %v1564, 1
        %v1591 = vsel %vm1576, %v1588, %v1590
        %v1592 = vrot.slane %v1565, 1
        %v1593 = vsel %vm1576, %v1590, %v1592
        %v1594 = vrot.slane %v1566, 1
        %v1595 = vsel %vm1576, %v1592, %v1594
        %v1596 = vrot.slane %v1567, 1
        %v1597 = vsel %vm1576, %v1594, %v1596
        %v1598 = vrot.slane %v1568, 1
        %v1599 = vsel %vm1576, %v1596, %v1598
        %v1600 = vrot.slane %v1569, 1
        %v1601 = vsel %vm1576, %v1598, %v1600
        %v1602 = vrot.slane %v1570, 1
        %v1603 = vsel %vm1576, %v1600, %v1602
        %v1604 = vrot.slane %v1571, 1
        %v1605 = vsel %vm1576, %v1602, %v1604
        %v1606 = vrot.slane %v1572, 1
        %v1607 = vsel %vm1576, %v1604, %v1606
        %v1608 = vrot.slane %v1573, 1
        %v1609 = vsel %vm1576, %v1606, %v1608
        %v1610 = vrot.slane %v1574, 1
        %v1611 = vsel %vm1576, %v1608, %v1610
        %v1612 = vrot.slane %v1575, 1
        %v1613 = vsel %vm1576, %v1610, %v1612
        %v1648 = vunpack.c.l.b16 %v1467
        %v1649 = vunpack.c.l.b16 %v1468
        %v1650 = vunpack.c.l.b16 %v1469
        %v1651 = vunpack.c.l.b16 %v1470
        %v1652 = vunpack.c.l.b16 %v1471
        %v1653 = vunpack.c.l.b16 %v1472
        %v1654 = vunpack.c.l.b16 %v1473
        %v1655 = vunpack.c.l.b16 %v1474
        %v1656 = vunpack.c.l.b16 %v1475
        %v1657 = vunpack.c.l.b16 %v1476
        %v1658 = vunpack.c.l.b16 %v1477
        %v1659 = vunpack.c.l.b16 %v1478
        %v1660 = vunpack.c.l.b16 %v1479
        %v1661 = vunpack.c.l.b16 %v1480
        %v1662 = vunpack.c.l.b16 %v1481
        %v1663 = vunpack.c.l.b16 %v1482
        %v1664 = vpack.c.b16 %v1649, %v1648
        %v1665 = vpack.c.b16 %v1651, %v1650
        %v1666 = vpack.c.b16 %v1653, %v1652
        %v1667 = vpack.c.b16 %v1655, %v1654
        %v1668 = vpack.c.b16 %v1657, %v1656
        %v1669 = vpack.c.b16 %v1659, %v1658
        %v1670 = vpack.c.b16 %v1661, %v1660
        %v1671 = vpack.c.b16 %v1663, %v1662
        %1680 = vmatprep.subr.bf16.mxu0 0
        %1681 = vmatpush1.bf16.msra.mxu0 %v1664
        %1682 = vmatprep.subr.bf16.mxu0 0
        %1683 = vmatpush1.bf16.msra.mxu0 %v1665
        %1684 = vmatprep.subr.bf16.mxu0 0
        %1685 = vmatpush1.bf16.msra.mxu0 %v1666
        %1686 = vmatprep.subr.bf16.mxu0 0
        %1687 = vmatpush1.bf16.msra.mxu0 %v1667
        %1688 = vmatprep.subr.bf16.mxu0 0
        %1689 = vmatpush1.bf16.msra.mxu0 %v1668
        %1690 = vmatprep.subr.bf16.mxu0 0
        %1691 = vmatpush1.bf16.msra.mxu0 %v1669
        %1692 = vmatprep.subr.bf16.mxu0 0
        %1693 = vmatpush1.bf16.msra.mxu0 %v1670
        %1694 = vmatprep.subr.bf16.mxu0 0
        %1695 = vmatpush1.bf16.msra.mxu0 %v1671
        %1696 = vmatprep.subr.bf16.mxu0 0
        %1697 = vmatpush1.bf16.msra.mxu0 0
        %1698 = vmatprep.subr.bf16.mxu0 0
        %1699 = vmatpush1.bf16.msra.mxu0 0
        %1700 = vmatprep.subr.bf16.mxu0 0
        %1701 = vmatpush1.bf16.msra.mxu0 0
        %1702 = vmatprep.subr.bf16.mxu0 0
        %1703 = vmatpush1.bf16.msra.mxu0 0
        %1704 = vmatprep.subr.bf16.mxu0 0
        %1705 = vmatpush1.bf16.msra.mxu0 0
        %1706 = vmatprep.subr.bf16.mxu0 0
        %1707 = vmatpush1.bf16.msra.mxu0 0
        %1708 = vmatprep.subr.bf16.mxu0 0
        %1709 = vmatpush1.bf16.msra.mxu0 0
        %1710 = vmatprep.subr.bf16.mxu0 0
        %1711 = vmatpush1.bf16.msra.mxu0 0
        %1712 = vmatprep.mubr.bf16.mxu0 0
        %1713 = vmatmul.mubr.bf16.gmra.mrb[0].mxu0 %v1579
        %v1714 = vpop.f32.mrb[0].mxu0
        %v1715 = vadd.f32 0.0, %v1714
        %v1716 = vpop.f32.mrb[0].mxu0
        %v1717 = vpop.f32.mrb[0].mxu0
        %v1718 = vadd.f32 0.0, %v1717
        %v1719 = vpop.f32.mrb[0].mxu0
        %1720 = vmatprep.mubr.bf16.mxu0 0
        %1721 = vmatmul.mubr.bf16.gmra.mrb[0].mxu0 %v1581
        %v1722 = vpop.f32.mrb[0].mxu0
        %v1723 = vadd.f32 0.0, %v1722
        %v1724 = vpop.f32.mrb[0].mxu0
        %v1725 = vpop.f32.mrb[0].mxu0
        %v1726 = vadd.f32 0.0, %v1725
        %v1727 = vpop.f32.mrb[0].mxu0
        %1728 = vmatprep.mubr.bf16.mxu0 0
        %1729 = vmatmul.mubr.bf16.gmra.mrb[0].mxu0 %v1583
        %v1730 = vpop.f32.mrb[0].mxu0
        %v1731 = vadd.f32 0.0, %v1730
        %v1732 = vpop.f32.mrb[0].mxu0
        %v1733 = vpop.f32.mrb[0].mxu0
        %v1734 = vadd.f32 0.0, %v1733
        %v1735 = vpop.f32.mrb[0].mxu0
        %1736 = vmatprep.mubr.bf16.mxu0 0
        %1737 = vmatmul.mubr.bf16.gmra.mrb[0].mxu0 %v1585
        %v1738 = vpop.f32.mrb[0].mxu0
        %v1739 = vadd.f32 0.0, %v1738
        %v1740 = vpop.f32.mrb[0].mxu0
        %v1741 = vpop.f32.mrb[0].mxu0
        %v1742 = vadd.f32 0.0, %v1741
        %v1743 = vpop.f32.mrb[0].mxu0
        %1744 = vmatprep.mubr.bf16.mxu0 0
        %1745 = vmatmul.mubr.bf16.gmra.mrb[0].mxu0 %v1587
        %v1746 = vpop.f32.mrb[0].mxu0
        %v1747 = vadd.f32 0.0, %v1746
        %v1748 = vpop.f32.mrb[0].mxu0
        %v1749 = vpop.f32.mrb[0].mxu0
        %v1750 = vadd.f32 0.0, %v1749
        %v1751 = vpop.f32.mrb[0].mxu0
        %1752 = vmatprep.mubr.bf16.mxu0 0
        %1753 = vmatmul.mubr.bf16.gmra.mrb[0].mxu0 %v1589
        %v1754 = vpop.f32.mrb[0].mxu0
        %v1755 = vadd.f32 0.0, %v1754
        %v1756 = vpop.f32.mrb[0].mxu0
        %v1757 = vpop.f32.mrb[0].mxu0
        %v1758 = vadd.f32 0.0, %v1757
        %v1759 = vpop.f32.mrb[0].mxu0
        %1760 = vmatprep.mubr.bf16.mxu0 0
        %1761 = vmatmul.mubr.bf16.gmra.mrb[0].mxu0 %v1591
        %v1762 = vpop.f32.mrb[0].mxu0
        %v1763 = vadd.f32 0.0, %v1762
        %v1764 = vpop.f32.mrb[0].mxu0
        %v1765 = vpop.f32.mrb[0].mxu0
        %v1766 = vadd.f32 0.0, %v1765
        %v1767 = vpop.f32.mrb[0].mxu0
        %1768 = vmatprep.mubr.bf16.mxu0 0
        %1769 = vmatmul.mubr.bf16.gmra.mrb[0].mxu0 %v1593
        %v1770 = vpop.f32.mrb[0].mxu0
        %v1771 = vadd.f32 0.0, %v1770
        %v1772 = vpop.f32.mrb[0].mxu0
        %v1773 = vpop.f32.mrb[0].mxu0
        %v1774 = vadd.f32 0.0, %v1773
        %v1775 = vpop.f32.mrb[0].mxu0
        %1776 = vmatprep.mubr.bf16.mxu0 0
        %1777 = vmatmul.mubr.bf16.gmra.mrb[0].mxu0 %v1595
        %v1778 = vpop.f32.mrb[0].mxu0
        %v1779 = vadd.f32 0.0, %v1778
        %v1780 = vpop.f32.mrb[0].mxu0
        %v1781 = vpop.f32.mrb[0].mxu0
        %v1782 = vadd.f32 0.0, %v1781
        %v1783 = vpop.f32.mrb[0].mxu0
        %1784 = vmatprep.mubr.bf16.mxu0 0
        %1785 = vmatmul.mubr.bf16.gmra.mrb[0].mxu0 %v1597
        %v1786 = vpop.f32.mrb[0].mxu0
        %v1787 = vadd.f32 0.0, %v1786
        %v1788 = vpop.f32.mrb[0].mxu0
        %v1789 = vpop.f32.mrb[0].mxu0
        %v1790 = vadd.f32 0.0, %v1789
        %v1791 = vpop.f32.mrb[0].mxu0
        %1792 = vmatprep.mubr.bf16.mxu0 0
        %1793 = vmatmul.mubr.bf16.gmra.mrb[0].mxu0 %v1599
        %v1794 = vpop.f32.mrb[0].mxu0
        %v1795 = vadd.f32 0.0, %v1794
        %v1796 = vpop.f32.mrb[0].mxu0
        %v1797 = vpop.f32.mrb[0].mxu0
        %v1798 = vadd.f32 0.0, %v1797
        %v1799 = vpop.f32.mrb[0].mxu0
        %1800 = vmatprep.mubr.bf16.mxu0 0
        %1801 = vmatmul.mubr.bf16.gmra.mrb[0].mxu0 %v1601
        %v1802 = vpop.f32.mrb[0].mxu0
        %v1803 = vadd.f32 0.0, %v1802
        %v1804 = vpop.f32.mrb[0].mxu0
        %v1805 = vpop.f32.mrb[0].mxu0
        %v1806 = vadd.f32 0.0, %v1805
        %v1807 = vpop.f32.mrb[0].mxu0
        %1808 = vmatprep.mubr.bf16.mxu0 0
        %1809 = vmatmul.mubr.bf16.gmra.mrb[0].mxu0 %v1603
        %v1810 = vpop.f32.mrb[0].mxu0
        %v1811 = vadd.f32 0.0, %v1810
        %v1812 = vpop.f32.mrb[0].mxu0
        %v1813 = vpop.f32.mrb[0].mxu0
        %v1814 = vadd.f32 0.0, %v1813
        %v1815 = vpop.f32.mrb[0].mxu0
        %1816 = vmatprep.mubr.bf16.mxu0 0
        %1817 = vmatmul.mubr.bf16.gmra.mrb[0].mxu0 %v1605
        %v1818 = vpop.f32.mrb[0].mxu0
        %v1819 = vadd.f32 0.0, %v1818
        %v1820 = vpop.f32.mrb[0].mxu0
        %v1821 = vpop.f32.mrb[0].mxu0
        %v1822 = vadd.f32 0.0, %v1821
        %v1823 = vpop.f32.mrb[0].mxu0
        %1824 = vmatprep.mubr.bf16.mxu0 0
        %1825 = vmatmul.mubr.bf16.gmra.mrb[0].mxu0 %v1607
        %v1826 = vpop.f32.mrb[0].mxu0
        %v1827 = vadd.f32 0.0, %v1826
        %v1828 = vpop.f32.mrb[0].mxu0
        %v1829 = vpop.f32.mrb[0].mxu0
        %v1830 = vadd.f32 0.0, %v1829
        %v1831 = vpop.f32.mrb[0].mxu0
        %1832 = vmatprep.mubr.bf16.mxu0 0
        %1833 = vmatmul.mubr.bf16.gmra.mrb[0].mxu0 %v1609
        %v1834 = vpop.f32.mrb[0].mxu0
        %v1835 = vadd.f32 0.0, %v1834
        %v1836 = vpop.f32.mrb[0].mxu0
        %v1837 = vpop.f32.mrb[0].mxu0
        %v1838 = vadd.f32 0.0, %v1837
        %v1839 = vpop.f32.mrb[0].mxu0
        %1840 = vmatprep.mubr.bf16.mxu0 0
        %1841 = vmatmul.mubr.bf16.gmra.mrb[0].mxu0 %v1611
        %v1842 = vpop.f32.mrb[0].mxu0
        %v1843 = vadd.f32 0.0, %v1842
        %v1844 = vpop.f32.mrb[0].mxu0
        %v1845 = vpop.f32.mrb[0].mxu0
        %v1846 = vadd.f32 0.0, %v1845
        %v1847 = vpop.f32.mrb[0].mxu0
        %1848 = vmatprep.mubr.bf16.mxu0 0
        %1849 = vmatmul.mubr.bf16.gmra.mrb[0].mxu0 %v1613
        %v1850 = vpop.f32.mrb[0].mxu0
        %v1851 = vadd.f32 0.0, %v1850
        %v1852 = vpop.f32.mrb[0].mxu0
        %v1853 = vpop.f32.mrb[0].mxu0
        %v1854 = vadd.f32 0.0, %v1853
        %v1855 = vpop.f32.mrb[0].mxu0
        %1856 = vdwg.mxu0
        %v1860 = vunpack.c.l.b16 %v1410
        %v1861 = vunpack.c.l.b16 %v1411
        %v1862 = vunpack.c.l.b16 %v1412
        %v1863 = vpack.c.b16 %v1861, %v1860
        %v1864 = vpack.c.b16 %v1521, %v1862
        %v1899 = vunpack.c.l.b16 %v1446
        %v1900 = vunpack.c.l.b16 %v1447
        %v1901 = vunpack.c.l.b16 %v1448
        %v1902 = vunpack.c.l.b16 %v1449
        %v1903 = vunpack.c.l.b16 %v1450
        %v1904 = vunpack.c.l.b16 %v1451
        %v1905 = vunpack.c.l.b16 %v1452
        %v1906 = vunpack.c.l.b16 %v1453
        %v1907 = vunpack.c.l.b16 %v1454
        %v1908 = vunpack.c.l.b16 %v1455
        %v1909 = vunpack.c.l.b16 %v1456
        %v1910 = vunpack.c.l.b16 %v1457
        %v1911 = vunpack.c.l.b16 %v1458
        %v1912 = vunpack.c.l.b16 %v1459
        %v1913 = vunpack.c.l.b16 %v1460
        %v1914 = vunpack.c.l.b16 %v1461
        %v1915 = vpack.c.b16 %v1900, %v1899
        %v1916 = vpack.c.b16 %v1902, %v1901
        %v1917 = vpack.c.b16 %v1904, %v1903
        %v1918 = vpack.c.b16 %v1906, %v1905
        %v1919 = vpack.c.b16 %v1908, %v1907
        %v1920 = vpack.c.b16 %v1910, %v1909
        %v1921 = vpack.c.b16 %v1912, %v1911
        %v1922 = vpack.c.b16 %v1914, %v1913
        %1931 = vmatprep.subr.bf16.mxu0 0
        %1932 = vmatpush1.bf16.msra.mxu0 %v1915
        %1933 = vmatprep.subr.bf16.mxu0 0
        %1934 = vmatpush1.bf16.msra.mxu0 %v1916
        %1935 = vmatprep.subr.bf16.mxu0 0
        %1936 = vmatpush1.bf16.msra.mxu0 %v1917
        %1937 = vmatprep.subr.bf16.mxu0 0
        %1938 = vmatpush1.bf16.msra.mxu0 %v1918
        %1939 = vmatprep.subr.bf16.mxu0 0
        %1940 = vmatpush1.bf16.msra.mxu0 %v1919
        %1941 = vmatprep.subr.bf16.mxu0 0
        %1942 = vmatpush1.bf16.msra.mxu0 %v1920
        %1943 = vmatprep.subr.bf16.mxu0 0
        %1944 = vmatpush1.bf16.msra.mxu0 %v1921
        %1945 = vmatprep.subr.bf16.mxu0 0
        %1946 = vmatpush1.bf16.msra.mxu0 %v1922
        %1947 = vmatprep.subr.bf16.mxu0 0
        %1948 = vmatpush1.bf16.msra.mxu0 0
        %1949 = vmatprep.subr.bf16.mxu0 0
        %1950 = vmatpush1.bf16.msra.mxu0 0
        %1951 = vmatprep.subr.bf16.mxu0 0
        %1952 = vmatpush1.bf16.msra.mxu0 0
        %1953 = vmatprep.subr.bf16.mxu0 0
        %1954 = vmatpush1.bf16.msra.mxu0 0
        %1955 = vmatprep.subr.bf16.mxu0 0
        %1956 = vmatpush1.bf16.msra.mxu0 0
        %1957 = vmatprep.subr.bf16.mxu0 0
        %1958 = vmatpush1.bf16.msra.mxu0 0
        %1959 = vmatprep.subr.bf16.mxu0 0
        %1960 = vmatpush1.bf16.msra.mxu0 0
        %1961 = vmatprep.subr.bf16.mxu0 0
        %1962 = vmatpush1.bf16.msra.mxu0 0
        %1963 = vmatprep.mubr.bf16.mxu0 0
        %1964 = vmatmul.mubr.bf16.gmra.mrb[0].mxu0 %v1863
        %v1965 = vpop.f32.mrb[0].mxu0
        %v1966 = vadd.f32 %v1715, %v1965
        %v1967 = vpop.f32.mrb[0].mxu0
        %v1968 = vpop.f32.mrb[0].mxu0
        %v1969 = vadd.f32 %v1718, %v1968
        %v1970 = vpop.f32.mrb[0].mxu0
        %1971 = vmatprep.mubr.bf16.mxu0 0
        %1972 = vmatmul.mubr.bf16.gmra.mrb[0].mxu0 %v1864
        %v1973 = vpop.f32.mrb[0].mxu0
        %v1974 = vadd.f32 %v1723, %v1973
        %v1975 = vpop.f32.mrb[0].mxu0
        %v1976 = vpop.f32.mrb[0].mxu0
        %v1977 = vadd.f32 %v1726, %v1976
        %v1978 = vpop.f32.mrb[0].mxu0
        %1979 = vmatprep.mubr.bf16.mxu0 0
        %1980 = vmatmul.mubr.bf16.gmra.mrb[0].mxu0 %v1558
        %v1981 = vpop.f32.mrb[0].mxu0
        %v1982 = vadd.f32 %v1731, %v1981
        %v1983 = vpop.f32.mrb[0].mxu0
        %v1984 = vpop.f32.mrb[0].mxu0
        %v1985 = vadd.f32 %v1734, %v1984
        %v1986 = vpop.f32.mrb[0].mxu0
        %1987 = vmatprep.mubr.bf16.mxu0 0
        %1988 = vmatmul.mubr.bf16.gmra.mrb[0].mxu0 %v1559
        %v1989 = vpop.f32.mrb[0].mxu0
        %v1990 = vadd.f32 %v1739, %v1989
        %v1991 = vpop.f32.mrb[0].mxu0
        %v1992 = vpop.f32.mrb[0].mxu0
        %v1993 = vadd.f32 %v1742, %v1992
        %v1994 = vpop.f32.mrb[0].mxu0
        %1995 = vmatprep.mubr.bf16.mxu0 0
        %1996 = vmatmul.mubr.bf16.gmra.mrb[0].mxu0 %v1560
        %v1997 = vpop.f32.mrb[0].mxu0
        %v1998 = vadd.f32 %v1747, %v1997
        %v1999 = vpop.f32.mrb[0].mxu0
        %v2000 = vpop.f32.mrb[0].mxu0
        %v2001 = vadd.f32 %v1750, %v2000
        %v2002 = vpop.f32.mrb[0].mxu0
        %2003 = vmatprep.mubr.bf16.mxu0 0
        %2004 = vmatmul.mubr.bf16.gmra.mrb[0].mxu0 %v1561
        %v2005 = vpop.f32.mrb[0].mxu0
        %v2006 = vadd.f32 %v1755, %v2005
        %v2007 = vpop.f32.mrb[0].mxu0
        %v2008 = vpop.f32.mrb[0].mxu0
        %v2009 = vadd.f32 %v1758, %v2008
        %v2010 = vpop.f32.mrb[0].mxu0
        %2011 = vmatprep.mubr.bf16.mxu0 0
        %2012 = vmatmul.mubr.bf16.gmra.mrb[0].mxu0 %v1562
        %v2013 = vpop.f32.mrb[0].mxu0
        %v2014 = vadd.f32 %v1763, %v2013
        %v2015 = vpop.f32.mrb[0].mxu0
        %v2016 = vpop.f32.mrb[0].mxu0
        %v2017 = vadd.f32 %v1766, %v2016
        %v2018 = vpop.f32.mrb[0].mxu0
        %2019 = vmatprep.mubr.bf16.mxu0 0
        %2020 = vmatmul.mubr.bf16.gmra.mrb[0].mxu0 %v1563
        %v2021 = vpop.f32.mrb[0].mxu0
        %v2022 = vadd.f32 %v1771, %v2021
        %v2023 = vpop.f32.mrb[0].mxu0
        %v2024 = vpop.f32.mrb[0].mxu0
        %v2025 = vadd.f32 %v1774, %v2024
        %v2026 = vpop.f32.mrb[0].mxu0
        %2027 = vmatprep.mubr.bf16.mxu0 0
        %2028 = vmatmul.mubr.bf16.gmra.mrb[0].mxu0 %v1564
        %v2029 = vpop.f32.mrb[0].mxu0
        %v2030 = vadd.f32 %v1779, %v2029
        %v2031 = vpop.f32.mrb[0].mxu0
        %v2032 = vpop.f32.mrb[0].mxu0
        %v2033 = vadd.f32 %v1782, %v2032
        %v2034 = vpop.f32.mrb[0].mxu0
        %2035 = vmatprep.mubr.bf16.mxu0 0
        %2036 = vmatmul.mubr.bf16.gmra.mrb[0].mxu0 %v1565
        %v2037 = vpop.f32.mrb[0].mxu0
        %v2038 = vadd.f32 %v1787, %v2037
        %v2039 = vpop.f32.mrb[0].mxu0
        %v2040 = vpop.f32.mrb[0].mxu0
        %v2041 = vadd.f32 %v1790, %v2040
        %v2042 = vpop.f32.mrb[0].mxu0
        %2043 = vmatprep.mubr.bf16.mxu0 0
        %2044 = vmatmul.mubr.bf16.gmra.mrb[0].mxu0 %v1566
        %v2045 = vpop.f32.mrb[0].mxu0
        %v2046 = vadd.f32 %v1795, %v2045
        %v2047 = vpop.f32.mrb[0].mxu0
        %v2048 = vpop.f32.mrb[0].mxu0
        %v2049 = vadd.f32 %v1798, %v2048
        %v2050 = vpop.f32.mrb[0].mxu0
        %2051 = vmatprep.mubr.bf16.mxu0 0
        %2052 = vmatmul.mubr.bf16.gmra.mrb[0].mxu0 %v1567
        %v2053 = vpop.f32.mrb[0].mxu0
        %v2054 = vadd.f32 %v1803, %v2053
        %v2055 = vpop.f32.mrb[0].mxu0
        %v2056 = vpop.f32.mrb[0].mxu0
        %v2057 = vadd.f32 %v1806, %v2056
        %v2058 = vpop.f32.mrb[0].mxu0
        %2059 = vmatprep.mubr.bf16.mxu0 0
        %2060 = vmatmul.mubr.bf16.gmra.mrb[0].mxu0 %v1568
        %v2061 = vpop.f32.mrb[0].mxu0
        %v2062 = vadd.f32 %v1811, %v2061
        %v2063 = vpop.f32.mrb[0].mxu0
        %v2064 = vpop.f32.mrb[0].mxu0
        %v2065 = vadd.f32 %v1814, %v2064
        %v2066 = vpop.f32.mrb[0].mxu0
        %2067 = vmatprep.mubr.bf16.mxu0 0
        %2068 = vmatmul.mubr.bf16.gmra.mrb[0].mxu0 %v1569
        %v2069 = vpop.f32.mrb[0].mxu0
        %v2070 = vadd.f32 %v1819, %v2069
        %v2071 = vpop.f32.mrb[0].mxu0
        %v2072 = vpop.f32.mrb[0].mxu0
        %v2073 = vadd.f32 %v1822, %v2072
        %v2074 = vpop.f32.mrb[0].mxu0
        %2075 = vmatprep.mubr.bf16.mxu0 0
        %2076 = vmatmul.mubr.bf16.gmra.mrb[0].mxu0 %v1570
        %v2077 = vpop.f32.mrb[0].mxu0
        %v2078 = vadd.f32 %v1827, %v2077
        %v2079 = vpop.f32.mrb[0].mxu0
        %v2080 = vpop.f32.mrb[0].mxu0
        %v2081 = vadd.f32 %v1830, %v2080
        %v2082 = vpop.f32.mrb[0].mxu0
        %2083 = vmatprep.mubr.bf16.mxu0 0
        %2084 = vmatmul.mubr.bf16.gmra.mrb[0].mxu0 %v1571
        %v2085 = vpop.f32.mrb[0].mxu0
        %v2086 = vadd.f32 %v1835, %v2085
        %v2087 = vpop.f32.mrb[0].mxu0
        %v2088 = vpop.f32.mrb[0].mxu0
        %v2089 = vadd.f32 %v1838, %v2088
        %v2090 = vpop.f32.mrb[0].mxu0
        %2091 = vmatprep.mubr.bf16.mxu0 0
        %2092 = vmatmul.mubr.bf16.gmra.mrb[0].mxu0 %v1572
        %v2093 = vpop.f32.mrb[0].mxu0
        %v2094 = vadd.f32 %v1843, %v2093
        %v2095 = vpop.f32.mrb[0].mxu0
        %v2096 = vpop.f32.mrb[0].mxu0
        %v2097 = vadd.f32 %v1846, %v2096
        %v2098 = vpop.f32.mrb[0].mxu0
        %2099 = vmatprep.mubr.bf16.mxu0 0
        %2100 = vmatmul.mubr.bf16.gmra.mrb[0].mxu0 %v1573
        %v2101 = vpop.f32.mrb[0].mxu0
        %v2102 = vadd.f32 %v1851, %v2101
        %v2103 = vpop.f32.mrb[0].mxu0
        %v2104 = vpop.f32.mrb[0].mxu0
        %v2105 = vadd.f32 %v1854, %v2104
        %v2106 = vpop.f32.mrb[0].mxu0
        %2107 = vdwg.mxu0
        %v2108 = vld [vmem:[#allocation2 + $0x10] sm:$0xc]
        %v2109 = vld [vmem:[#allocation2 + $0x14] sm:$0xf]
        %v2110 = vld [vmem:[#allocation2 + $0x18] sm:$0xf]
        %v2111 = vld [vmem:[#allocation2 + $0x1c] sm:$0xf]
        %v2112 = vld [vmem:[#allocation2 + $0x20] sm:$0xf]
        %v2113 = vld [vmem:[#allocation2 + $0x24] sm:$0xf]
        %v2114 = vld [vmem:[#allocation2 + $0x28] sm:$0xf]
        %v2115 = vld [vmem:[#allocation2 + $0x2c] sm:$0xf]
        %v2116 = vld [vmem:[#allocation2 + $0x30] sm:$0xf]
        %v2117 = vld [vmem:[#allocation2 + $0x34] sm:$0xf]
        %v2118 = vld [vmem:[#allocation2 + $0x38] sm:$0xf]
        %v2119 = vld [vmem:[#allocation2 + $0x3c] sm:$0xf]
        %v2120 = vld [vmem:[#allocation2 + $0x40] sm:$0xf]
        %v2121 = vld [vmem:[#allocation2 + $0x44] sm:$0xf]
        %v2122 = vld [vmem:[#allocation2 + $0x48] sm:$0xf]
        %v2123 = vld [vmem:[#allocation2 + $0x4c] sm:$0xf]
        %v2124 = vld [vmem:[#allocation2 + $0x50] sm:$0xf]
        %v2125 = vld [vmem:[#allocation2 + $0x54] sm:$0xf]
        %v2126 = vld [vmem:[#allocation2 + $0x58] sm:$0xf]
        %v2127 = vld [vmem:[#allocation2 + $0x5c] sm:$0xf]
        %v2128 = vld [vmem:[#allocation2 + $0x60] sm:$0xf]
        %v2129 = vld [vmem:[#allocation2 + $0x64] sm:$0xf]
        %v2130 = vld [vmem:[#allocation2 + $0x68] sm:$0xf]
        %v2131 = vld [vmem:[#allocation2 + $0x6c] sm:$0xf]
        %v2132 = vld [vmem:[#allocation2 + $0x70] sm:$0xf]
        %v2133 = vld [vmem:[#allocation2 + $0x74] sm:$0xf]
        %v2134 = vld [vmem:[#allocation2 + $0x78] sm:$0xf]
        %v2135 = vld [vmem:[#allocation2 + $0x7c] sm:$0xf]
        %v2136 = vld [vmem:[#allocation2 + $0x80] sm:$0xf]
        %v2137 = vld [vmem:[#allocation2 + $0x84] sm:$0xf]
        %v2138 = vld [vmem:[#allocation2 + $0x88] sm:$0xf]
        %v2139 = vld [vmem:[#allocation2 + $0x8c] sm:$0xf]
        %v2140 = vld [vmem:[#allocation2 + $0x90] sm:$0xf]
        %v2141 = vld [vmem:[#allocation2 + $0x94] sm:$0xf]
        %v2142 = vld [vmem:[#allocation2 + $0x98] sm:$0xf]
        %v2143 = vld [vmem:[#allocation2 + $0x9c] sm:$0xf]
        %v2144 = vld [vmem:[#allocation2 + $0xa0] sm:$0x3]
        %s2145 = scalar_lea.vmem %s3, 128
        %v2146 = vld [vmem:[%s2145] sm:$0xf]
        %v2147 = vld [vmem:[%s2145 + $0x4] sm:$0xf]
        %v2148 = vld [vmem:[%s2145 + $0x8] sm:$0xf]
        %v2149 = vld [vmem:[%s2145 + $0xc] sm:$0xf]
        %v2150 = vld [vmem:[%s2145 + $0x10] sm:$0xf]
        %v2151 = vld [vmem:[%s2145 + $0x14] sm:$0xf]
        %v2152 = vld [vmem:[%s2145 + $0x18] sm:$0xf]
        %v2153 = vld [vmem:[%s2145 + $0x1c] sm:$0xf]
        %v2154 = vld [vmem:[%s2145 + $0x20] sm:$0xf]
        %v2155 = vld [vmem:[%s2145 + $0x24] sm:$0xf]
        %v2156 = vld [vmem:[%s2145 + $0x28] sm:$0xf]
        %v2157 = vld [vmem:[%s2145 + $0x2c] sm:$0xf]
        %v2158 = vld [vmem:[%s2145 + $0x30] sm:$0xf]
        %v2159 = vld [vmem:[%s2145 + $0x34] sm:$0xf]
        %v2160 = vld [vmem:[%s2145 + $0x38] sm:$0xf]
        %v2161 = vld [vmem:[%s2145 + $0x3c] sm:$0xf]
        %v2199 = vunpack.c.l.b16 %v2108
        %v2200 = vunpack.c.l.b16 %v2109
        %v2201 = vunpack.c.l.b16 %v2110
        %v2202 = vunpack.c.l.b16 %v2111
        %v2203 = vunpack.c.l.b16 %v2112
        %v2204 = vunpack.c.l.b16 %v2113
        %v2205 = vunpack.c.l.b16 %v2114
        %v2206 = vunpack.c.l.b16 %v2115
        %v2207 = vunpack.c.l.b16 %v2116
        %v2208 = vunpack.c.l.b16 %v2117
        %v2209 = vunpack.c.l.b16 %v2118
        %v2210 = vunpack.c.l.b16 %v2119
        %v2211 = vunpack.c.l.b16 %v2120
        %v2212 = vunpack.c.l.b16 %v2121
        %v2213 = vunpack.c.l.b16 %v2122
        %v2214 = vunpack.c.l.b16 %v2123
        %v2215 = vunpack.c.l.b16 %v2124
        %v2216 = vunpack.c.l.b16 %v2125
        %v2217 = vunpack.c.l.b16 %v2126
        %v2218 = vunpack.c.l.b16 %v2127
        %v2219 = vunpack.c.l.b16 %v2128
        %v2220 = vunpack.c.l.b16 %v2129
        %v2221 = vunpack.c.l.b16 %v2130
        %v2222 = vunpack.c.l.b16 %v2131
        %v2223 = vunpack.c.l.b16 %v2132
        %v2224 = vunpack.c.l.b16 %v2133
        %v2225 = vunpack.c.l.b16 %v2134
        %v2226 = vunpack.c.l.b16 %v2135
        %v2227 = vunpack.c.l.b16 %v2136
        %v2228 = vunpack.c.l.b16 %v2137
        %v2229 = vunpack.c.l.b16 %v2138
        %v2230 = vunpack.c.l.b16 %v2139
        %v2231 = vunpack.c.l.b16 %v2140
        %v2232 = vunpack.c.l.b16 %v2141
        %v2233 = vunpack.c.l.b16 %v2142
        %v2234 = vunpack.c.l.b16 %v2143
        %v2235 = vunpack.c.l.b16 %v2144
        %v2236 = vpack.c.b16 %v2200, %v2199
        %v2237 = vpack.c.b16 %v2202, %v2201
        %v2238 = vpack.c.b16 %v2204, %v2203
        %v2239 = vpack.c.b16 %v2206, %v2205
        %v2240 = vpack.c.b16 %v2208, %v2207
        %v2241 = vpack.c.b16 %v2210, %v2209
        %v2242 = vpack.c.b16 %v2212, %v2211
        %v2243 = vpack.c.b16 %v2214, %v2213
        %v2244 = vpack.c.b16 %v2216, %v2215
        %v2245 = vpack.c.b16 %v2218, %v2217
        %v2246 = vpack.c.b16 %v2220, %v2219
        %v2247 = vpack.c.b16 %v2222, %v2221
        %v2248 = vpack.c.b16 %v2224, %v2223
        %v2249 = vpack.c.b16 %v2226, %v2225
        %v2250 = vpack.c.b16 %v2228, %v2227
        %v2251 = vpack.c.b16 %v2230, %v2229
        %v2252 = vpack.c.b16 %v2232, %v2231
        %v2253 = vpack.c.b16 %v2234, %v2233
        %v2254 = vpack.c.b16 %v2235, %v2235
        %vm2255 = vcmask 1045504
        %v2256 = vrot.slane %v2236, 2
        %v2257 = vrot.slane %v2237, 2
        %v2258 = vsel %vm2255, %v2256, %v2257
        %v2259 = vrot.slane %v2238, 2
        %v2260 = vsel %vm2255, %v2257, %v2259
        %v2261 = vrot.slane %v2239, 2
        %v2262 = vsel %vm2255, %v2259, %v2261
        %v2263 = vrot.slane %v2240, 2
        %v2264 = vsel %vm2255, %v2261, %v2263
        %v2265 = vrot.slane %v2241, 2
        %v2266 = vsel %vm2255, %v2263, %v2265
        %v2267 = vrot.slane %v2242, 2
        %v2268 = vsel %vm2255, %v2265, %v2267
        %v2269 = vrot.slane %v2243, 2
        %v2270 = vsel %vm2255, %v2267, %v2269
        %v2271 = vrot.slane %v2244, 2
        %v2272 = vsel %vm2255, %v2269, %v2271
        %v2273 = vrot.slane %v2245, 2
        %v2274 = vsel %vm2255, %v2271, %v2273
        %v2275 = vrot.slane %v2246, 2
        %v2276 = vsel %vm2255, %v2273, %v2275
        %v2277 = vrot.slane %v2247, 2
        %v2278 = vsel %vm2255, %v2275, %v2277
        %v2279 = vrot.slane %v2248, 2
        %v2280 = vsel %vm2255, %v2277, %v2279
        %v2281 = vrot.slane %v2249, 2
        %v2282 = vsel %vm2255, %v2279, %v2281
        %v2283 = vrot.slane %v2250, 2
        %v2284 = vsel %vm2255, %v2281, %v2283
        %v2285 = vrot.slane %v2251, 2
        %v2286 = vsel %vm2255, %v2283, %v2285
        %v2287 = vrot.slane %v2252, 2
        %v2288 = vsel %vm2255, %v2285, %v2287
        %v2289 = vrot.slane %v2253, 2
        %v2290 = vsel %vm2255, %v2287, %v2289
        %v2291 = vrot.slane %v2254, 2
        %v2292 = vsel %vm2255, %v2289, %v2291
        %v2327 = vunpack.c.l.b16 %v2146
        %v2328 = vunpack.c.l.b16 %v2147
        %v2329 = vunpack.c.l.b16 %v2148
        %v2330 = vunpack.c.l.b16 %v2149
        %v2331 = vunpack.c.l.b16 %v2150
        %v2332 = vunpack.c.l.b16 %v2151
        %v2333 = vunpack.c.l.b16 %v2152
        %v2334 = vunpack.c.l.b16 %v2153
        %v2335 = vunpack.c.l.b16 %v2154
        %v2336 = vunpack.c.l.b16 %v2155
        %v2337 = vunpack.c.l.b16 %v2156
        %v2338 = vunpack.c.l.b16 %v2157
        %v2339 = vunpack.c.l.b16 %v2158
        %v2340 = vunpack.c.l.b16 %v2159
        %v2341 = vunpack.c.l.b16 %v2160
        %v2342 = vunpack.c.l.b16 %v2161
        %v2343 = vpack.c.b16 %v2328, %v2327
        %v2344 = vpack.c.b16 %v2330, %v2329
        %v2345 = vpack.c.b16 %v2332, %v2331
        %v2346 = vpack.c.b16 %v2334, %v2333
        %v2347 = vpack.c.b16 %v2336, %v2335
        %v2348 = vpack.c.b16 %v2338, %v2337
        %v2349 = vpack.c.b16 %v2340, %v2339
        %v2350 = vpack.c.b16 %v2342, %v2341
        %2359 = vmatprep.subr.bf16.mxu0 0
        %2360 = vmatpush1.bf16.msra.mxu0 %v2343
        %2361 = vmatprep.subr.bf16.mxu0 0
        %2362 = vmatpush1.bf16.msra.mxu0 %v2344
        %2363 = vmatprep.subr.bf16.mxu0 0
        %2364 = vmatpush1.bf16.msra.mxu0 %v2345
        %2365 = vmatprep.subr.bf16.mxu0 0
        %2366 = vmatpush1.bf16.msra.mxu0 %v2346
        %2367 = vmatprep.subr.bf16.mxu0 0
        %2368 = vmatpush1.bf16.msra.mxu0 %v2347
        %2369 = vmatprep.subr.bf16.mxu0 0
        %2370 = vmatpush1.bf16.msra.mxu0 %v2348
        %2371 = vmatprep.subr.bf16.mxu0 0
        %2372 = vmatpush1.bf16.msra.mxu0 %v2349
        %2373 = vmatprep.subr.bf16.mxu0 0
        %2374 = vmatpush1.bf16.msra.mxu0 %v2350
        %2375 = vmatprep.subr.bf16.mxu0 0
        %2376 = vmatpush1.bf16.msra.mxu0 0
        %2377 = vmatprep.subr.bf16.mxu0 0
        %2378 = vmatpush1.bf16.msra.mxu0 0
        %2379 = vmatprep.subr.bf16.mxu0 0
        %2380 = vmatpush1.bf16.msra.mxu0 0
        %2381 = vmatprep.subr.bf16.mxu0 0
        %2382 = vmatpush1.bf16.msra.mxu0 0
        %2383 = vmatprep.subr.bf16.mxu0 0
        %2384 = vmatpush1.bf16.msra.mxu0 0
        %2385 = vmatprep.subr.bf16.mxu0 0
        %2386 = vmatpush1.bf16.msra.mxu0 0
        %2387 = vmatprep.subr.bf16.mxu0 0
        %2388 = vmatpush1.bf16.msra.mxu0 0
        %2389 = vmatprep.subr.bf16.mxu0 0
        %2390 = vmatpush1.bf16.msra.mxu0 0
        %2391 = vmatprep.mubr.bf16.mxu0 0
        %2392 = vmatmul.mubr.bf16.gmra.mrb[0].mxu0 %v2258
        %v2393 = vpop.f32.mrb[0].mxu0
        %v2394 = vadd.f32 0.0, %v2393
        %v2395 = vpop.f32.mrb[0].mxu0
        %v2396 = vpop.f32.mrb[0].mxu0
        %v2397 = vadd.f32 0.0, %v2396
        %v2398 = vpop.f32.mrb[0].mxu0
        %2399 = vmatprep.mubr.bf16.mxu0 0
        %2400 = vmatmul.mubr.bf16.gmra.mrb[0].mxu0 %v2260
        %v2401 = vpop.f32.mrb[0].mxu0
        %v2402 = vadd.f32 0.0, %v2401
        %v2403 = vpop.f32.mrb[0].mxu0
        %v2404 = vpop.f32.mrb[0].mxu0
        %v2405 = vadd.f32 0.0, %v2404
        %v2406 = vpop.f32.mrb[0].mxu0
        %2407 = vmatprep.mubr.bf16.mxu0 0
        %2408 = vmatmul.mubr.bf16.gmra.mrb[0].mxu0 %v2262
        %v2409 = vpop.f32.mrb[0].mxu0
        %v2410 = vadd.f32 0.0, %v2409
        %v2411 = vpop.f32.mrb[0].mxu0
        %v2412 = vpop.f32.mrb[0].mxu0
        %v2413 = vadd.f32 0.0, %v2412
        %v2414 = vpop.f32.mrb[0].mxu0
        %2415 = vmatprep.mubr.bf16.mxu0 0
        %2416 = vmatmul.mubr.bf16.gmra.mrb[0].mxu0 %v2264
        %v2417 = vpop.f32.mrb[0].mxu0
        %v2418 = vadd.f32 0.0, %v2417
        %v2419 = vpop.f32.mrb[0].mxu0
        %v2420 = vpop.f32.mrb[0].mxu0
        %v2421 = vadd.f32 0.0, %v2420
        %v2422 = vpop.f32.mrb[0].mxu0
        %2423 = vmatprep.mubr.bf16.mxu0 0
        %2424 = vmatmul.mubr.bf16.gmra.mrb[0].mxu0 %v2266
        %v2425 = vpop.f32.mrb[0].mxu0
        %v2426 = vadd.f32 0.0, %v2425
        %v2427 = vpop.f32.mrb[0].mxu0
        %v2428 = vpop.f32.mrb[0].mxu0
        %v2429 = vadd.f32 0.0, %v2428
        %v2430 = vpop.f32.mrb[0].mxu0
        %2431 = vmatprep.mubr.bf16.mxu0 0
        %2432 = vmatmul.mubr.bf16.gmra.mrb[0].mxu0 %v2268
        %v2433 = vpop.f32.mrb[0].mxu0
        %v2434 = vadd.f32 0.0, %v2433
        %v2435 = vpop.f32.mrb[0].mxu0
        %v2436 = vpop.f32.mrb[0].mxu0
        %v2437 = vadd.f32 0.0, %v2436
        %v2438 = vpop.f32.mrb[0].mxu0
        %2439 = vmatprep.mubr.bf16.mxu0 0
        %2440 = vmatmul.mubr.bf16.gmra.mrb[0].mxu0 %v2270
        %v2441 = vpop.f32.mrb[0].mxu0
        %v2442 = vadd.f32 0.0, %v2441
        %v2443 = vpop.f32.mrb[0].mxu0
        %v2444 = vpop.f32.mrb[0].mxu0
        %v2445 = vadd.f32 0.0, %v2444
        %v2446 = vpop.f32.mrb[0].mxu0
        %2447 = vmatprep.mubr.bf16.mxu0 0
        %2448 = vmatmul.mubr.bf16.gmra.mrb[0].mxu0 %v2272
        %v2449 = vpop.f32.mrb[0].mxu0
        %v2450 = vadd.f32 0.0, %v2449
        %v2451 = vpop.f32.mrb[0].mxu0
        %v2452 = vpop.f32.mrb[0].mxu0
        %v2453 = vadd.f32 0.0, %v2452
        %v2454 = vpop.f32.mrb[0].mxu0
        %2455 = vmatprep.mubr.bf16.mxu0 0
        %2456 = vmatmul.mubr.bf16.gmra.mrb[0].mxu0 %v2274
        %v2457 = vpop.f32.mrb[0].mxu0
        %v2458 = vadd.f32 0.0, %v2457
        %v2459 = vpop.f32.mrb[0].mxu0
        %v2460 = vpop.f32.mrb[0].mxu0
        %v2461 = vadd.f32 0.0, %v2460
        %v2462 = vpop.f32.mrb[0].mxu0
        %2463 = vmatprep.mubr.bf16.mxu0 0
        %2464 = vmatmul.mubr.bf16.gmra.mrb[0].mxu0 %v2276
        %v2465 = vpop.f32.mrb[0].mxu0
        %v2466 = vadd.f32 0.0, %v2465
        %v2467 = vpop.f32.mrb[0].mxu0
        %v2468 = vpop.f32.mrb[0].mxu0
        %v2469 = vadd.f32 0.0, %v2468
        %v2470 = vpop.f32.mrb[0].mxu0
        %2471 = vmatprep.mubr.bf16.mxu0 0
        %2472 = vmatmul.mubr.bf16.gmra.mrb[0].mxu0 %v2278
        %v2473 = vpop.f32.mrb[0].mxu0
        %v2474 = vadd.f32 0.0, %v2473
        %v2475 = vpop.f32.mrb[0].mxu0
        %v2476 = vpop.f32.mrb[0].mxu0
        %v2477 = vadd.f32 0.0, %v2476
        %v2478 = vpop.f32.mrb[0].mxu0
        %2479 = vmatprep.mubr.bf16.mxu0 0
        %2480 = vmatmul.mubr.bf16.gmra.mrb[0].mxu0 %v2280
        %v2481 = vpop.f32.mrb[0].mxu0
        %v2482 = vadd.f32 0.0, %v2481
        %v2483 = vpop.f32.mrb[0].mxu0
        %v2484 = vpop.f32.mrb[0].mxu0
        %v2485 = vadd.f32 0.0, %v2484
        %v2486 = vpop.f32.mrb[0].mxu0
        %2487 = vmatprep.mubr.bf16.mxu0 0
        %2488 = vmatmul.mubr.bf16.gmra.mrb[0].mxu0 %v2282
        %v2489 = vpop.f32.mrb[0].mxu0
        %v2490 = vadd.f32 0.0, %v2489
        %v2491 = vpop.f32.mrb[0].mxu0
        %v2492 = vpop.f32.mrb[0].mxu0
        %v2493 = vadd.f32 0.0, %v2492
        %v2494 = vpop.f32.mrb[0].mxu0
        %2495 = vmatprep.mubr.bf16.mxu0 0
        %2496 = vmatmul.mubr.bf16.gmra.mrb[0].mxu0 %v2284
        %v2497 = vpop.f32.mrb[0].mxu0
        %v2498 = vadd.f32 0.0, %v2497
        %v2499 = vpop.f32.mrb[0].mxu0
        %v2500 = vpop.f32.mrb[0].mxu0
        %v2501 = vadd.f32 0.0, %v2500
        %v2502 = vpop.f32.mrb[0].mxu0
        %2503 = vmatprep.mubr.bf16.mxu0 0
        %2504 = vmatmul.mubr.bf16.gmra.mrb[0].mxu0 %v2286
        %v2505 = vpop.f32.mrb[0].mxu0
        %v2506 = vadd.f32 0.0, %v2505
        %v2507 = vpop.f32.mrb[0].mxu0
        %v2508 = vpop.f32.mrb[0].mxu0
        %v2509 = vadd.f32 0.0, %v2508
        %v2510 = vpop.f32.mrb[0].mxu0
        %2511 = vmatprep.mubr.bf16.mxu0 0
        %2512 = vmatmul.mubr.bf16.gmra.mrb[0].mxu0 %v2288
        %v2513 = vpop.f32.mrb[0].mxu0
        %v2514 = vadd.f32 0.0, %v2513
        %v2515 = vpop.f32.mrb[0].mxu0
        %v2516 = vpop.f32.mrb[0].mxu0
        %v2517 = vadd.f32 0.0, %v2516
        %v2518 = vpop.f32.mrb[0].mxu0
        %2519 = vmatprep.mubr.bf16.mxu0 0
        %2520 = vmatmul.mubr.bf16.gmra.mrb[0].mxu0 %v2290
        %v2521 = vpop.f32.mrb[0].mxu0
        %v2522 = vadd.f32 0.0, %v2521
        %v2523 = vpop.f32.mrb[0].mxu0
        %v2524 = vpop.f32.mrb[0].mxu0
        %v2525 = vadd.f32 0.0, %v2524
        %v2526 = vpop.f32.mrb[0].mxu0
        %2527 = vmatprep.mubr.bf16.mxu0 0
        %2528 = vmatmul.mubr.bf16.gmra.mrb[0].mxu0 %v2292
        %v2529 = vpop.f32.mrb[0].mxu0
        %v2530 = vadd.f32 0.0, %v2529
        %v2531 = vpop.f32.mrb[0].mxu0
        %v2532 = vpop.f32.mrb[0].mxu0
        %v2533 = vadd.f32 0.0, %v2532
        %v2534 = vpop.f32.mrb[0].mxu0
        %2535 = vdwg.mxu0
        %v2536 = vadd.f32 %v1966, %v2394
        %v2537 = vadd.f32 %v1969, %v2397
        %v2538 = vadd.f32 %v1974, %v2402
        %v2539 = vadd.f32 %v1977, %v2405
        %v2540 = vadd.f32 %v1982, %v2410
        %v2541 = vadd.f32 %v1985, %v2413
        %v2542 = vadd.f32 %v1990, %v2418
        %v2543 = vadd.f32 %v1993, %v2421
        %v2544 = vadd.f32 %v1998, %v2426
        %v2545 = vadd.f32 %v2001, %v2429
        %v2546 = vadd.f32 %v2006, %v2434
        %v2547 = vadd.f32 %v2009, %v2437
        %v2548 = vadd.f32 %v2014, %v2442
        %v2549 = vadd.f32 %v2017, %v2445
        %v2550 = vadd.f32 %v2022, %v2450
        %v2551 = vadd.f32 %v2025, %v2453
        %v2552 = vadd.f32 %v2030, %v2458
        %v2553 = vadd.f32 %v2033, %v2461
        %v2554 = vadd.f32 %v2038, %v2466
        %v2555 = vadd.f32 %v2041, %v2469
        %v2556 = vadd.f32 %v2046, %v2474
        %v2557 = vadd.f32 %v2049, %v2477
        %v2558 = vadd.f32 %v2054, %v2482
        %v2559 = vadd.f32 %v2057, %v2485
        %v2560 = vadd.f32 %v2062, %v2490
        %v2561 = vadd.f32 %v2065, %v2493
        %v2562 = vadd.f32 %v2070, %v2498
        %v2563 = vadd.f32 %v2073, %v2501
        %v2564 = vadd.f32 %v2078, %v2506
        %v2565 = vadd.f32 %v2081, %v2509
        %v2566 = vadd.f32 %v2086, %v2514
        %v2567 = vadd.f32 %v2089, %v2517
        %v2568 = vadd.f32 %v2094, %v2522
        %v2569 = vadd.f32 %v2097, %v2525
        %v2570 = vadd.f32 %v2102, %v2530
        %v2571 = vadd.f32 %v2105, %v2533
        %vm2572 = vcmask 785408
        %2573 = vst.msk [vmem:[#allocation3] sm:$0xff] %vm2572, %v2536
        %2574 = vst.msk [vmem:[#allocation3 + $0x8] sm:$0xff] %vm2572, %v2537
        %2575 = vst.msk [vmem:[#allocation3 + $0x10] sm:$0xff] %vm2572, %v2538
        %2576 = vst.msk [vmem:[#allocation3 + $0x18] sm:$0xff] %vm2572, %v2539
        %2577 = vst.msk [vmem:[#allocation3 + $0x20] sm:$0xff] %vm2572, %v2540
        %2578 = vst.msk [vmem:[#allocation3 + $0x28] sm:$0xff] %vm2572, %v2541
        %2579 = vst.msk [vmem:[#allocation3 + $0x30] sm:$0xff] %vm2572, %v2542
        %2580 = vst.msk [vmem:[#allocation3 + $0x38] sm:$0xff] %vm2572, %v2543
        %2581 = vst.msk [vmem:[#allocation3 + $0x40] sm:$0xff] %vm2572, %v2544
        %2582 = vst.msk [vmem:[#allocation3 + $0x48] sm:$0xff] %vm2572, %v2545
        %2583 = vst.msk [vmem:[#allocation3 + $0x50] sm:$0xff] %vm2572, %v2546
        %2584 = vst.msk [vmem:[#allocation3 + $0x58] sm:$0xff] %vm2572, %v2547
        %2585 = vst.msk [vmem:[#allocation3 + $0x60] sm:$0xff] %vm2572, %v2548
        %2586 = vst.msk [vmem:[#allocation3 + $0x68] sm:$0xff] %vm2572, %v2549
        %2587 = vst.msk [vmem:[#allocation3 + $0x70] sm:$0xff] %vm2572, %v2550
        %2588 = vst.msk [vmem:[#allocation3 + $0x78] sm:$0xff] %vm2572, %v2551
        %2589 = vst.msk [vmem:[#allocation3 + $0x80] sm:$0xff] %vm2572, %v2552
        %2590 = vst.msk [vmem:[#allocation3 + $0x88] sm:$0xff] %vm2572, %v2553
        %2591 = vst.msk [vmem:[#allocation3 + $0x90] sm:$0xff] %vm2572, %v2554
        %2592 = vst.msk [vmem:[#allocation3 + $0x98] sm:$0xff] %vm2572, %v2555
        %2593 = vst.msk [vmem:[#allocation3 + $0xa0] sm:$0xff] %vm2572, %v2556
        %2594 = vst.msk [vmem:[#allocation3 + $0xa8] sm:$0xff] %vm2572, %v2557
        %2595 = vst.msk [vmem:[#allocation3 + $0xb0] sm:$0xff] %vm2572, %v2558
        %2596 = vst.msk [vmem:[#allocation3 + $0xb8] sm:$0xff] %vm2572, %v2559
        %2597 = vst.msk [vmem:[#allocation3 + $0xc0] sm:$0xff] %vm2572, %v2560
        %2598 = vst.msk [vmem:[#allocation3 + $0xc8] sm:$0xff] %vm2572, %v2561
        %2599 = vst.msk [vmem:[#allocation3 + $0xd0] sm:$0xff] %vm2572, %v2562
        %2600 = vst.msk [vmem:[#allocation3 + $0xd8] sm:$0xff] %vm2572, %v2563
        %2601 = vst.msk [vmem:[#allocation3 + $0xe0] sm:$0xff] %vm2572, %v2564
        %2602 = vst.msk [vmem:[#allocation3 + $0xe8] sm:$0xff] %vm2572, %v2565
        %2603 = vst.msk [vmem:[#allocation3 + $0xf0] sm:$0xff] %vm2572, %v2566
        %2604 = vst.msk [vmem:[#allocation3 + $0xf8] sm:$0xff] %vm2572, %v2567
        %2605 = vst.msk [vmem:[#allocation3 + $0x100] sm:$0xff] %vm2572, %v2568
        %2606 = vst.msk [vmem:[#allocation3 + $0x108] sm:$0xff] %vm2572, %v2569
        %2607 = vst.msk [vmem:[#allocation3 + $0x110] sm:$0xff] %vm2572, %v2570
        %2608 = vst.msk [vmem:[#allocation3 + $0x118] sm:$0xff] %vm2572, %v2571
        %2609 = vst.msk [vmem:[#allocation3 + $0x120] sm:$0xff] %vm2572, 0.0
        %v2610 = vld [vmem:[#allocation3] sm:$0xff]
        %v2611 = vld [vmem:[#allocation3 + $0x8] sm:$0xff]
        %v2612 = vld [vmem:[#allocation3 + $0x10] sm:$0xff]
        %v2613 = vld [vmem:[#allocation3 + $0x18] sm:$0xff]
        %v2614 = vld [vmem:[#allocation3 + $0x20] sm:$0xff]
        %v2615 = vld [vmem:[#allocation3 + $0x28] sm:$0xff]
        %v2616 = vld [vmem:[#allocation3 + $0x30] sm:$0xff]
        %v2617 = vld [vmem:[#allocation3 + $0x38] sm:$0xff]
        %v2618 = vld [vmem:[#allocation3 + $0x40] sm:$0xff]
        %v2619 = vld [vmem:[#allocation3 + $0x48] sm:$0xff]
        %v2620 = vld [vmem:[#allocation3 + $0x50] sm:$0xff]
        %v2621 = vld [vmem:[#allocation3 + $0x58] sm:$0xff]
        %v2622 = vld [vmem:[#allocation3 + $0x60] sm:$0xff]
        %v2623 = vld [vmem:[#allocation3 + $0x68] sm:$0xff]
        %v2624 = vld [vmem:[#allocation3 + $0x70] sm:$0xff]
        %v2625 = vld [vmem:[#allocation3 + $0x78] sm:$0xff]
        %v2626 = vld [vmem:[#allocation3 + $0x80] sm:$0xff]
        %v2627 = vld [vmem:[#allocation3 + $0x88] sm:$0xff]
        %v2628 = vld [vmem:[#allocation3 + $0x90] sm:$0xff]
        %v2629 = vld [vmem:[#allocation3 + $0x98] sm:$0xff]
        %v2630 = vld [vmem:[#allocation3 + $0xa0] sm:$0xff]
        %v2631 = vld [vmem:[#allocation3 + $0xa8] sm:$0xff]
        %v2632 = vld [vmem:[#allocation3 + $0xb0] sm:$0xff]
        %v2633 = vld [vmem:[#allocation3 + $0xb8] sm:$0xff]
        %v2634 = vld [vmem:[#allocation3 + $0xc0] sm:$0xff]
        %v2635 = vld [vmem:[#allocation3 + $0xc8] sm:$0xff]
        %v2636 = vld [vmem:[#allocation3 + $0xd0] sm:$0xff]
        %v2637 = vld [vmem:[#allocation3 + $0xd8] sm:$0xff]
        %v2638 = vld [vmem:[#allocation3 + $0xe0] sm:$0xff]
        %v2639 = vld [vmem:[#allocation3 + $0xe8] sm:$0xff]
        %v2640 = vld [vmem:[#allocation3 + $0xf0] sm:$0xff]
        %v2641 = vld [vmem:[#allocation3 + $0xf8] sm:$0xff]
        %v2642 = vld [vmem:[#allocation3 + $0x100] sm:$0xff]
        %v2643 = vld [vmem:[#allocation3 + $0x108] sm:$0xff]
        %v2644 = vld [vmem:[#allocation3 + $0x110] sm:$0xff]
        %v2645 = vld [vmem:[#allocation3 + $0x118] sm:$0xff]
        %v2646 = vld [vmem:[#allocation3 + $0x1] sm:$0xff]
        %v2647 = vld [vmem:[#allocation3 + $0x9] sm:$0xff]
        %v2648 = vld [vmem:[#allocation3 + $0x11] sm:$0xff]
        %v2649 = vld [vmem:[#allocation3 + $0x19] sm:$0xff]
        %v2650 = vld [vmem:[#allocation3 + $0x21] sm:$0xff]
        %v2651 = vld [vmem:[#allocation3 + $0x29] sm:$0xff]
        %v2652 = vld [vmem:[#allocation3 + $0x31] sm:$0xff]
        %v2653 = vld [vmem:[#allocation3 + $0x39] sm:$0xff]
        %v2654 = vld [vmem:[#allocation3 + $0x41] sm:$0xff]
        %v2655 = vld [vmem:[#allocation3 + $0x49] sm:$0xff]
        %v2656 = vld [vmem:[#allocation3 + $0x51] sm:$0xff]
        %v2657 = vld [vmem:[#allocation3 + $0x59] sm:$0xff]
        %v2658 = vld [vmem:[#allocation3 + $0x61] sm:$0xff]
        %v2659 = vld [vmem:[#allocation3 + $0x69] sm:$0xff]
        %v2660 = vld [vmem:[#allocation3 + $0x71] sm:$0xff]
        %v2661 = vld [vmem:[#allocation3 + $0x79] sm:$0xff]
        %v2662 = vld [vmem:[#allocation3 + $0x81] sm:$0xff]
        %v2663 = vld [vmem:[#allocation3 + $0x89] sm:$0xff]
        %v2664 = vld [vmem:[#allocation3 + $0x91] sm:$0xff]
        %v2665 = vld [vmem:[#allocation3 + $0x99] sm:$0xff]
        %v2666 = vld [vmem:[#allocation3 + $0xa1] sm:$0xff]
        %v2667 = vld [vmem:[#allocation3 + $0xa9] sm:$0xff]
        %v2668 = vld [vmem:[#allocation3 + $0xb1] sm:$0xff]
        %v2669 = vld [vmem:[#allocation3 + $0xb9] sm:$0xff]
        %v2670 = vld [vmem:[#allocation3 + $0xc1] sm:$0xff]
        %v2671 = vld [vmem:[#allocation3 + $0xc9] sm:$0xff]
        %v2672 = vld [vmem:[#allocation3 + $0xd1] sm:$0xff]
        %v2673 = vld [vmem:[#allocation3 + $0xd9] sm:$0xff]
        %v2674 = vld [vmem:[#allocation3 + $0xe1] sm:$0xff]
        %v2675 = vld [vmem:[#allocation3 + $0xe9] sm:$0xff]
        %v2676 = vld [vmem:[#allocation3 + $0xf1] sm:$0xff]
        %v2677 = vld [vmem:[#allocation3 + $0xf9] sm:$0xff]
        %v2678 = vld [vmem:[#allocation3 + $0x101] sm:$0xff]
        %v2679 = vld [vmem:[#allocation3 + $0x109] sm:$0xff]
        %v2680 = vld [vmem:[#allocation3 + $0x111] sm:$0xff]
        %v2681 = vld [vmem:[#allocation3 + $0x119] sm:$0xff]
        %2718 = vrot.lane.b32.xlu0 %v2646, 96
        %v2719 = vpop.permute.xlu0 %2718
        %2720 = vrot.lane.b32.xlu0 %v2647, 96
        %v2721 = vpop.permute.xlu0 %2720
        %2722 = vrot.lane.b32.xlu0 %v2648, 96
        %v2723 = vpop.permute.xlu0 %2722
        %2724 = vrot.lane.b32.xlu0 %v2649, 96
        %v2725 = vpop.permute.xlu0 %2724
        %2726 = vrot.lane.b32.xlu0 %v2650, 96
        %v2727 = vpop.permute.xlu0 %2726
        %2728 = vrot.lane.b32.xlu0 %v2651, 96
        %v2729 = vpop.permute.xlu0 %2728
        %2730 = vrot.lane.b32.xlu0 %v2652, 96
        %v2731 = vpop.permute.xlu0 %2730
        %2732 = vrot.lane.b32.xlu0 %v2653, 96
        %v2733 = vpop.permute.xlu0 %2732
        %2734 = vrot.lane.b32.xlu0 %v2654, 96
        %v2735 = vpop.permute.xlu0 %2734
        %2736 = vrot.lane.b32.xlu0 %v2655, 96
        %v2737 = vpop.permute.xlu0 %2736
        %2738 = vrot.lane.b32.xlu0 %v2656, 96
        %v2739 = vpop.permute.xlu0 %2738
        %2740 = vrot.lane.b32.xlu0 %v2657, 96
        %v2741 = vpop.permute.xlu0 %2740
        %2742 = vrot.lane.b32.xlu0 %v2658, 96
        %v2743 = vpop.permute.xlu0 %2742
        %2744 = vrot.lane.b32.xlu0 %v2659, 96
        %v2745 = vpop.permute.xlu0 %2744
        %2746 = vrot.lane.b32.xlu0 %v2660, 96
        %v2747 = vpop.permute.xlu0 %2746
        %2748 = vrot.lane.b32.xlu0 %v2661, 96
        %v2749 = vpop.permute.xlu0 %2748
        %2750 = vrot.lane.b32.xlu0 %v2662, 96
        %v2751 = vpop.permute.xlu0 %2750
        %2752 = vrot.lane.b32.xlu0 %v2663, 96
        %v2753 = vpop.permute.xlu0 %2752
        %2754 = vrot.lane.b32.xlu0 %v2664, 96
        %v2755 = vpop.permute.xlu0 %2754
        %2756 = vrot.lane.b32.xlu0 %v2665, 96
        %v2757 = vpop.permute.xlu0 %2756
        %2758 = vrot.lane.b32.xlu0 %v2666, 96
        %v2759 = vpop.permute.xlu0 %2758
        %2760 = vrot.lane.b32.xlu0 %v2667, 96
        %v2761 = vpop.permute.xlu0 %2760
        %2762 = vrot.lane.b32.xlu0 %v2668, 96
        %v2763 = vpop.permute.xlu0 %2762
        %2764 = vrot.lane.b32.xlu0 %v2669, 96
        %v2765 = vpop.permute.xlu0 %2764
        %2766 = vrot.lane.b32.xlu0 %v2670, 96
        %v2767 = vpop.permute.xlu0 %2766
        %2768 = vrot.lane.b32.xlu0 %v2671, 96
        %v2769 = vpop.permute.xlu0 %2768
        %2770 = vrot.lane.b32.xlu0 %v2672, 96
        %v2771 = vpop.permute.xlu0 %2770
        %2772 = vrot.lane.b32.xlu0 %v2673, 96
        %v2773 = vpop.permute.xlu0 %2772
        %2774 = vrot.lane.b32.xlu0 %v2674, 96
        %v2775 = vpop.permute.xlu0 %2774
        %2776 = vrot.lane.b32.xlu0 %v2675, 96
        %v2777 = vpop.permute.xlu0 %2776
        %2778 = vrot.lane.b32.xlu0 %v2676, 96
        %v2779 = vpop.permute.xlu0 %2778
        %2780 = vrot.lane.b32.xlu0 %v2677, 96
        %v2781 = vpop.permute.xlu0 %2780
        %2782 = vrot.lane.b32.xlu0 %v2678, 96
        %v2783 = vpop.permute.xlu0 %2782
        %2784 = vrot.lane.b32.xlu0 %v2679, 96
        %v2785 = vpop.permute.xlu0 %2784
        %2786 = vrot.lane.b32.xlu0 %v2680, 96
        %v2787 = vpop.permute.xlu0 %2786
        %2788 = vrot.lane.b32.xlu0 %v2681, 96
        %v2789 = vpop.permute.xlu0 %2788
        %v2826 = vadd.f32 %v2610, %v2719
        %v2827 = vadd.f32 %v2611, %v2721
        %v2828 = vadd.f32 %v2612, %v2723
        %v2829 = vadd.f32 %v2613, %v2725
        %v2830 = vadd.f32 %v2614, %v2727
        %v2831 = vadd.f32 %v2615, %v2729
        %v2832 = vadd.f32 %v2616, %v2731
        %v2833 = vadd.f32 %v2617, %v2733
        %v2834 = vadd.f32 %v2618, %v2735
        %v2835 = vadd.f32 %v2619, %v2737
        %v2836 = vadd.f32 %v2620, %v2739
        %v2837 = vadd.f32 %v2621, %v2741
        %v2838 = vadd.f32 %v2622, %v2743
        %v2839 = vadd.f32 %v2623, %v2745
        %v2840 = vadd.f32 %v2624, %v2747
        %v2841 = vadd.f32 %v2625, %v2749
        %v2842 = vadd.f32 %v2626, %v2751
        %v2843 = vadd.f32 %v2627, %v2753
        %v2844 = vadd.f32 %v2628, %v2755
        %v2845 = vadd.f32 %v2629, %v2757
        %v2846 = vadd.f32 %v2630, %v2759
        %v2847 = vadd.f32 %v2631, %v2761
        %v2848 = vadd.f32 %v2632, %v2763
        %v2849 = vadd.f32 %v2633, %v2765
        %v2850 = vadd.f32 %v2634, %v2767
        %v2851 = vadd.f32 %v2635, %v2769
        %v2852 = vadd.f32 %v2636, %v2771
        %v2853 = vadd.f32 %v2637, %v2773
        %v2854 = vadd.f32 %v2638, %v2775
        %v2855 = vadd.f32 %v2639, %v2777
        %v2856 = vadd.f32 %v2640, %v2779
        %v2857 = vadd.f32 %v2641, %v2781
        %v2858 = vadd.f32 %v2642, %v2783
        %v2859 = vadd.f32 %v2643, %v2785
        %v2860 = vadd.f32 %v2644, %v2787
        %v2861 = vadd.f32 %v2645, %v2789
        %v2862 = vld [vmem:[#allocation3 + $0x2] sm:$0xff]
        %v2863 = vld [vmem:[#allocation3 + $0xa] sm:$0xff]
        %v2864 = vld [vmem:[#allocation3 + $0x12] sm:$0xff]
        %v2865 = vld [vmem:[#allocation3 + $0x1a] sm:$0xff]
        %v2866 = vld [vmem:[#allocation3 + $0x22] sm:$0xff]
        %v2867 = vld [vmem:[#allocation3 + $0x2a] sm:$0xff]
        %v2868 = vld [vmem:[#allocation3 + $0x32] sm:$0xff]
        %v2869 = vld [vmem:[#allocation3 + $0x3a] sm:$0xff]
        %v2870 = vld [vmem:[#allocation3 + $0x42] sm:$0xff]
        %v2871 = vld [vmem:[#allocation3 + $0x4a] sm:$0xff]
        %v2872 = vld [vmem:[#allocation3 + $0x52] sm:$0xff]
        %v2873 = vld [vmem:[#allocation3 + $0x5a] sm:$0xff]
        %v2874 = vld [vmem:[#allocation3 + $0x62] sm:$0xff]
        %v2875 = vld [vmem:[#allocation3 + $0x6a] sm:$0xff]
        %v2876 = vld [vmem:[#allocation3 + $0x72] sm:$0xff]
        %v2877 = vld [vmem:[#allocation3 + $0x7a] sm:$0xff]
        %v2878 = vld [vmem:[#allocation3 + $0x82] sm:$0xff]
        %v2879 = vld [vmem:[#allocation3 + $0x8a] sm:$0xff]
        %v2880 = vld [vmem:[#allocation3 + $0x92] sm:$0xff]
        %v2881 = vld [vmem:[#allocation3 + $0x9a] sm:$0xff]
        %v2882 = vld [vmem:[#allocation3 + $0xa2] sm:$0xff]
        %v2883 = vld [vmem:[#allocation3 + $0xaa] sm:$0xff]
        %v2884 = vld [vmem:[#allocation3 + $0xb2] sm:$0xff]
        %v2885 = vld [vmem:[#allocation3 + $0xba] sm:$0xff]
        %v2886 = vld [vmem:[#allocation3 + $0xc2] sm:$0xff]
        %v2887 = vld [vmem:[#allocation3 + $0xca] sm:$0xff]
        %v2888 = vld [vmem:[#allocation3 + $0xd2] sm:$0xff]
        %v2889 = vld [vmem:[#allocation3 + $0xda] sm:$0xff]
        %v2890 = vld [vmem:[#allocation3 + $0xe2] sm:$0xff]
        %v2891 = vld [vmem:[#allocation3 + $0xea] sm:$0xff]
        %v2892 = vld [vmem:[#allocation3 + $0xf2] sm:$0xff]
        %v2893 = vld [vmem:[#allocation3 + $0xfa] sm:$0xff]
        %v2894 = vld [vmem:[#allocation3 + $0x102] sm:$0xff]
        %v2895 = vld [vmem:[#allocation3 + $0x10a] sm:$0xff]
        %v2896 = vld [vmem:[#allocation3 + $0x112] sm:$0xff]
        %v2897 = vld [vmem:[#allocation3 + $0x11a] sm:$0xff]
        %2934 = vrot.lane.b32.xlu0 %v2862, 64
        %v2935 = vpop.permute.xlu0 %2934
        %2936 = vrot.lane.b32.xlu0 %v2863, 64
        %v2937 = vpop.permute.xlu0 %2936
        %2938 = vrot.lane.b32.xlu0 %v2864, 64
        %v2939 = vpop.permute.xlu0 %2938
        %2940 = vrot.lane.b32.xlu0 %v2865, 64
        %v2941 = vpop.permute.xlu0 %2940
        %2942 = vrot.lane.b32.xlu0 %v2866, 64
        %v2943 = vpop.permute.xlu0 %2942
        %2944 = vrot.lane.b32.xlu0 %v2867, 64
        %v2945 = vpop.permute.xlu0 %2944
        %2946 = vrot.lane.b32.xlu0 %v2868, 64
        %v2947 = vpop.permute.xlu0 %2946
        %2948 = vrot.lane.b32.xlu0 %v2869, 64
        %v2949 = vpop.permute.xlu0 %2948
        %2950 = vrot.lane.b32.xlu0 %v2870, 64
        %v2951 = vpop.permute.xlu0 %2950
        %2952 = vrot.lane.b32.xlu0 %v2871, 64
        %v2953 = vpop.permute.xlu0 %2952
        %2954 = vrot.lane.b32.xlu0 %v2872, 64
        %v2955 = vpop.permute.xlu0 %2954
        %2956 = vrot.lane.b32.xlu0 %v2873, 64
        %v2957 = vpop.permute.xlu0 %2956
        %2958 = vrot.lane.b32.xlu0 %v2874, 64
        %v2959 = vpop.permute.xlu0 %2958
        %2960 = vrot.lane.b32.xlu0 %v2875, 64
        %v2961 = vpop.permute.xlu0 %2960
        %2962 = vrot.lane.b32.xlu0 %v2876, 64
        %v2963 = vpop.permute.xlu0 %2962
        %2964 = vrot.lane.b32.xlu0 %v2877, 64
        %v2965 = vpop.permute.xlu0 %2964
        %2966 = vrot.lane.b32.xlu0 %v2878, 64
        %v2967 = vpop.permute.xlu0 %2966
        %2968 = vrot.lane.b32.xlu0 %v2879, 64
        %v2969 = vpop.permute.xlu0 %2968
        %2970 = vrot.lane.b32.xlu0 %v2880, 64
        %v2971 = vpop.permute.xlu0 %2970
        %2972 = vrot.lane.b32.xlu0 %v2881, 64
        %v2973 = vpop.permute.xlu0 %2972
        %2974 = vrot.lane.b32.xlu0 %v2882, 64
        %v2975 = vpop.permute.xlu0 %2974
        %2976 = vrot.lane.b32.xlu0 %v2883, 64
        %v2977 = vpop.permute.xlu0 %2976
        %2978 = vrot.lane.b32.xlu0 %v2884, 64
        %v2979 = vpop.permute.xlu0 %2978
        %2980 = vrot.lane.b32.xlu0 %v2885, 64
        %v2981 = vpop.permute.xlu0 %2980
        %2982 = vrot.lane.b32.xlu0 %v2886, 64
        %v2983 = vpop.permute.xlu0 %2982
        %2984 = vrot.lane.b32.xlu0 %v2887, 64
        %v2985 = vpop.permute.xlu0 %2984
        %2986 = vrot.lane.b32.xlu0 %v2888, 64
        %v2987 = vpop.permute.xlu0 %2986
        %2988 = vrot.lane.b32.xlu0 %v2889, 64
        %v2989 = vpop.permute.xlu0 %2988
        %2990 = vrot.lane.b32.xlu0 %v2890, 64
        %v2991 = vpop.permute.xlu0 %2990
        %2992 = vrot.lane.b32.xlu0 %v2891, 64
        %v2993 = vpop.permute.xlu0 %2992
        %2994 = vrot.lane.b32.xlu0 %v2892, 64
        %v2995 = vpop.permute.xlu0 %2994
        %2996 = vrot.lane.b32.xlu0 %v2893, 64
        %v2997 = vpop.permute.xlu0 %2996
        %2998 = vrot.lane.b32.xlu0 %v2894, 64
        %v2999 = vpop.permute.xlu0 %2998
        %3000 = vrot.lane.b32.xlu0 %v2895, 64
        %v3001 = vpop.permute.xlu0 %3000
        %3002 = vrot.lane.b32.xlu0 %v2896, 64
        %v3003 = vpop.permute.xlu0 %3002
        %3004 = vrot.lane.b32.xlu0 %v2897, 64
        %v3005 = vpop.permute.xlu0 %3004
        %v3042 = vadd.f32 %v2826, %v2935
        %v3043 = vadd.f32 %v2827, %v2937
        %v3044 = vadd.f32 %v2828, %v2939
        %v3045 = vadd.f32 %v2829, %v2941
        %v3046 = vadd.f32 %v2830, %v2943
        %v3047 = vadd.f32 %v2831, %v2945
        %v3048 = vadd.f32 %v2832, %v2947
        %v3049 = vadd.f32 %v2833, %v2949
        %v3050 = vadd.f32 %v2834, %v2951
        %v3051 = vadd.f32 %v2835, %v2953
        %v3052 = vadd.f32 %v2836, %v2955
        %v3053 = vadd.f32 %v2837, %v2957
        %v3054 = vadd.f32 %v2838, %v2959
        %v3055 = vadd.f32 %v2839, %v2961
        %v3056 = vadd.f32 %v2840, %v2963
        %v3057 = vadd.f32 %v2841, %v2965
        %v3058 = vadd.f32 %v2842, %v2967
        %v3059 = vadd.f32 %v2843, %v2969
        %v3060 = vadd.f32 %v2844, %v2971
        %v3061 = vadd.f32 %v2845, %v2973
        %v3062 = vadd.f32 %v2846, %v2975
        %v3063 = vadd.f32 %v2847, %v2977
        %v3064 = vadd.f32 %v2848, %v2979
        %v3065 = vadd.f32 %v2849, %v2981
        %v3066 = vadd.f32 %v2850, %v2983
        %v3067 = vadd.f32 %v2851, %v2985
        %v3068 = vadd.f32 %v2852, %v2987
        %v3069 = vadd.f32 %v2853, %v2989
        %v3070 = vadd.f32 %v2854, %v2991
        %v3071 = vadd.f32 %v2855, %v2993
        %v3072 = vadd.f32 %v2856, %v2995
        %v3073 = vadd.f32 %v2857, %v2997
        %v3074 = vadd.f32 %v2858, %v2999
        %v3075 = vadd.f32 %v2859, %v3001
        %v3076 = vadd.f32 %v2860, %v3003
        %v3077 = vadd.f32 %v2861, %v3005
        %v3078 = vld [vmem:[%s4] sm:$0x1]
        %v3080 = vlaneseq
        %v3081 = vshrl.u32 %v3080, 7
        %v3082 = vsub.s32 0, %v3081
        %v3083 = vrot.slane %v3078, %v3082
        %v3085 = vadd.f32 %v3042, %v3083
        %v3086 = vadd.f32 %v3043, %v3083
        %v3087 = vadd.f32 %v3044, %v3083
        %v3088 = vadd.f32 %v3045, %v3083
        %v3089 = vadd.f32 %v3046, %v3083
        %v3090 = vadd.f32 %v3047, %v3083
        %v3091 = vadd.f32 %v3048, %v3083
        %v3092 = vadd.f32 %v3049, %v3083
        %v3093 = vadd.f32 %v3050, %v3083
        %v3094 = vadd.f32 %v3051, %v3083
        %v3095 = vadd.f32 %v3052, %v3083
        %v3096 = vadd.f32 %v3053, %v3083
        %v3097 = vadd.f32 %v3054, %v3083
        %v3098 = vadd.f32 %v3055, %v3083
        %v3099 = vadd.f32 %v3056, %v3083
        %v3100 = vadd.f32 %v3057, %v3083
        %v3101 = vadd.f32 %v3058, %v3083
        %v3102 = vadd.f32 %v3059, %v3083
        %v3103 = vadd.f32 %v3060, %v3083
        %v3104 = vadd.f32 %v3061, %v3083
        %v3105 = vadd.f32 %v3062, %v3083
        %v3106 = vadd.f32 %v3063, %v3083
        %v3107 = vadd.f32 %v3064, %v3083
        %v3108 = vadd.f32 %v3065, %v3083
        %v3109 = vadd.f32 %v3066, %v3083
        %v3110 = vadd.f32 %v3067, %v3083
        %v3111 = vadd.f32 %v3068, %v3083
        %v3112 = vadd.f32 %v3069, %v3083
        %v3113 = vadd.f32 %v3070, %v3083
        %v3114 = vadd.f32 %v3071, %v3083
        %v3115 = vadd.f32 %v3072, %v3083
        %v3116 = vadd.f32 %v3073, %v3083
        %v3117 = vadd.f32 %v3074, %v3083
        %v3118 = vadd.f32 %v3075, %v3083
        %v3119 = vadd.f32 %v3076, %v3083
        %v3120 = vadd.f32 %v3077, %v3083
        %vm3121 = vcmask 261120
        %3122 = vst.msk [vmem:[%s392] sm:$0xff] %vm3121, %v3085
        %3123 = vst.msk [vmem:[%s392 + $0x8] sm:$0xff] %vm3121, %v3086
        %3124 = vst.msk [vmem:[%s392 + $0x10] sm:$0xff] %vm3121, %v3087
        %3125 = vst.msk [vmem:[%s392 + $0x18] sm:$0xff] %vm3121, %v3088
        %3126 = vst.msk [vmem:[%s392 + $0x20] sm:$0xff] %vm3121, %v3089
        %3127 = vst.msk [vmem:[%s392 + $0x28] sm:$0xff] %vm3121, %v3090
        %3128 = vst.msk [vmem:[%s392 + $0x30] sm:$0xff] %vm3121, %v3091
        %3129 = vst.msk [vmem:[%s392 + $0x38] sm:$0xff] %vm3121, %v3092
        %3130 = vst.msk [vmem:[%s392 + $0x40] sm:$0xff] %vm3121, %v3093
        %3131 = vst.msk [vmem:[%s392 + $0x48] sm:$0xff] %vm3121, %v3094
        %3132 = vst.msk [vmem:[%s392 + $0x50] sm:$0xff] %vm3121, %v3095
        %3133 = vst.msk [vmem:[%s392 + $0x58] sm:$0xff] %vm3121, %v3096
        %3134 = vst.msk [vmem:[%s392 + $0x60] sm:$0xff] %vm3121, %v3097
        %3135 = vst.msk [vmem:[%s392 + $0x68] sm:$0xff] %vm3121, %v3098
        %3136 = vst.msk [vmem:[%s392 + $0x70] sm:$0xff] %vm3121, %v3099
        %3137 = vst.msk [vmem:[%s392 + $0x78] sm:$0xff] %vm3121, %v3100
        %3138 = vst.msk [vmem:[%s392 + $0x80] sm:$0xff] %vm3121, %v3101
        %3139 = vst.msk [vmem:[%s392 + $0x88] sm:$0xff] %vm3121, %v3102
        %3140 = vst.msk [vmem:[%s392 + $0x90] sm:$0xff] %vm3121, %v3103
        %3141 = vst.msk [vmem:[%s392 + $0x98] sm:$0xff] %vm3121, %v3104
        %3142 = vst.msk [vmem:[%s392 + $0xa0] sm:$0xff] %vm3121, %v3105
        %3143 = vst.msk [vmem:[%s392 + $0xa8] sm:$0xff] %vm3121, %v3106
        %3144 = vst.msk [vmem:[%s392 + $0xb0] sm:$0xff] %vm3121, %v3107
        %3145 = vst.msk [vmem:[%s392 + $0xb8] sm:$0xff] %vm3121, %v3108
        %3146 = vst.msk [vmem:[%s392 + $0xc0] sm:$0xff] %vm3121, %v3109
        %3147 = vst.msk [vmem:[%s392 + $0xc8] sm:$0xff] %vm3121, %v3110
        %3148 = vst.msk [vmem:[%s392 + $0xd0] sm:$0xff] %vm3121, %v3111
        %3149 = vst.msk [vmem:[%s392 + $0xd8] sm:$0xff] %vm3121, %v3112
        %3150 = vst.msk [vmem:[%s392 + $0xe0] sm:$0xff] %vm3121, %v3113
        %3151 = vst.msk [vmem:[%s392 + $0xe8] sm:$0xff] %vm3121, %v3114
        %3152 = vst.msk [vmem:[%s392 + $0xf0] sm:$0xff] %vm3121, %v3115
        %3153 = vst.msk [vmem:[%s392 + $0xf8] sm:$0xff] %vm3121, %v3116
        %3154 = vst.msk [vmem:[%s392 + $0x100] sm:$0xff] %vm3121, %v3117
        %3155 = vst.msk [vmem:[%s392 + $0x108] sm:$0xff] %vm3121, %v3118
        %3156 = vst.msk [vmem:[%s392 + $0x110] sm:$0xff] %vm3121, %v3119
        %3157 = vst.msk [vmem:[%s392 + $0x118] sm:$0xff] %vm3121, %v3120
        %p3158 = scmp.lt.s32.totalorder %s16, 1
        %s3159 = scalar_select %p3158, %s16, 1
        %s3160 = smul.addr %s3159, 36
        %s3161 = smul.addr %s3160, 8
        %s3162 = scalar_lea.vmem %s5, %s3161
        // Predicated region
        $region82: #{upsample_unit_forward.3} parent=76 // pred_check
          %p3163 = pneg %p144
        $region83: #{upsample_unit_forward.3} parent=76 // pred_check_branch
          %3165 = sbr.rel (%p3163) target = $region85
        $region84: #{upsample_unit_forward.3} parent=76 // pred_region
          _
        $region85: #{upsample_unit_forward.3} parent=76 // pred_fallthru
          _
      $region77: #{upsample_unit_forward.3} parent=5 // pred_fallthru
        _
      %p3166 = scmp.le.s32.totalorder 2, %s11
      // Predicated region
      $region86: #{upsample_unit_forward.3} parent=5 // pred_check
        %p3167 = pneg %p3166
      $region87: #{upsample_unit_forward.3} parent=5 // pred_check_branch
        %3169 = sbr.rel (%p3167) target = $region89
      $region88: #{upsample_unit_forward.3} parent=5 // pred_region
        %s3170 = ssub.s32 %s11, 2
        // Predicated region
        $region90: #{upsample_unit_forward.3} parent=88 // pred_check
          %p3171 = pneg %p150
        $region91: #{upsample_unit_forward.3} parent=88 // pred_check_branch
          %3173 = sbr.rel (%p3171) target = $region93
        $region92: #{upsample_unit_forward.3} parent=88 // pred_region
          %p3174 = scmp.lt.s32.totalorder %s17, 1
          %s3175 = scalar_select %p3174, %s17, 1
          %s3176 = smul.addr %s3175, 36
          %s3177 = smul.addr %s3176, 8
          %s3178 = scalar_lea.vmem %s5, %s3177
        $region93: #{upsample_unit_forward.3} parent=88 // pred_fallthru
          _
      $region89: #{upsample_unit_forward.3} parent=5 // pred_fallthru
        _
    $region6: #{upsample_unit_forward.3} parent=1 // loop_footer
      %s15 = sadd.s32 1, %s11
    $region7: #{upsample_unit_forward.3} parent=1 // loop_footer_branch
      %10 = sbr.rel target = $region3
    $region8: #{upsample_unit_forward.3} parent=1 // loop_exit
      _

</llo_original>
